<compile_context>
chip_gen: v7x
topology: tpu7x:2x2x1
jax: 0.10.0
libtpu: 0.0.40
codegen_flags: <defaults>
</compile_context>

<pallas_src>
import jax
import jax.numpy as jnp
import numpy as np
from jax import lax
from jax.experimental import pallas as pl
from jax.experimental.pallas import tpu as pltpu

SLAB = 128          # lane slab per GRU gate (and output width)
TILE_B_MAX = 256    # batch rows per grid step at scale


# ----------------------------- Pallas kernel -----------------------------

def gru_receiver_kernel(msg_ref, table_ref, whh_ref, bhh_ref, wfc_ref, bfc_ref,
                        out_ref):
    """One batch tile of the GRU receiver.

    msg_ref:   (T, TB) int32   tokens (time-major); finished/pad positions hold
                               the freeze token.
    table_ref: (Vp, 3*SLAB) f32  fused  emb @ W_ih^T + b_ih  per token, each
                               gate padded to its own 128-lane slab (r|z|n);
                               the freeze row saturates the z slab.
    whh_ref:   (SLAB, 3*SLAB) f32  [W_hr^T | W_hz^T | W_hn^T], rows >= H zero.
    bhh_ref:   (1, 3*SLAB)    f32  hidden biases, one slab per gate.
    wfc_ref:   (SLAB, SLAB)   f32  output Linear weight (rows >= H, cols >= O zero).
    bfc_ref:   (1, SLAB)      f32  output Linear bias  (cols >= O zero).
    out_ref:   (TB, SLAB)     f32  lane-dense output; caller slices [:B, :O].
    """
    T, TB = msg_ref.shape
    Vp = table_ref.shape[0]
    G3 = 3 * SLAB

    table = table_ref[...]
    whh = whh_ref[...]
    bhh = jnp.broadcast_to(bhh_ref[...], (TB, G3))      # hoisted out of the loop

    # One-hot token encoding for the whole tile; drives the in-kernel gather.
    msg = msg_ref[...]                                   # (T, TB) int32
    onehot = (msg[:, :, None] ==
              lax.broadcasted_iota(jnp.int32, (T, TB, Vp), 2)).astype(jnp.float32)

    # Hidden state as a full 128-lane slab; lanes >= H stay exactly zero.
    h = jnp.zeros((TB, SLAB), jnp.float32)

    # NOTE: the recurrence is serially dependent across t; the unroll gives the
    # LLO scheduler visibility but does NOT overlap adjacent steps' matmuls.
    for t in range(T):
        # Input-side gate pre-activations: exact row gather via one-hot matmul
        # (depends only on tokens, off the serial h-chain).
        gi = jnp.dot(onehot[t], table, preferred_element_type=jnp.float32)
        gh = jnp.dot(h, whh, preferred_element_type=jnp.float32) + bhh
        rz = jax.nn.sigmoid(gi[:, :2 * SLAB] + gh[:, :2 * SLAB])   # fused r|z
        r = rz[:, :SLAB]
        z = rz[:, SLAB:]
        n = jnp.tanh(gi[:, 2 * SLAB:] + r * gh[:, 2 * SLAB:])
        # For frozen positions z == 1.0 exactly -> h carried through bitwise.
        h = (1.0 - z) * n + z * h

    out_ref[...] = (jnp.dot(h, wfc_ref[...], preferred_element_type=jnp.float32)
                    + bfc_ref[...])


# ----------------------- parameter prep (once per params) -----------------------

def prepare_receiver_params(params, hidden):
    """Fold embedding + W_ih + biases into kernel-ready lane-slab tables.

    Call once per parameter set, NOT on every forward."""
    H = hidden
    assert H <= SLAB, "hidden must fit one 128-lane slab"
    emb = params["embedding"].astype(jnp.float32)        # (V, E), V = vocab+1
    w_ih = params["w_ih"].astype(jnp.float32)            # (3H, E), gates r|z|n
    w_hh = params["w_hh"].astype(jnp.float32)            # (3H, H)
    b_ih = params["b_ih"].astype(jnp.float32)
    b_hh = params["b_hh"].astype(jnp.float32)
    w_fc = params["w_fc"].astype(jnp.float32)            # (O, H)
    b_fc = params["b_fc"].astype(jnp.float32)

    V = emb.shape[0]
    O = w_fc.shape[0]
    assert O <= SLAB, "output dim must fit one 128-lane slab"
    freeze_id = V                                        # extra "carry h" token
    Vp = ((V + 1 + 7) // 8) * 8                          # sublane-rounded rows

    # gi_table[v], gate g in lanes [g*SLAB, g*SLAB + H), rest zero.
    gi = emb @ w_ih.T + b_ih[None, :]                    # (V, 3H)
    def to_slab(x):
        return jnp.pad(x, ((0, 0), (0, SLAB - x.shape[1])))
    table = jnp.concatenate(
        [to_slab(gi[:, g * H:(g + 1) * H]) for g in range(3)], axis=1)  # (V, 3*SLAB)
    # Freeze row: saturate the whole z slab so sigmoid == 1.0 in f32 -> h_new == h.
    freeze_row = jnp.zeros((1, 3 * SLAB), jnp.float32).at[:, SLAB:2 * SLAB].set(1e4)
    table = jnp.concatenate([table, freeze_row], axis=0)                # (V+1, 3*SLAB)
    table = jnp.pad(table, ((0, Vp - (V + 1)), (0, 0)))                 # (Vp, 3*SLAB)

    def gate_block(g):
        wg = w_hh[g * H:(g + 1) * H].T                   # (H, H)
        return jnp.pad(wg, ((0, SLAB - H), (0, SLAB - H)))
    whh = jnp.concatenate([gate_block(g) for g in range(3)], axis=1)    # (SLAB, 3*SLAB)
    bhh = jnp.concatenate(
        [jnp.pad(b_hh[g * H:(g + 1) * H], (0, SLAB - H)) for g in range(3)])[None, :]

    wfc = jnp.pad(w_fc.T, ((0, SLAB - H), (0, SLAB - O)))               # (SLAB, SLAB)
    bfc = jnp.pad(b_fc, (0, SLAB - O))[None, :]                         # (1, SLAB)

    return {"gi_table": table, "whh": whh, "bhh": bhh, "wfc": wfc, "bfc": bfc,
            "freeze_id": freeze_id, "n_out": O}


# ------------------------------ per-call wrapper ---------------------------------

def find_lengths(message):
    """EGG core.find_lengths: index of first 0 plus 1, clamped to T (T if no 0)."""
    T = message.shape[1]
    seen_zero = jnp.cumsum((message == 0).astype(jnp.int32), axis=1) > 0
    lengths = T - jnp.sum(seen_zero.astype(jnp.int32), axis=1)
    return jnp.minimum(lengths + 1, T).astype(jnp.int32)


def orig_receiver_forward(message, prepared):
    B, T = message.shape
    freeze_id = prepared["freeze_id"]
    O = prepared["n_out"]

    # Fold packed-sequence masking into the token stream: once a sequence is
    # past its find_lengths() length, feed the freeze token (z saturates, h kept).
    lengths = find_lengths(message)                                     # (B,)
    t_idx = jnp.arange(T, dtype=jnp.int32)[None, :]
    msg = jnp.where(t_idx < lengths[:, None], message.astype(jnp.int32),
                    jnp.int32(freeze_id))                               # (B, T)

    # Batch tiling: single tile for small B; TILE_B_MAX-row tiles on a parallel
    # grid at scale (pipelined DMA, shardable across v7x TensorCores).
    if B <= TILE_B_MAX:
        Bp = max(8, ((B + 7) // 8) * 8)
        tile_b = Bp
    else:
        tile_b = TILE_B_MAX
        Bp = ((B + tile_b - 1) // tile_b) * tile_b
    num_tiles = Bp // tile_b

    msg = jnp.pad(msg, ((0, Bp - B), (0, 0)), constant_values=freeze_id).T   # (T, Bp)

    table = prepared["gi_table"]
    Vp, G3 = table.shape

    out_padded = pl.pallas_call(
        gru_receiver_kernel,
        out_shape=jax.ShapeDtypeStruct((Bp, SLAB), jnp.float32),
        grid=(num_tiles,),
        in_specs=[
            pl.BlockSpec((T, tile_b), lambda i: (0, i)),       # int32 tokens
            pl.BlockSpec((Vp, G3), lambda i: (0, 0)),          # fused gi table
            pl.BlockSpec((SLAB, G3), lambda i: (0, 0)),        # W_hh gate slabs
            pl.BlockSpec((1, G3), lambda i: (0, 0)),           # b_hh gate slabs
            pl.BlockSpec((SLAB, SLAB), lambda i: (0, 0)),      # FC weight
            pl.BlockSpec((1, SLAB), lambda i: (0, 0)),         # FC bias
        ],
        out_specs=pl.BlockSpec((tile_b, SLAB), lambda i: (i, 0)),
        compiler_params=pltpu.CompilerParams(
            dimension_semantics=("parallel",)),
    )(msg, table, prepared["whh"], prepared["bhh"],
      prepared["wfc"], prepared["bfc"])

    agent_output = out_padded[:B, :O]
    # RnnReceiverDeterministic: logits and entropy are zeros(batch).
    logits = jnp.zeros((B,), jnp.float32)
    return agent_output, logits, logits


# --------------------------- pure-JAX reference ---------------------------

def init_params(key, vocab_plus_one, emb_dim, hidden, n_out):
    """Deterministic synthetic parameters (PyTorch-default-like uniform init)."""
    ks = jax.random.split(key, 8)
    k_gru = 1.0 / np.sqrt(hidden)
    k_fc = 1.0 / np.sqrt(hidden)
    return {
        "embedding": jax.random.normal(ks[0], (vocab_plus_one, emb_dim), jnp.float32),
        "w_ih": jax.random.uniform(ks[1], (3 * hidden, emb_dim), jnp.float32, -k_gru, k_gru),
        "w_hh": jax.random.uniform(ks[2], (3 * hidden, hidden), jnp.float32, -k_gru, k_gru),
        "b_ih": jax.random.uniform(ks[3], (3 * hidden,), jnp.float32, -k_gru, k_gru),
        "b_hh": jax.random.uniform(ks[4], (3 * hidden,), jnp.float32, -k_gru, k_gru),
        "w_fc": jax.random.uniform(ks[5], (n_out, hidden), jnp.float32, -k_fc, k_fc),
        "b_fc": jax.random.uniform(ks[6], (n_out,), jnp.float32, -k_fc, k_fc),
    }


def reference_forward(message, params, hidden):
    B, T = message.shape
    H = hidden
    emb = params["embedding"][message]                       # (B, T, E)
    lengths = find_lengths(message)                          # (B,)
    w_ih, w_hh = params["w_ih"], params["w_hh"]
    b_ih, b_hh = params["b_ih"], params["b_hh"]

    def cell(h, x_t):
        gi = x_t @ w_ih.T + b_ih
        gh = h @ w_hh.T + b_hh
        i_r, i_z, i_n = gi[:, :H], gi[:, H:2 * H], gi[:, 2 * H:]
        h_r, h_z, h_n = gh[:, :H], gh[:, H:2 * H], gh[:, 2 * H:]
        r = jax.nn.sigmoid(i_r + h_r)
        z = jax.nn.sigmoid(i_z + h_z)
        n = jnp.tanh(i_n + r * h_n)
        return (1.0 - z) * n + z * h

    h = jnp.zeros((B, H), jnp.float32)
    for t in range(T):
        h_new = cell(h, emb[:, t, :])
        h = jnp.where((t < lengths)[:, None], h_new, h)
    out = h @ params["w_fc"].T + params["b_fc"]
    return out, jnp.zeros((B,), jnp.float32), jnp.zeros((B,), jnp.float32)


# --------------------------------- main -----------------------------------

if __name__ == "__main__":
    # Small opts consistent with the module:
    #   n_attributes=2, n_values=4 -> n_dim = 8
    #   hidden=32, vocab_size=5 (embedding table vocab_size+1=6 rows)
    #   receiver_emb=16, batch=4, max message length T=8
    n_attributes, n_values = 2, 4
    n_dim = n_attributes * n_values
    hidden = 32
    vocab_size = 5
    receiver_emb = 16
    B, T = 4, 8

    key = jax.random.PRNGKey(0)
    k_msg, k_par = jax.random.split(key)
    # tokens in [0, vocab_size]; 0 acts as EOS for find_lengths
    message = jax.random.randint(k_msg, (B, T), 0, vocab_size + 1, dtype=jnp.int32)
    params = init_params(k_par, vocab_size + 1, receiver_emb, hidden, n_dim)

    # Built once per parameter set, hoisted off the per-call path.
    prepared = prepare_receiver_params(params, hidden)

    out, logits, entropy = orig_receiver_forward(message, prepared)
    out = jax.block_until_ready(out)

    ref_out, ref_logits, ref_entropy = reference_forward(message, params, hidden)
    np.testing.assert_allclose(np.asarray(out), np.asarray(ref_out),
                               rtol=1e-5, atol=1e-5)
    np.testing.assert_allclose(np.asarray(logits), np.asarray(ref_logits))
    np.testing.assert_allclose(np.asarray(entropy), np.asarray(ref_entropy))

    print("KERNEL_OK")
</pallas_src>

<mosaic_0001>
module attributes {stable_mosaic.version = 11 : i64} {
  func.func @gru_receiver_kernel(%arg0: i32, %arg1: memref<8x8xi32, #tpu.memory_space<vmem>>, %arg2: memref<8x384xf32, #tpu.memory_space<vmem>>, %arg3: memref<128x384xf32, #tpu.memory_space<vmem>>, %arg4: memref<1x384xf32, #tpu.memory_space<vmem>>, %arg5: memref<128x128xf32, #tpu.memory_space<vmem>>, %arg6: memref<1x128xf32, #tpu.memory_space<vmem>>, %arg7: memref<8x128xf32, #tpu.memory_space<vmem>>) attributes {dimension_semantics = [#tpu.dimension_semantics<parallel>], iteration_bounds = array<i64: 1>, scalar_prefetch = 0 : i64, scratch_operands = 0 : i64, tpu.core_type = #tpu.core_type<tc>, window_params = [{transform_indices = @transform_0, window_bounds = array<i64: 8, 8>}, {pipeline_mode = #tpu.pipeline_mode<synchronous>, transform_indices = @transform_1, window_bounds = array<i64: 8, 384>}, {pipeline_mode = #tpu.pipeline_mode<synchronous>, transform_indices = @transform_2, window_bounds = array<i64: 128, 384>}, {pipeline_mode = #tpu.pipeline_mode<synchronous>, transform_indices = @transform_3, window_bounds = array<i64: 1, 384>}, {pipeline_mode = #tpu.pipeline_mode<synchronous>, transform_indices = @transform_4, window_bounds = array<i64: 128, 128>}, {pipeline_mode = #tpu.pipeline_mode<synchronous>, transform_indices = @transform_5, window_bounds = array<i64: 1, 128>}, {transform_indices = @transform_6, window_bounds = array<i64: 8, 128>}]} {
    %c0 = arith.constant 0 : index
    %c0_0 = arith.constant 0 : index
    %0 = vector.load %arg2[%c0, %c0_0] : memref<8x384xf32, #tpu.memory_space<vmem>>, vector<8x384xf32>
    %c0_1 = arith.constant 0 : index
    %c0_2 = arith.constant 0 : index
    %1 = vector.load %arg3[%c0_1, %c0_2] : memref<128x384xf32, #tpu.memory_space<vmem>>, vector<128x384xf32>
    %c0_3 = arith.constant 0 : index
    %c0_4 = arith.constant 0 : index
    %2 = vector.load %arg4[%c0_3, %c0_4] : memref<1x384xf32, #tpu.memory_space<vmem>>, vector<1x384xf32>
    %3 = vector.shape_cast %2 : vector<1x384xf32> to vector<1x384xf32>
    %4 = vector.broadcast %3 : vector<1x384xf32> to vector<8x384xf32>
    %c0_5 = arith.constant 0 : index
    %c0_6 = arith.constant 0 : index
    %5 = vector.load %arg1[%c0_5, %c0_6] : memref<8x8xi32, #tpu.memory_space<vmem>>, vector<8x8xi32>
    %6 = vector.shape_cast %5 : vector<8x8xi32> to vector<8x8x1xi32>
    %7 = tpu.iota {dimensions = array<i32: 2>} : vector<8x8x8xi32>
    %8 = vector.broadcast %6 : vector<8x8x1xi32> to vector<8x8x8xi32>
    %9 = arith.cmpi eq, %8, %7 : vector<8x8x8xi32>
    %10 = arith.extui %9 : vector<8x8x8xi1> to vector<8x8x8xi32>
    %11 = arith.sitofp %10 : vector<8x8x8xi32> to vector<8x8x8xf32>
    %cst = arith.constant 0.000000e+00 : f32
    %12 = vector.broadcast %cst : f32 to vector<8x128xf32>
    %13 = vector.extract_strided_slice %11 {offsets = [0, 0, 0], sizes = [1, 8, 8], strides = [1, 1, 1]} : vector<8x8x8xf32> to vector<1x8x8xf32>
    %14 = vector.shape_cast %13 : vector<1x8x8xf32> to vector<8x8xf32>
    %cst_7 = arith.constant dense<0.000000e+00> : vector<8x384xf32>
    %15 = tpu.matmul %14, %0, %cst_7 {dimension_numbers = #tpu.dot_dimension_numbers<[1], [0], [0], [1], [0, 0, 1, 1], [], []>} : vector<8x8xf32>, vector<8x384xf32>, vector<8x384xf32> -> vector<8x384xf32>
    %cst_8 = arith.constant dense<0.000000e+00> : vector<8x384xf32>
    %16 = tpu.matmul %12, %1, %cst_8 {dimension_numbers = #tpu.dot_dimension_numbers<[1], [0], [0], [1], [0, 0, 1, 1], [], []>} : vector<8x128xf32>, vector<128x384xf32>, vector<8x384xf32> -> vector<8x384xf32>
    %17 = arith.addf %16, %4 : vector<8x384xf32>
    %18 = vector.extract_strided_slice %15 {offsets = [0, 0], sizes = [8, 256], strides = [1, 1]} : vector<8x384xf32> to vector<8x256xf32>
    %19 = vector.extract_strided_slice %17 {offsets = [0, 0], sizes = [8, 256], strides = [1, 1]} : vector<8x384xf32> to vector<8x256xf32>
    %20 = arith.addf %18, %19 : vector<8x256xf32>
    %21 = arith.negf %20 : vector<8x256xf32>
    %22 = math.exp %21 : vector<8x256xf32>
    %cst_9 = arith.constant 1.000000e+00 : f32
    %23 = vector.broadcast %cst_9 : f32 to vector<8x256xf32>
    %24 = arith.addf %23, %22 : vector<8x256xf32>
    %25 = arith.divf %23, %24 : vector<8x256xf32>
    %26 = vector.extract_strided_slice %25 {offsets = [0, 0], sizes = [8, 128], strides = [1, 1]} : vector<8x256xf32> to vector<8x128xf32>
    %27 = vector.extract_strided_slice %25 {offsets = [0, 128], sizes = [8, 128], strides = [1, 1]} : vector<8x256xf32> to vector<8x128xf32>
    %28 = vector.extract_strided_slice %15 {offsets = [0, 256], sizes = [8, 128], strides = [1, 1]} : vector<8x384xf32> to vector<8x128xf32>
    %29 = vector.extract_strided_slice %17 {offsets = [0, 256], sizes = [8, 128], strides = [1, 1]} : vector<8x384xf32> to vector<8x128xf32>
    %30 = arith.mulf %26, %29 : vector<8x128xf32>
    %31 = arith.addf %28, %30 : vector<8x128xf32>
    %32 = math.tanh %31 : vector<8x128xf32>
    %cst_10 = arith.constant 1.000000e+00 : f32
    %33 = vector.broadcast %cst_10 : f32 to vector<8x128xf32>
    %34 = arith.subf %33, %27 : vector<8x128xf32>
    %35 = arith.mulf %34, %32 : vector<8x128xf32>
    %36 = arith.mulf %27, %12 : vector<8x128xf32>
    %37 = arith.addf %35, %36 : vector<8x128xf32>
    %38 = vector.extract_strided_slice %11 {offsets = [1, 0, 0], sizes = [1, 8, 8], strides = [1, 1, 1]} : vector<8x8x8xf32> to vector<1x8x8xf32>
    %39 = vector.shape_cast %38 : vector<1x8x8xf32> to vector<8x8xf32>
    %cst_11 = arith.constant dense<0.000000e+00> : vector<8x384xf32>
    %40 = tpu.matmul %39, %0, %cst_11 {dimension_numbers = #tpu.dot_dimension_numbers<[1], [0], [0], [1], [0, 0, 1, 1], [], []>} : vector<8x8xf32>, vector<8x384xf32>, vector<8x384xf32> -> vector<8x384xf32>
    %cst_12 = arith.constant dense<0.000000e+00> : vector<8x384xf32>
    %41 = tpu.matmul %37, %1, %cst_12 {dimension_numbers = #tpu.dot_dimension_numbers<[1], [0], [0], [1], [0, 0, 1, 1], [], []>} : vector<8x128xf32>, vector<128x384xf32>, vector<8x384xf32> -> vector<8x384xf32>
    %42 = arith.addf %41, %4 : vector<8x384xf32>
    %43 = vector.extract_strided_slice %40 {offsets = [0, 0], sizes = [8, 256], strides = [1, 1]} : vector<8x384xf32> to vector<8x256xf32>
    %44 = vector.extract_strided_slice %42 {offsets = [0, 0], sizes = [8, 256], strides = [1, 1]} : vector<8x384xf32> to vector<8x256xf32>
    %45 = arith.addf %43, %44 : vector<8x256xf32>
    %46 = arith.negf %45 : vector<8x256xf32>
    %47 = math.exp %46 : vector<8x256xf32>
    %cst_13 = arith.constant 1.000000e+00 : f32
    %48 = vector.broadcast %cst_13 : f32 to vector<8x256xf32>
    %49 = arith.addf %48, %47 : vector<8x256xf32>
    %50 = arith.divf %48, %49 : vector<8x256xf32>
    %51 = vector.extract_strided_slice %50 {offsets = [0, 0], sizes = [8, 128], strides = [1, 1]} : vector<8x256xf32> to vector<8x128xf32>
    %52 = vector.extract_strided_slice %50 {offsets = [0, 128], sizes = [8, 128], strides = [1, 1]} : vector<8x256xf32> to vector<8x128xf32>
    %53 = vector.extract_strided_slice %40 {offsets = [0, 256], sizes = [8, 128], strides = [1, 1]} : vector<8x384xf32> to vector<8x128xf32>
    %54 = vector.extract_strided_slice %42 {offsets = [0, 256], sizes = [8, 128], strides = [1, 1]} : vector<8x384xf32> to vector<8x128xf32>
    %55 = arith.mulf %51, %54 : vector<8x128xf32>
    %56 = arith.addf %53, %55 : vector<8x128xf32>
    %57 = math.tanh %56 : vector<8x128xf32>
    %cst_14 = arith.constant 1.000000e+00 : f32
    %58 = vector.broadcast %cst_14 : f32 to vector<8x128xf32>
    %59 = arith.subf %58, %52 : vector<8x128xf32>
    %60 = arith.mulf %59, %57 : vector<8x128xf32>
    %61 = arith.mulf %52, %37 : vector<8x128xf32>
    %62 = arith.addf %60, %61 : vector<8x128xf32>
    %63 = vector.extract_strided_slice %11 {offsets = [2, 0, 0], sizes = [1, 8, 8], strides = [1, 1, 1]} : vector<8x8x8xf32> to vector<1x8x8xf32>
    %64 = vector.shape_cast %63 : vector<1x8x8xf32> to vector<8x8xf32>
    %cst_15 = arith.constant dense<0.000000e+00> : vector<8x384xf32>
    %65 = tpu.matmul %64, %0, %cst_15 {dimension_numbers = #tpu.dot_dimension_numbers<[1], [0], [0], [1], [0, 0, 1, 1], [], []>} : vector<8x8xf32>, vector<8x384xf32>, vector<8x384xf32> -> vector<8x384xf32>
    %cst_16 = arith.constant dense<0.000000e+00> : vector<8x384xf32>
    %66 = tpu.matmul %62, %1, %cst_16 {dimension_numbers = #tpu.dot_dimension_numbers<[1], [0], [0], [1], [0, 0, 1, 1], [], []>} : vector<8x128xf32>, vector<128x384xf32>, vector<8x384xf32> -> vector<8x384xf32>
    %67 = arith.addf %66, %4 : vector<8x384xf32>
    %68 = vector.extract_strided_slice %65 {offsets = [0, 0], sizes = [8, 256], strides = [1, 1]} : vector<8x384xf32> to vector<8x256xf32>
    %69 = vector.extract_strided_slice %67 {offsets = [0, 0], sizes = [8, 256], strides = [1, 1]} : vector<8x384xf32> to vector<8x256xf32>
    %70 = arith.addf %68, %69 : vector<8x256xf32>
    %71 = arith.negf %70 : vector<8x256xf32>
    %72 = math.exp %71 : vector<8x256xf32>
    %cst_17 = arith.constant 1.000000e+00 : f32
    %73 = vector.broadcast %cst_17 : f32 to vector<8x256xf32>
    %74 = arith.addf %73, %72 : vector<8x256xf32>
    %75 = arith.divf %73, %74 : vector<8x256xf32>
    %76 = vector.extract_strided_slice %75 {offsets = [0, 0], sizes = [8, 128], strides = [1, 1]} : vector<8x256xf32> to vector<8x128xf32>
    %77 = vector.extract_strided_slice %75 {offsets = [0, 128], sizes = [8, 128], strides = [1, 1]} : vector<8x256xf32> to vector<8x128xf32>
    %78 = vector.extract_strided_slice %65 {offsets = [0, 256], sizes = [8, 128], strides = [1, 1]} : vector<8x384xf32> to vector<8x128xf32>
    %79 = vector.extract_strided_slice %67 {offsets = [0, 256], sizes = [8, 128], strides = [1, 1]} : vector<8x384xf32> to vector<8x128xf32>
    %80 = arith.mulf %76, %79 : vector<8x128xf32>
    %81 = arith.addf %78, %80 : vector<8x128xf32>
    %82 = math.tanh %81 : vector<8x128xf32>
    %cst_18 = arith.constant 1.000000e+00 : f32
    %83 = vector.broadcast %cst_18 : f32 to vector<8x128xf32>
    %84 = arith.subf %83, %77 : vector<8x128xf32>
    %85 = arith.mulf %84, %82 : vector<8x128xf32>
    %86 = arith.mulf %77, %62 : vector<8x128xf32>
    %87 = arith.addf %85, %86 : vector<8x128xf32>
    %88 = vector.extract_strided_slice %11 {offsets = [3, 0, 0], sizes = [1, 8, 8], strides = [1, 1, 1]} : vector<8x8x8xf32> to vector<1x8x8xf32>
    %89 = vector.shape_cast %88 : vector<1x8x8xf32> to vector<8x8xf32>
    %cst_19 = arith.constant dense<0.000000e+00> : vector<8x384xf32>
    %90 = tpu.matmul %89, %0, %cst_19 {dimension_numbers = #tpu.dot_dimension_numbers<[1], [0], [0], [1], [0, 0, 1, 1], [], []>} : vector<8x8xf32>, vector<8x384xf32>, vector<8x384xf32> -> vector<8x384xf32>
    %cst_20 = arith.constant dense<0.000000e+00> : vector<8x384xf32>
    %91 = tpu.matmul %87, %1, %cst_20 {dimension_numbers = #tpu.dot_dimension_numbers<[1], [0], [0], [1], [0, 0, 1, 1], [], []>} : vector<8x128xf32>, vector<128x384xf32>, vector<8x384xf32> -> vector<8x384xf32>
    %92 = arith.addf %91, %4 : vector<8x384xf32>
    %93 = vector.extract_strided_slice %90 {offsets = [0, 0], sizes = [8, 256], strides = [1, 1]} : vector<8x384xf32> to vector<8x256xf32>
    %94 = vector.extract_strided_slice %92 {offsets = [0, 0], sizes = [8, 256], strides = [1, 1]} : vector<8x384xf32> to vector<8x256xf32>
    %95 = arith.addf %93, %94 : vector<8x256xf32>
    %96 = arith.negf %95 : vector<8x256xf32>
    %97 = math.exp %96 : vector<8x256xf32>
    %cst_21 = arith.constant 1.000000e+00 : f32
    %98 = vector.broadcast %cst_21 : f32 to vector<8x256xf32>
    %99 = arith.addf %98, %97 : vector<8x256xf32>
    %100 = arith.divf %98, %99 : vector<8x256xf32>
    %101 = vector.extract_strided_slice %100 {offsets = [0, 0], sizes = [8, 128], strides = [1, 1]} : vector<8x256xf32> to vector<8x128xf32>
    %102 = vector.extract_strided_slice %100 {offsets = [0, 128], sizes = [8, 128], strides = [1, 1]} : vector<8x256xf32> to vector<8x128xf32>
    %103 = vector.extract_strided_slice %90 {offsets = [0, 256], sizes = [8, 128], strides = [1, 1]} : vector<8x384xf32> to vector<8x128xf32>
    %104 = vector.extract_strided_slice %92 {offsets = [0, 256], sizes = [8, 128], strides = [1, 1]} : vector<8x384xf32> to vector<8x128xf32>
    %105 = arith.mulf %101, %104 : vector<8x128xf32>
    %106 = arith.addf %103, %105 : vector<8x128xf32>
    %107 = math.tanh %106 : vector<8x128xf32>
    %cst_22 = arith.constant 1.000000e+00 : f32
    %108 = vector.broadcast %cst_22 : f32 to vector<8x128xf32>
    %109 = arith.subf %108, %102 : vector<8x128xf32>
    %110 = arith.mulf %109, %107 : vector<8x128xf32>
    %111 = arith.mulf %102, %87 : vector<8x128xf32>
    %112 = arith.addf %110, %111 : vector<8x128xf32>
    %113 = vector.extract_strided_slice %11 {offsets = [4, 0, 0], sizes = [1, 8, 8], strides = [1, 1, 1]} : vector<8x8x8xf32> to vector<1x8x8xf32>
    %114 = vector.shape_cast %113 : vector<1x8x8xf32> to vector<8x8xf32>
    %cst_23 = arith.constant dense<0.000000e+00> : vector<8x384xf32>
    %115 = tpu.matmul %114, %0, %cst_23 {dimension_numbers = #tpu.dot_dimension_numbers<[1], [0], [0], [1], [0, 0, 1, 1], [], []>} : vector<8x8xf32>, vector<8x384xf32>, vector<8x384xf32> -> vector<8x384xf32>
    %cst_24 = arith.constant dense<0.000000e+00> : vector<8x384xf32>
    %116 = tpu.matmul %112, %1, %cst_24 {dimension_numbers = #tpu.dot_dimension_numbers<[1], [0], [0], [1], [0, 0, 1, 1], [], []>} : vector<8x128xf32>, vector<128x384xf32>, vector<8x384xf32> -> vector<8x384xf32>
    %117 = arith.addf %116, %4 : vector<8x384xf32>
    %118 = vector.extract_strided_slice %115 {offsets = [0, 0], sizes = [8, 256], strides = [1, 1]} : vector<8x384xf32> to vector<8x256xf32>
    %119 = vector.extract_strided_slice %117 {offsets = [0, 0], sizes = [8, 256], strides = [1, 1]} : vector<8x384xf32> to vector<8x256xf32>
    %120 = arith.addf %118, %119 : vector<8x256xf32>
    %121 = arith.negf %120 : vector<8x256xf32>
    %122 = math.exp %121 : vector<8x256xf32>
    %cst_25 = arith.constant 1.000000e+00 : f32
    %123 = vector.broadcast %cst_25 : f32 to vector<8x256xf32>
    %124 = arith.addf %123, %122 : vector<8x256xf32>
    %125 = arith.divf %123, %124 : vector<8x256xf32>
    %126 = vector.extract_strided_slice %125 {offsets = [0, 0], sizes = [8, 128], strides = [1, 1]} : vector<8x256xf32> to vector<8x128xf32>
    %127 = vector.extract_strided_slice %125 {offsets = [0, 128], sizes = [8, 128], strides = [1, 1]} : vector<8x256xf32> to vector<8x128xf32>
    %128 = vector.extract_strided_slice %115 {offsets = [0, 256], sizes = [8, 128], strides = [1, 1]} : vector<8x384xf32> to vector<8x128xf32>
    %129 = vector.extract_strided_slice %117 {offsets = [0, 256], sizes = [8, 128], strides = [1, 1]} : vector<8x384xf32> to vector<8x128xf32>
    %130 = arith.mulf %126, %129 : vector<8x128xf32>
    %131 = arith.addf %128, %130 : vector<8x128xf32>
    %132 = math.tanh %131 : vector<8x128xf32>
    %cst_26 = arith.constant 1.000000e+00 : f32
    %133 = vector.broadcast %cst_26 : f32 to vector<8x128xf32>
    %134 = arith.subf %133, %127 : vector<8x128xf32>
    %135 = arith.mulf %134, %132 : vector<8x128xf32>
    %136 = arith.mulf %127, %112 : vector<8x128xf32>
    %137 = arith.addf %135, %136 : vector<8x128xf32>
    %138 = vector.extract_strided_slice %11 {offsets = [5, 0, 0], sizes = [1, 8, 8], strides = [1, 1, 1]} : vector<8x8x8xf32> to vector<1x8x8xf32>
    %139 = vector.shape_cast %138 : vector<1x8x8xf32> to vector<8x8xf32>
    %cst_27 = arith.constant dense<0.000000e+00> : vector<8x384xf32>
    %140 = tpu.matmul %139, %0, %cst_27 {dimension_numbers = #tpu.dot_dimension_numbers<[1], [0], [0], [1], [0, 0, 1, 1], [], []>} : vector<8x8xf32>, vector<8x384xf32>, vector<8x384xf32> -> vector<8x384xf32>
    %cst_28 = arith.constant dense<0.000000e+00> : vector<8x384xf32>
    %141 = tpu.matmul %137, %1, %cst_28 {dimension_numbers = #tpu.dot_dimension_numbers<[1], [0], [0], [1], [0, 0, 1, 1], [], []>} : vector<8x128xf32>, vector<128x384xf32>, vector<8x384xf32> -> vector<8x384xf32>
    %142 = arith.addf %141, %4 : vector<8x384xf32>
    %143 = vector.extract_strided_slice %140 {offsets = [0, 0], sizes = [8, 256], strides = [1, 1]} : vector<8x384xf32> to vector<8x256xf32>
    %144 = vector.extract_strided_slice %142 {offsets = [0, 0], sizes = [8, 256], strides = [1, 1]} : vector<8x384xf32> to vector<8x256xf32>
    %145 = arith.addf %143, %144 : vector<8x256xf32>
    %146 = arith.negf %145 : vector<8x256xf32>
    %147 = math.exp %146 : vector<8x256xf32>
    %cst_29 = arith.constant 1.000000e+00 : f32
    %148 = vector.broadcast %cst_29 : f32 to vector<8x256xf32>
    %149 = arith.addf %148, %147 : vector<8x256xf32>
    %150 = arith.divf %148, %149 : vector<8x256xf32>
    %151 = vector.extract_strided_slice %150 {offsets = [0, 0], sizes = [8, 128], strides = [1, 1]} : vector<8x256xf32> to vector<8x128xf32>
    %152 = vector.extract_strided_slice %150 {offsets = [0, 128], sizes = [8, 128], strides = [1, 1]} : vector<8x256xf32> to vector<8x128xf32>
    %153 = vector.extract_strided_slice %140 {offsets = [0, 256], sizes = [8, 128], strides = [1, 1]} : vector<8x384xf32> to vector<8x128xf32>
    %154 = vector.extract_strided_slice %142 {offsets = [0, 256], sizes = [8, 128], strides = [1, 1]} : vector<8x384xf32> to vector<8x128xf32>
    %155 = arith.mulf %151, %154 : vector<8x128xf32>
    %156 = arith.addf %153, %155 : vector<8x128xf32>
    %157 = math.tanh %156 : vector<8x128xf32>
    %cst_30 = arith.constant 1.000000e+00 : f32
    %158 = vector.broadcast %cst_30 : f32 to vector<8x128xf32>
    %159 = arith.subf %158, %152 : vector<8x128xf32>
    %160 = arith.mulf %159, %157 : vector<8x128xf32>
    %161 = arith.mulf %152, %137 : vector<8x128xf32>
    %162 = arith.addf %160, %161 : vector<8x128xf32>
    %163 = vector.extract_strided_slice %11 {offsets = [6, 0, 0], sizes = [1, 8, 8], strides = [1, 1, 1]} : vector<8x8x8xf32> to vector<1x8x8xf32>
    %164 = vector.shape_cast %163 : vector<1x8x8xf32> to vector<8x8xf32>
    %cst_31 = arith.constant dense<0.000000e+00> : vector<8x384xf32>
    %165 = tpu.matmul %164, %0, %cst_31 {dimension_numbers = #tpu.dot_dimension_numbers<[1], [0], [0], [1], [0, 0, 1, 1], [], []>} : vector<8x8xf32>, vector<8x384xf32>, vector<8x384xf32> -> vector<8x384xf32>
    %cst_32 = arith.constant dense<0.000000e+00> : vector<8x384xf32>
    %166 = tpu.matmul %162, %1, %cst_32 {dimension_numbers = #tpu.dot_dimension_numbers<[1], [0], [0], [1], [0, 0, 1, 1], [], []>} : vector<8x128xf32>, vector<128x384xf32>, vector<8x384xf32> -> vector<8x384xf32>
    %167 = arith.addf %166, %4 : vector<8x384xf32>
    %168 = vector.extract_strided_slice %165 {offsets = [0, 0], sizes = [8, 256], strides = [1, 1]} : vector<8x384xf32> to vector<8x256xf32>
    %169 = vector.extract_strided_slice %167 {offsets = [0, 0], sizes = [8, 256], strides = [1, 1]} : vector<8x384xf32> to vector<8x256xf32>
    %170 = arith.addf %168, %169 : vector<8x256xf32>
    %171 = arith.negf %170 : vector<8x256xf32>
    %172 = math.exp %171 : vector<8x256xf32>
    %cst_33 = arith.constant 1.000000e+00 : f32
    %173 = vector.broadcast %cst_33 : f32 to vector<8x256xf32>
    %174 = arith.addf %173, %172 : vector<8x256xf32>
    %175 = arith.divf %173, %174 : vector<8x256xf32>
    %176 = vector.extract_strided_slice %175 {offsets = [0, 0], sizes = [8, 128], strides = [1, 1]} : vector<8x256xf32> to vector<8x128xf32>
    %177 = vector.extract_strided_slice %175 {offsets = [0, 128], sizes = [8, 128], strides = [1, 1]} : vector<8x256xf32> to vector<8x128xf32>
    %178 = vector.extract_strided_slice %165 {offsets = [0, 256], sizes = [8, 128], strides = [1, 1]} : vector<8x384xf32> to vector<8x128xf32>
    %179 = vector.extract_strided_slice %167 {offsets = [0, 256], sizes = [8, 128], strides = [1, 1]} : vector<8x384xf32> to vector<8x128xf32>
    %180 = arith.mulf %176, %179 : vector<8x128xf32>
    %181 = arith.addf %178, %180 : vector<8x128xf32>
    %182 = math.tanh %181 : vector<8x128xf32>
    %cst_34 = arith.constant 1.000000e+00 : f32
    %183 = vector.broadcast %cst_34 : f32 to vector<8x128xf32>
    %184 = arith.subf %183, %177 : vector<8x128xf32>
    %185 = arith.mulf %184, %182 : vector<8x128xf32>
    %186 = arith.mulf %177, %162 : vector<8x128xf32>
    %187 = arith.addf %185, %186 : vector<8x128xf32>
    %188 = vector.extract_strided_slice %11 {offsets = [7, 0, 0], sizes = [1, 8, 8], strides = [1, 1, 1]} : vector<8x8x8xf32> to vector<1x8x8xf32>
    %189 = vector.shape_cast %188 : vector<1x8x8xf32> to vector<8x8xf32>
    %cst_35 = arith.constant dense<0.000000e+00> : vector<8x384xf32>
    %190 = tpu.matmul %189, %0, %cst_35 {dimension_numbers = #tpu.dot_dimension_numbers<[1], [0], [0], [1], [0, 0, 1, 1], [], []>} : vector<8x8xf32>, vector<8x384xf32>, vector<8x384xf32> -> vector<8x384xf32>
    %cst_36 = arith.constant dense<0.000000e+00> : vector<8x384xf32>
    %191 = tpu.matmul %187, %1, %cst_36 {dimension_numbers = #tpu.dot_dimension_numbers<[1], [0], [0], [1], [0, 0, 1, 1], [], []>} : vector<8x128xf32>, vector<128x384xf32>, vector<8x384xf32> -> vector<8x384xf32>
    %192 = arith.addf %191, %4 : vector<8x384xf32>
    %193 = vector.extract_strided_slice %190 {offsets = [0, 0], sizes = [8, 256], strides = [1, 1]} : vector<8x384xf32> to vector<8x256xf32>
    %194 = vector.extract_strided_slice %192 {offsets = [0, 0], sizes = [8, 256], strides = [1, 1]} : vector<8x384xf32> to vector<8x256xf32>
    %195 = arith.addf %193, %194 : vector<8x256xf32>
    %196 = arith.negf %195 : vector<8x256xf32>
    %197 = math.exp %196 : vector<8x256xf32>
    %cst_37 = arith.constant 1.000000e+00 : f32
    %198 = vector.broadcast %cst_37 : f32 to vector<8x256xf32>
    %199 = arith.addf %198, %197 : vector<8x256xf32>
    %200 = arith.divf %198, %199 : vector<8x256xf32>
    %201 = vector.extract_strided_slice %200 {offsets = [0, 0], sizes = [8, 128], strides = [1, 1]} : vector<8x256xf32> to vector<8x128xf32>
    %202 = vector.extract_strided_slice %200 {offsets = [0, 128], sizes = [8, 128], strides = [1, 1]} : vector<8x256xf32> to vector<8x128xf32>
    %203 = vector.extract_strided_slice %190 {offsets = [0, 256], sizes = [8, 128], strides = [1, 1]} : vector<8x384xf32> to vector<8x128xf32>
    %204 = vector.extract_strided_slice %192 {offsets = [0, 256], sizes = [8, 128], strides = [1, 1]} : vector<8x384xf32> to vector<8x128xf32>
    %205 = arith.mulf %201, %204 : vector<8x128xf32>
    %206 = arith.addf %203, %205 : vector<8x128xf32>
    %207 = math.tanh %206 : vector<8x128xf32>
    %cst_38 = arith.constant 1.000000e+00 : f32
    %208 = vector.broadcast %cst_38 : f32 to vector<8x128xf32>
    %209 = arith.subf %208, %202 : vector<8x128xf32>
    %210 = arith.mulf %209, %207 : vector<8x128xf32>
    %211 = arith.mulf %202, %187 : vector<8x128xf32>
    %212 = arith.addf %210, %211 : vector<8x128xf32>
    %c0_39 = arith.constant 0 : index
    %c0_40 = arith.constant 0 : index
    %213 = vector.load %arg5[%c0_39, %c0_40] : memref<128x128xf32, #tpu.memory_space<vmem>>, vector<128x128xf32>
    %cst_41 = arith.constant dense<0.000000e+00> : vector<8x128xf32>
    %214 = tpu.matmul %212, %213, %cst_41 {dimension_numbers = #tpu.dot_dimension_numbers<[1], [0], [0], [1], [0, 0, 1, 1], [], []>} : vector<8x128xf32>, vector<128x128xf32>, vector<8x128xf32> -> vector<8x128xf32>
    %c0_42 = arith.constant 0 : index
    %c0_43 = arith.constant 0 : index
    %215 = vector.load %arg6[%c0_42, %c0_43] : memref<1x128xf32, #tpu.memory_space<vmem>>, vector<1x128xf32>
    %216 = vector.broadcast %215 : vector<1x128xf32> to vector<8x128xf32>
    %217 = arith.addf %214, %216 : vector<8x128xf32>
    %c0_44 = arith.constant 0 : index
    %c0_45 = arith.constant 0 : index
    %218 = vector.load %arg7[%c0_44, %c0_45] : memref<8x128xf32, #tpu.memory_space<vmem>>, vector<8x128xf32>
    tpu.vector_store %arg7[%c0_44, %c0_45], %217 {strides = array<i32>} : memref<8x128xf32, #tpu.memory_space<vmem>>, vector<8x128xf32>,
    return
  }
  func.func @transform_0(%arg0: i32) -> (i32, i32) {
    %c0_i32 = arith.constant 0 : i32
    %c0_i32_0 = arith.constant 0 : i32
    return %c0_i32, %arg0 : i32, i32
  }
  func.func @transform_1(%arg0: i32) -> (i32, i32) {
    %c0_i32 = arith.constant 0 : i32
    %c0_i32_0 = arith.constant 0 : i32
    %c0_i32_1 = arith.constant 0 : i32
    return %c0_i32, %c0_i32_0 : i32, i32
  }
  func.func @transform_2(%arg0: i32) -> (i32, i32) {
    %c0_i32 = arith.constant 0 : i32
    %c0_i32_0 = arith.constant 0 : i32
    %c0_i32_1 = arith.constant 0 : i32
    return %c0_i32, %c0_i32_0 : i32, i32
  }
  func.func @transform_3(%arg0: i32) -> (i32, i32) {
    %c0_i32 = arith.constant 0 : i32
    %c0_i32_0 = arith.constant 0 : i32
    %c0_i32_1 = arith.constant 0 : i32
    return %c0_i32, %c0_i32_0 : i32, i32
  }
  func.func @transform_4(%arg0: i32) -> (i32, i32) {
    %c0_i32 = arith.constant 0 : i32
    %c0_i32_0 = arith.constant 0 : i32
    %c0_i32_1 = arith.constant 0 : i32
    return %c0_i32, %c0_i32_0 : i32, i32
  }
  func.func @transform_5(%arg0: i32) -> (i32, i32) {
    %c0_i32 = arith.constant 0 : i32
    %c0_i32_0 = arith.constant 0 : i32
    %c0_i32_1 = arith.constant 0 : i32
    return %c0_i32, %c0_i32_0 : i32, i32
  }
  func.func @transform_6(%arg0: i32) -> (i32, i32) {
    %c0_i32 = arith.constant 0 : i32
    %c0_i32_0 = arith.constant 0 : i32
    return %arg0, %c0_i32 : i32, i32
  }
}

</mosaic_0001>

<llo_original>
// kernel: tpu_custom_call.1
$region0: #{tpu_custom_call.1}
  #allocation0 [shape = 'u32[]', space=smem, size = 0x4, offset = 0x4, fixed_abs, tag = 'smem constant byte address 0x4 - core index']
  #allocation1 [shape = 'u32[144,128]{1,0:T(1,128)}', space=vmem, size = 0x12000, scoped, tag = 'internal scratch']
  %s0 = inlined_call_operand.hbm [shape: s32[8,8], index: 0, kind: input, shape index: {}]
  %s1 = inlined_call_operand.hbm [shape: f32[8,384], index: 1, kind: input, shape index: {}]
  %s2 = inlined_call_operand.hbm [shape: f32[128,384], index: 2, kind: input, shape index: {}]
  %s3 = inlined_call_operand.vmem [shape: f32[1,384], index: 3, kind: input, shape index: {}]
  %s4 = inlined_call_operand.hbm [shape: f32[128,128], index: 4, kind: input, shape index: {}]
  %s5 = inlined_call_operand.vmem [shape: f32[1,128], index: 5, kind: input, shape index: {}]
  %s6 = inlined_call_operand.hbm [shape: f32[8,128], index: 6, kind: output, shape index: {}]
  %s7 = sld [smem:[#allocation0]]
  $region50: #{tpu_custom_call.1} parent=0
    _
  %s9 = ssub.s32 1, %s7
  %s10 = scalar_select 0, %s9, %s7
  $region1: #{tpu_custom_call.1} parent=0
    #allocation2 [shape = 'u8[4096]{0}', space=vmem, size = 0x1000, scoped, tag = 'input window, operand 0, single buffered']
    #allocation3 [shape = 's32[1]{0}', space=sflag, size = 0x4, scoped, tag = 'scoped memory for tpu_custom_call.1']
    #allocation4 [shape = 's32[1]{0}', space=sflag, size = 0x4, scoped, tag = 'scoped memory for tpu_custom_call.1']
    #allocation5 [shape = 'u8[12288]{0}', space=vmem, size = 0x3000, scoped, tag = 'input window, operand 1, single buffered']
    #allocation6 [shape = 's32[1]{0}', space=sflag, size = 0x4, scoped, tag = 'scoped memory for tpu_custom_call.1']
    #allocation7 [shape = 'u8[196608]{0}', space=vmem, size = 0x30000, scoped, tag = 'input window, operand 2, single buffered']
    #allocation8 [shape = 'u8[65536]{0}', space=vmem, size = 0x10000, scoped, tag = 'input window, operand 4, single buffered']
    #allocation9 [shape = 's32[1]{0}', space=sflag, size = 0x4, scoped, tag = 'scoped memory for tpu_custom_call.1']
    #allocation10 [shape = 'u8[4096]{0}', space=vmem, size = 0x1000, scoped, tag = 'output window, operand 0, single buffered']
    %11 = vsyncpa [#allocation3], 0
    %12 = vsyncpa [#allocation6], 0
    %13 = vsyncpa [#allocation9], 0
    %14 = vsyncpa [#allocation4], 0
    // Predicated region
    $region2: #{tpu_custom_call.1} parent=1 // pred_check
      _
    $region3: #{tpu_custom_call.1} parent=1 // pred_check_branch
      %16 = sbr.rel (0) target = $region5
    $region4: #{tpu_custom_call.1} parent=1 // pred_region
      %s18 = ssub.s32 128, 128
      %19 = vsyncadd [#allocation3], %s18
      %s21 = sshll.u32 [#allocation2], 4
      %s22 = int_to_ptr.vmem [resolvable:$true] %s21
      %24 = dma.hbm_to_vmem [thread:$0]  %s0, 128, %s22, [#allocation3]
    $region5: #{tpu_custom_call.1} parent=1 // pred_fallthru
      _
    // Predicated region
    $region6: #{tpu_custom_call.1} parent=1 // pred_check
      _
    $region7: #{tpu_custom_call.1} parent=1 // pred_check_branch
      %26 = sbr.rel (0) target = $region9
    $region8: #{tpu_custom_call.1} parent=1 // pred_region
      %s28 = ssub.s32 384, 384
      %29 = vsyncadd [#allocation6], %s28
      %s31 = sshll.u32 [#allocation5], 4
      %s32 = int_to_ptr.vmem [resolvable:$true] %s31
      %34 = dma.hbm_to_vmem [thread:$0]  %s1, 384, %s32, [#allocation6]
    $region9: #{tpu_custom_call.1} parent=1 // pred_fallthru
      _
    // Predicated region
    $region10: #{tpu_custom_call.1} parent=1 // pred_check
      _
    $region11: #{tpu_custom_call.1} parent=1 // pred_check_branch
      %36 = sbr.rel (0) target = $region13
    $region12: #{tpu_custom_call.1} parent=1 // pred_region
      %s38 = ssub.s32 6144, 6144
      %39 = vsyncadd [#allocation6], %s38
      %s40 = sshll.u32 [#allocation7], 4
      %s41 = int_to_ptr.vmem [resolvable:$true] %s40
      %46 = dma.hbm_to_vmem [thread:$0]  %s2, 6144, %s41, [#allocation6], 384, 384, 24
    $region13: #{tpu_custom_call.1} parent=1 // pred_fallthru
      _
    // Predicated region
    $region14: #{tpu_custom_call.1} parent=1 // pred_check
      _
    $region15: #{tpu_custom_call.1} parent=1 // pred_check_branch
      %48 = sbr.rel (0) target = $region17
    $region16: #{tpu_custom_call.1} parent=1 // pred_region
      _
    $region17: #{tpu_custom_call.1} parent=1 // pred_fallthru
      _
    // Predicated region
    $region18: #{tpu_custom_call.1} parent=1 // pred_check
      _
    $region19: #{tpu_custom_call.1} parent=1 // pred_check_branch
      %50 = sbr.rel (0) target = $region21
    $region20: #{tpu_custom_call.1} parent=1 // pred_region
      %s52 = ssub.s32 2048, 2048
      %53 = vsyncadd [#allocation9], %s52
      %s54 = sshll.u32 [#allocation8], 4
      %s55 = int_to_ptr.vmem [resolvable:$true] %s54
      %60 = dma.hbm_to_vmem [thread:$0]  %s4, 2048, %s55, [#allocation9], 128, 128, 8
    $region21: #{tpu_custom_call.1} parent=1 // pred_fallthru
      _
    // Predicated region
    $region22: #{tpu_custom_call.1} parent=1 // pred_check
      _
    $region23: #{tpu_custom_call.1} parent=1 // pred_check_branch
      %62 = sbr.rel (0) target = $region25
    $region24: #{tpu_custom_call.1} parent=1 // pred_region
      _
    $region25: #{tpu_custom_call.1} parent=1 // pred_fallthru
      _
    // Predicated region
    $region26: #{tpu_custom_call.1} parent=1 // pred_check
      _
    $region27: #{tpu_custom_call.1} parent=1 // pred_check_branch
      %64 = sbr.rel (0) target = $region29
    $region28: #{tpu_custom_call.1} parent=1 // pred_region
      %65 = dma.done [#allocation3], 128
    $region29: #{tpu_custom_call.1} parent=1 // pred_fallthru
      _
    // Predicated region
    $region30: #{tpu_custom_call.1} parent=1 // pred_check
      _
    $region31: #{tpu_custom_call.1} parent=1 // pred_check_branch
      %67 = sbr.rel (0) target = $region33
    $region32: #{tpu_custom_call.1} parent=1 // pred_region
      %68 = dma.done [#allocation6], 384
    $region33: #{tpu_custom_call.1} parent=1 // pred_fallthru
      _
    // Predicated region
    $region34: #{tpu_custom_call.1} parent=1 // pred_check
      _
    $region35: #{tpu_custom_call.1} parent=1 // pred_check_branch
      %70 = sbr.rel (0) target = $region37
    $region36: #{tpu_custom_call.1} parent=1 // pred_region
      %71 = dma.done [#allocation6], 6144
    $region37: #{tpu_custom_call.1} parent=1 // pred_fallthru
      _
    // Predicated region
    $region38: #{tpu_custom_call.1} parent=1 // pred_check
      _
    $region39: #{tpu_custom_call.1} parent=1 // pred_check_branch
      %73 = sbr.rel (0) target = $region41
    $region40: #{tpu_custom_call.1} parent=1 // pred_region
      %74 = dma.done [#allocation9], 2048
    $region41: #{tpu_custom_call.1} parent=1 // pred_fallthru
      _
    %v75 = vld [vmem:[#allocation5] sm:$0xff]
    %v76 = vld [vmem:[#allocation5 + $0x8] sm:$0xff]
    %v77 = vld [vmem:[#allocation5 + $0x10] sm:$0xff]
    %v78 = vld [vmem:[#allocation7] sm:$0xff]
    %v79 = vld [vmem:[#allocation7 + $0x8] sm:$0xff]
    %v80 = vld [vmem:[#allocation7 + $0x10] sm:$0xff]
    %v81 = vld [vmem:[#allocation7 + $0x18] sm:$0xff]
    %v82 = vld [vmem:[#allocation7 + $0x20] sm:$0xff]
    %v83 = vld [vmem:[#allocation7 + $0x28] sm:$0xff]
    %v84 = vld [vmem:[#allocation7 + $0x30] sm:$0xff]
    %v85 = vld [vmem:[#allocation7 + $0x38] sm:$0xff]
    %v86 = vld [vmem:[#allocation7 + $0x40] sm:$0xff]
    %v87 = vld [vmem:[#allocation7 + $0x48] sm:$0xff]
    %v88 = vld [vmem:[#allocation7 + $0x50] sm:$0xff]
    %v89 = vld [vmem:[#allocation7 + $0x58] sm:$0xff]
    %v90 = vld [vmem:[#allocation7 + $0x60] sm:$0xff]
    %v91 = vld [vmem:[#allocation7 + $0x68] sm:$0xff]
    %v92 = vld [vmem:[#allocation7 + $0x70] sm:$0xff]
    %v93 = vld [vmem:[#allocation7 + $0x78] sm:$0xff]
    %v94 = vld [vmem:[#allocation7 + $0x80] sm:$0xff]
    %v95 = vld [vmem:[#allocation7 + $0x88] sm:$0xff]
    %v96 = vld [vmem:[#allocation7 + $0x90] sm:$0xff]
    %v97 = vld [vmem:[#allocation7 + $0x98] sm:$0xff]
    %v98 = vld [vmem:[#allocation7 + $0xa0] sm:$0xff]
    %v99 = vld [vmem:[#allocation7 + $0xa8] sm:$0xff]
    %v100 = vld [vmem:[#allocation7 + $0xb0] sm:$0xff]
    %v101 = vld [vmem:[#allocation7 + $0xb8] sm:$0xff]
    %v102 = vld [vmem:[#allocation7 + $0xc0] sm:$0xff]
    %v103 = vld [vmem:[#allocation7 + $0xc8] sm:$0xff]
    %v104 = vld [vmem:[#allocation7 + $0xd0] sm:$0xff]
    %v105 = vld [vmem:[#allocation7 + $0xd8] sm:$0xff]
    %v106 = vld [vmem:[#allocation7 + $0xe0] sm:$0xff]
    %v107 = vld [vmem:[#allocation7 + $0xe8] sm:$0xff]
    %v108 = vld [vmem:[#allocation7 + $0xf0] sm:$0xff]
    %v109 = vld [vmem:[#allocation7 + $0xf8] sm:$0xff]
    %v110 = vld [vmem:[#allocation7 + $0x100] sm:$0xff]
    %v111 = vld [vmem:[#allocation7 + $0x108] sm:$0xff]
    %v112 = vld [vmem:[#allocation7 + $0x110] sm:$0xff]
    %v113 = vld [vmem:[#allocation7 + $0x118] sm:$0xff]
    %v114 = vld [vmem:[#allocation7 + $0x120] sm:$0xff]
    %v115 = vld [vmem:[#allocation7 + $0x128] sm:$0xff]
    %v116 = vld [vmem:[#allocation7 + $0x130] sm:$0xff]
    %v117 = vld [vmem:[#allocation7 + $0x138] sm:$0xff]
    %v118 = vld [vmem:[#allocation7 + $0x140] sm:$0xff]
    %v119 = vld [vmem:[#allocation7 + $0x148] sm:$0xff]
    %v120 = vld [vmem:[#allocation7 + $0x150] sm:$0xff]
    %v121 = vld [vmem:[#allocation7 + $0x158] sm:$0xff]
    %v122 = vld [vmem:[#allocation7 + $0x160] sm:$0xff]
    %v123 = vld [vmem:[#allocation7 + $0x168] sm:$0xff]
    %v124 = vld [vmem:[#allocation7 + $0x170] sm:$0xff]
    %v125 = vld [vmem:[#allocation7 + $0x178] sm:$0xff]
    %v126 = vld [vmem:[%s3] sm:$0x7]
    %v128 = vlaneseq
    %v129 = vshrl.u32 %v128, 7
    %v130 = vsub.s32 0, %v129
    %v131 = vrot.slane %v126, %v130
    %v132 = vlaneseq
    %v133 = vshrl.u32 %v132, 7
    %v134 = vsub.s32 1, %v133
    %v135 = vrot.slane %v126, %v134
    %v136 = vlaneseq
    %v137 = vshrl.u32 %v136, 7
    %v138 = vsub.s32 2, %v137
    %v139 = vrot.slane %v126, %v138
    %v143 = vld [vmem:[#allocation2] sm:$0xff]
    %v144 = vlaneseq
    %v145 = vshrl.u32 %v144, 7
    %v146 = vsub.s32 0, %v145
    %v147 = vrot.slane %v143, %v146
    %149 = vbcast.lane.b32.xlu0 %v147, 256
    %v150 = vpop.permute.xlu0 %149
    %v151 = vlaneseq
    %v152 = vshrl.u32 %v151, 7
    %v153 = vsub.s32 1, %v152
    %v154 = vrot.slane %v143, %v153
    %156 = vbcast.lane.b32.xlu0 %v154, 256
    %v157 = vpop.permute.xlu0 %156
    %v158 = vlaneseq
    %v159 = vshrl.u32 %v158, 7
    %v160 = vsub.s32 2, %v159
    %v161 = vrot.slane %v143, %v160
    %163 = vbcast.lane.b32.xlu0 %v161, 256
    %v164 = vpop.permute.xlu0 %163
    %v165 = vlaneseq
    %v166 = vshrl.u32 %v165, 7
    %v167 = vsub.s32 3, %v166
    %v168 = vrot.slane %v143, %v167
    %170 = vbcast.lane.b32.xlu0 %v168, 256
    %v171 = vpop.permute.xlu0 %170
    %v172 = vlaneseq
    %v173 = vshrl.u32 %v172, 7
    %v174 = vsub.s32 4, %v173
    %v175 = vrot.slane %v143, %v174
    %177 = vbcast.lane.b32.xlu0 %v175, 256
    %v178 = vpop.permute.xlu0 %177
    %v179 = vlaneseq
    %v180 = vshrl.u32 %v179, 7
    %v181 = vsub.s32 5, %v180
    %v182 = vrot.slane %v143, %v181
    %184 = vbcast.lane.b32.xlu0 %v182, 256
    %v185 = vpop.permute.xlu0 %184
    %v186 = vlaneseq
    %v187 = vshrl.u32 %v186, 7
    %v188 = vsub.s32 6, %v187
    %v189 = vrot.slane %v143, %v188
    %191 = vbcast.lane.b32.xlu0 %v189, 256
    %v192 = vpop.permute.xlu0 %191
    %v193 = vlaneseq
    %v194 = vshrl.u32 %v193, 7
    %v195 = vsub.s32 7, %v194
    %v196 = vrot.slane %v143, %v195
    %198 = vbcast.lane.b32.xlu0 %v196, 256
    %v199 = vpop.permute.xlu0 %198
    %v200 = vlaneseq
    %v201 = vand.u32 %v200, 127
    %vm202 = vcmp.eq.s32.totalorder %v150, %v201
    %vm203 = vcmp.eq.s32.totalorder %v157, %v201
    %vm204 = vcmp.eq.s32.totalorder %v164, %v201
    %vm205 = vcmp.eq.s32.totalorder %v171, %v201
    %vm206 = vcmp.eq.s32.totalorder %v178, %v201
    %vm207 = vcmp.eq.s32.totalorder %v185, %v201
    %vm208 = vcmp.eq.s32.totalorder %v192, %v201
    %vm209 = vcmp.eq.s32.totalorder %v199, %v201
    %v210 = vsel %vm202, 1, 0
    %v211 = vsel %vm203, 1, 0
    %v212 = vsel %vm204, 1, 0
    %v213 = vsel %vm205, 1, 0
    %v214 = vsel %vm206, 1, 0
    %v215 = vsel %vm207, 1, 0
    %v216 = vsel %vm208, 1, 0
    %v217 = vsel %vm209, 1, 0
    %v218 = vcvt.s32.f32 %v210
    %v219 = vcvt.s32.f32 %v211
    %v220 = vcvt.s32.f32 %v212
    %v221 = vcvt.s32.f32 %v213
    %v222 = vcvt.s32.f32 %v214
    %v223 = vcvt.s32.f32 %v215
    %v224 = vcvt.s32.f32 %v216
    %v225 = vcvt.s32.f32 %v217
    %vm226 = vcmask 64512
    %v228 = vsel %vm226, %v218, 0
    %230 = vmatprep.subr.mxu0 %v76
    %231 = vmatpush1.msra.mxu0 %v75
    %232 = vmatprep.subr.mxu0 0.0
    %233 = vmatpush1.msra.mxu0 0.0
    %234 = vmatprep.subr.mxu0 0.0
    %235 = vmatpush1.msra.mxu0 0.0
    %236 = vmatprep.subr.mxu0 0.0
    %237 = vmatpush1.msra.mxu0 0.0
    %238 = vmatprep.subr.mxu0 0.0
    %239 = vmatpush1.msra.mxu0 0.0
    %240 = vmatprep.subr.mxu0 0.0
    %241 = vmatpush1.msra.mxu0 0.0
    %242 = vmatprep.subr.mxu0 0.0
    %243 = vmatpush1.msra.mxu0 0.0
    %244 = vmatprep.subr.mxu0 0.0
    %245 = vmatpush1.msra.mxu0 0.0
    %246 = vmatprep.subr.mxu0 0.0
    %247 = vmatpush1.msra.mxu0 0.0
    %248 = vmatprep.subr.mxu0 0.0
    %249 = vmatpush1.msra.mxu0 0.0
    %250 = vmatprep.subr.mxu0 0.0
    %251 = vmatpush1.msra.mxu0 0.0
    %252 = vmatprep.subr.mxu0 0.0
    %253 = vmatpush1.msra.mxu0 0.0
    %254 = vmatprep.subr.mxu0 0.0
    %255 = vmatpush1.msra.mxu0 0.0
    %256 = vmatprep.subr.mxu0 0.0
    %257 = vmatpush1.msra.mxu0 0.0
    %258 = vmatprep.subr.mxu0 0.0
    %259 = vmatpush1.msra.mxu0 0.0
    %260 = vmatprep.subr.mxu0 0.0
    %261 = vmatpush1.msra.mxu0 0.0
    %262 = vmatprep.subr.mxu0 0.0
    %263 = vmatpush1.msra.mxu0 0.0
    %264 = vmatprep.subr.mxu0 0.0
    %265 = vmatpush1.msra.mxu0 0.0
    %266 = vmatprep.subr.mxu0 0.0
    %267 = vmatpush1.msra.mxu0 0.0
    %268 = vmatprep.subr.mxu0 0.0
    %269 = vmatpush1.msra.mxu0 0.0
    %270 = vmatprep.subr.mxu0 0.0
    %271 = vmatpush1.msra.mxu0 0.0
    %272 = vmatprep.subr.mxu0 0.0
    %273 = vmatpush1.msra.mxu0 0.0
    %274 = vmatprep.subr.mxu0 0.0
    %275 = vmatpush1.msra.mxu0 0.0
    %276 = vmatprep.subr.mxu0 0.0
    %277 = vmatpush1.msra.mxu0 0.0
    %278 = vmatprep.subr.mxu0 0.0
    %279 = vmatpush1.msra.mxu0 0.0
    %280 = vmatprep.subr.mxu0 0.0
    %281 = vmatpush1.msra.mxu0 0.0
    %282 = vmatprep.subr.mxu0 0.0
    %283 = vmatpush1.msra.mxu0 0.0
    %284 = vmatprep.subr.mxu0 0.0
    %285 = vmatpush1.msra.mxu0 0.0
    %286 = vmatprep.subr.mxu0 0.0
    %287 = vmatpush1.msra.mxu0 0.0
    %288 = vmatprep.subr.mxu0 0.0
    %289 = vmatpush1.msra.mxu0 0.0
    %290 = vmatprep.subr.mxu0 0.0
    %291 = vmatpush1.msra.mxu0 0.0
    %292 = vmatprep.subr.mxu0 0.0
    %293 = vmatpush1.msra.mxu0 0.0
    %294 = vmatprep.mubr.f32.mxu0 0.0
    %295 = vmatmul.mubr.f32.gmra.mrb[0].mxu0 %v228
    %v296 = vpop.f32.mrb[0].mxu0
    %v297 = vadd.f32 0.0, %v296
    %v298 = vpop.f32.mrb[0].mxu0
    %v299 = vadd.f32 0.0, %v298
    %300 = vdwg.mxu0
    %301 = vmatprep.subr.mxu0 0.0
    %302 = vmatpush1.msra.mxu0 %v77
    %303 = vmatprep.subr.mxu0 0.0
    %304 = vmatpush1.msra.mxu0 0.0
    %305 = vmatprep.subr.mxu0 0.0
    %306 = vmatpush1.msra.mxu0 0.0
    %307 = vmatprep.subr.mxu0 0.0
    %308 = vmatpush1.msra.mxu0 0.0
    %309 = vmatprep.subr.mxu0 0.0
    %310 = vmatpush1.msra.mxu0 0.0
    %311 = vmatprep.subr.mxu0 0.0
    %312 = vmatpush1.msra.mxu0 0.0
    %313 = vmatprep.subr.mxu0 0.0
    %314 = vmatpush1.msra.mxu0 0.0
    %315 = vmatprep.subr.mxu0 0.0
    %316 = vmatpush1.msra.mxu0 0.0
    %317 = vmatprep.subr.mxu0 0.0
    %318 = vmatpush1.msra.mxu0 0.0
    %319 = vmatprep.subr.mxu0 0.0
    %320 = vmatpush1.msra.mxu0 0.0
    %321 = vmatprep.subr.mxu0 0.0
    %322 = vmatpush1.msra.mxu0 0.0
    %323 = vmatprep.subr.mxu0 0.0
    %324 = vmatpush1.msra.mxu0 0.0
    %325 = vmatprep.subr.mxu0 0.0
    %326 = vmatpush1.msra.mxu0 0.0
    %327 = vmatprep.subr.mxu0 0.0
    %328 = vmatpush1.msra.mxu0 0.0
    %329 = vmatprep.subr.mxu0 0.0
    %330 = vmatpush1.msra.mxu0 0.0
    %331 = vmatprep.subr.mxu0 0.0
    %332 = vmatpush1.msra.mxu0 0.0
    %333 = vmatprep.subr.mxu0 0.0
    %334 = vmatpush1.msra.mxu0 0.0
    %335 = vmatprep.subr.mxu0 0.0
    %336 = vmatpush1.msra.mxu0 0.0
    %337 = vmatprep.subr.mxu0 0.0
    %338 = vmatpush1.msra.mxu0 0.0
    %339 = vmatprep.subr.mxu0 0.0
    %340 = vmatpush1.msra.mxu0 0.0
    %341 = vmatprep.subr.mxu0 0.0
    %342 = vmatpush1.msra.mxu0 0.0
    %343 = vmatprep.subr.mxu0 0.0
    %344 = vmatpush1.msra.mxu0 0.0
    %345 = vmatprep.subr.mxu0 0.0
    %346 = vmatpush1.msra.mxu0 0.0
    %347 = vmatprep.subr.mxu0 0.0
    %348 = vmatpush1.msra.mxu0 0.0
    %349 = vmatprep.subr.mxu0 0.0
    %350 = vmatpush1.msra.mxu0 0.0
    %351 = vmatprep.subr.mxu0 0.0
    %352 = vmatpush1.msra.mxu0 0.0
    %353 = vmatprep.subr.mxu0 0.0
    %354 = vmatpush1.msra.mxu0 0.0
    %355 = vmatprep.subr.mxu0 0.0
    %356 = vmatpush1.msra.mxu0 0.0
    %357 = vmatprep.subr.mxu0 0.0
    %358 = vmatpush1.msra.mxu0 0.0
    %359 = vmatprep.subr.mxu0 0.0
    %360 = vmatpush1.msra.mxu0 0.0
    %361 = vmatprep.subr.mxu0 0.0
    %362 = vmatpush1.msra.mxu0 0.0
    %363 = vmatprep.subr.mxu0 0.0
    %364 = vmatpush1.msra.mxu0 0.0
    %365 = vmatprep.mubr.f32.mxu0 0.0
    %366 = vmatmul.mubr.f32.gmra.mrb[0].mxu0 %v228
    %v367 = vpop.f32.mrb[0].mxu0
    %v368 = vadd.f32 0.0, %v367
    %v369 = vpop.f32.mrb[0].mxu0
    %370 = vdwg.mxu0
    %371 = vmatprep.subr.mxu0 %v79
    %372 = vmatpush1.msra.mxu0 %v78
    %373 = vmatprep.subr.mxu0 %v82
    %374 = vmatpush1.msra.mxu0 %v81
    %375 = vmatprep.subr.mxu0 %v85
    %376 = vmatpush1.msra.mxu0 %v84
    %377 = vmatprep.subr.mxu0 %v88
    %378 = vmatpush1.msra.mxu0 %v87
    %379 = vmatprep.subr.mxu0 %v91
    %380 = vmatpush1.msra.mxu0 %v90
    %381 = vmatprep.subr.mxu0 %v94
    %382 = vmatpush1.msra.mxu0 %v93
    %383 = vmatprep.subr.mxu0 %v97
    %384 = vmatpush1.msra.mxu0 %v96
    %385 = vmatprep.subr.mxu0 %v100
    %386 = vmatpush1.msra.mxu0 %v99
    %387 = vmatprep.subr.mxu0 %v103
    %388 = vmatpush1.msra.mxu0 %v102
    %389 = vmatprep.subr.mxu0 %v106
    %390 = vmatpush1.msra.mxu0 %v105
    %391 = vmatprep.subr.mxu0 %v109
    %392 = vmatpush1.msra.mxu0 %v108
    %393 = vmatprep.subr.mxu0 %v112
    %394 = vmatpush1.msra.mxu0 %v111
    %395 = vmatprep.subr.mxu0 %v115
    %396 = vmatpush1.msra.mxu0 %v114
    %397 = vmatprep.subr.mxu0 %v118
    %398 = vmatpush1.msra.mxu0 %v117
    %399 = vmatprep.subr.mxu0 %v121
    %400 = vmatpush1.msra.mxu0 %v120
    %401 = vmatprep.subr.mxu0 %v124
    %402 = vmatpush1.msra.mxu0 %v123
    %403 = vmatprep.subr.mxu0 0.0
    %404 = vmatpush1.msra.mxu0 0.0
    %405 = vmatprep.subr.mxu0 0.0
    %406 = vmatpush1.msra.mxu0 0.0
    %407 = vmatprep.subr.mxu0 0.0
    %408 = vmatpush1.msra.mxu0 0.0
    %409 = vmatprep.subr.mxu0 0.0
    %410 = vmatpush1.msra.mxu0 0.0
    %411 = vmatprep.subr.mxu0 0.0
    %412 = vmatpush1.msra.mxu0 0.0
    %413 = vmatprep.subr.mxu0 0.0
    %414 = vmatpush1.msra.mxu0 0.0
    %415 = vmatprep.subr.mxu0 0.0
    %416 = vmatpush1.msra.mxu0 0.0
    %417 = vmatprep.subr.mxu0 0.0
    %418 = vmatpush1.msra.mxu0 0.0
    %419 = vmatprep.subr.mxu0 0.0
    %420 = vmatpush1.msra.mxu0 0.0
    %421 = vmatprep.subr.mxu0 0.0
    %422 = vmatpush1.msra.mxu0 0.0
    %423 = vmatprep.subr.mxu0 0.0
    %424 = vmatpush1.msra.mxu0 0.0
    %425 = vmatprep.subr.mxu0 0.0
    %426 = vmatpush1.msra.mxu0 0.0
    %427 = vmatprep.subr.mxu0 0.0
    %428 = vmatpush1.msra.mxu0 0.0
    %429 = vmatprep.subr.mxu0 0.0
    %430 = vmatpush1.msra.mxu0 0.0
    %431 = vmatprep.subr.mxu0 0.0
    %432 = vmatpush1.msra.mxu0 0.0
    %433 = vmatprep.subr.mxu0 0.0
    %434 = vmatpush1.msra.mxu0 0.0
    %435 = vmatprep.mubr.f32.mxu0 0.0
    %436 = vmatmul.mubr.f32.gmra.mrb[0].mxu0 0.0
    %v437 = vpop.f32.mrb[0].mxu0
    %v438 = vadd.f32 %v131, %v437
    %v439 = vpop.f32.mrb[0].mxu0
    %v440 = vadd.f32 %v135, %v439
    %441 = vdwg.mxu0
    %442 = vmatprep.subr.mxu0 0.0
    %443 = vmatpush1.msra.mxu0 %v80
    %444 = vmatprep.subr.mxu0 0.0
    %445 = vmatpush1.msra.mxu0 %v83
    %446 = vmatprep.subr.mxu0 0.0
    %447 = vmatpush1.msra.mxu0 %v86
    %448 = vmatprep.subr.mxu0 0.0
    %449 = vmatpush1.msra.mxu0 %v89
    %450 = vmatprep.subr.mxu0 0.0
    %451 = vmatpush1.msra.mxu0 %v92
    %452 = vmatprep.subr.mxu0 0.0
    %453 = vmatpush1.msra.mxu0 %v95
    %454 = vmatprep.subr.mxu0 0.0
    %455 = vmatpush1.msra.mxu0 %v98
    %456 = vmatprep.subr.mxu0 0.0
    %457 = vmatpush1.msra.mxu0 %v101
    %458 = vmatprep.subr.mxu0 0.0
    %459 = vmatpush1.msra.mxu0 %v104
    %460 = vmatprep.subr.mxu0 0.0
    %461 = vmatpush1.msra.mxu0 %v107
    %462 = vmatprep.subr.mxu0 0.0
    %463 = vmatpush1.msra.mxu0 %v110
    %464 = vmatprep.subr.mxu0 0.0
    %465 = vmatpush1.msra.mxu0 %v113
    %466 = vmatprep.subr.mxu0 0.0
    %467 = vmatpush1.msra.mxu0 %v116
    %468 = vmatprep.subr.mxu0 0.0
    %469 = vmatpush1.msra.mxu0 %v119
    %470 = vmatprep.subr.mxu0 0.0
    %471 = vmatpush1.msra.mxu0 %v122
    %472 = vmatprep.subr.mxu0 0.0
    %473 = vmatpush1.msra.mxu0 %v125
    %474 = vmatprep.subr.mxu0 0.0
    %475 = vmatpush1.msra.mxu0 0.0
    %476 = vmatprep.subr.mxu0 0.0
    %477 = vmatpush1.msra.mxu0 0.0
    %478 = vmatprep.subr.mxu0 0.0
    %479 = vmatpush1.msra.mxu0 0.0
    %480 = vmatprep.subr.mxu0 0.0
    %481 = vmatpush1.msra.mxu0 0.0
    %482 = vmatprep.subr.mxu0 0.0
    %483 = vmatpush1.msra.mxu0 0.0
    %484 = vmatprep.subr.mxu0 0.0
    %485 = vmatpush1.msra.mxu0 0.0
    %486 = vmatprep.subr.mxu0 0.0
    %487 = vmatpush1.msra.mxu0 0.0
    %488 = vmatprep.subr.mxu0 0.0
    %489 = vmatpush1.msra.mxu0 0.0
    %490 = vmatprep.subr.mxu0 0.0
    %491 = vmatpush1.msra.mxu0 0.0
    %492 = vmatprep.subr.mxu0 0.0
    %493 = vmatpush1.msra.mxu0 0.0
    %494 = vmatprep.subr.mxu0 0.0
    %495 = vmatpush1.msra.mxu0 0.0
    %496 = vmatprep.subr.mxu0 0.0
    %497 = vmatpush1.msra.mxu0 0.0
    %498 = vmatprep.subr.mxu0 0.0
    %499 = vmatpush1.msra.mxu0 0.0
    %500 = vmatprep.subr.mxu0 0.0
    %501 = vmatpush1.msra.mxu0 0.0
    %502 = vmatprep.subr.mxu0 0.0
    %503 = vmatpush1.msra.mxu0 0.0
    %504 = vmatprep.subr.mxu0 0.0
    %505 = vmatpush1.msra.mxu0 0.0
    %506 = vmatprep.mubr.f32.mxu0 0.0
    %507 = vmatmul.mubr.f32.gmra.mrb[0].mxu0 0.0
    %v508 = vpop.f32.mrb[0].mxu0
    %v509 = vadd.f32 %v139, %v508
    %v510 = vpop.f32.mrb[0].mxu0
    %511 = vdwg.mxu0
    %v512 = vadd.f32 %v297, %v438
    %v513 = vadd.f32 %v299, %v440
    %v514 = vxor.u32 %v512, 2147483648
    %v515 = vxor.u32 %v513, 2147483648
    %v516 = vmul.f32 %v514, 1.442695
    %v517 = vpow.pop %v516
    %v518 = vmul.f32 %v515, 1.442695
    %v519 = vpow.pop %v518
    %v520 = vadd.f32 %v517, 1.0
    %v521 = vadd.f32 %v519, 1.0
    %v522 = vrcp.pop %v520
    %v523 = vmul.f32 1.0, %v522
    %v524 = vrcp.pop %v521
    %v525 = vmul.f32 1.0, %v524
    %v526 = vmul.f32 %v523, %v509
    %v527 = vadd.f32 %v368, %v526
    %v528 = vtanh.pop %v527
    %v529 = vsub.f32 1.0, %v525
    %v530 = vmul.f32 %v529, %v528
    %v531 = vmul.f32 %v525, 0.0
    %v532 = vadd.f32 %v530, %v531
    %v534 = vsel %vm226, %v219, 0
    %536 = vmatprep.subr.mxu0 %v76
    %537 = vmatpush1.msra.mxu0 %v75
    %538 = vmatprep.subr.mxu0 0.0
    %539 = vmatpush1.msra.mxu0 0.0
    %540 = vmatprep.subr.mxu0 0.0
    %541 = vmatpush1.msra.mxu0 0.0
    %542 = vmatprep.subr.mxu0 0.0
    %543 = vmatpush1.msra.mxu0 0.0
    %544 = vmatprep.subr.mxu0 0.0
    %545 = vmatpush1.msra.mxu0 0.0
    %546 = vmatprep.subr.mxu0 0.0
    %547 = vmatpush1.msra.mxu0 0.0
    %548 = vmatprep.subr.mxu0 0.0
    %549 = vmatpush1.msra.mxu0 0.0
    %550 = vmatprep.subr.mxu0 0.0
    %551 = vmatpush1.msra.mxu0 0.0
    %552 = vmatprep.subr.mxu0 0.0
    %553 = vmatpush1.msra.mxu0 0.0
    %554 = vmatprep.subr.mxu0 0.0
    %555 = vmatpush1.msra.mxu0 0.0
    %556 = vmatprep.subr.mxu0 0.0
    %557 = vmatpush1.msra.mxu0 0.0
    %558 = vmatprep.subr.mxu0 0.0
    %559 = vmatpush1.msra.mxu0 0.0
    %560 = vmatprep.subr.mxu0 0.0
    %561 = vmatpush1.msra.mxu0 0.0
    %562 = vmatprep.subr.mxu0 0.0
    %563 = vmatpush1.msra.mxu0 0.0
    %564 = vmatprep.subr.mxu0 0.0
    %565 = vmatpush1.msra.mxu0 0.0
    %566 = vmatprep.subr.mxu0 0.0
    %567 = vmatpush1.msra.mxu0 0.0
    %568 = vmatprep.subr.mxu0 0.0
    %569 = vmatpush1.msra.mxu0 0.0
    %570 = vmatprep.subr.mxu0 0.0
    %571 = vmatpush1.msra.mxu0 0.0
    %572 = vmatprep.subr.mxu0 0.0
    %573 = vmatpush1.msra.mxu0 0.0
    %574 = vmatprep.subr.mxu0 0.0
    %575 = vmatpush1.msra.mxu0 0.0
    %576 = vmatprep.subr.mxu0 0.0
    %577 = vmatpush1.msra.mxu0 0.0
    %578 = vmatprep.subr.mxu0 0.0
    %579 = vmatpush1.msra.mxu0 0.0
    %580 = vmatprep.subr.mxu0 0.0
    %581 = vmatpush1.msra.mxu0 0.0
    %582 = vmatprep.subr.mxu0 0.0
    %583 = vmatpush1.msra.mxu0 0.0
    %584 = vmatprep.subr.mxu0 0.0
    %585 = vmatpush1.msra.mxu0 0.0
    %586 = vmatprep.subr.mxu0 0.0
    %587 = vmatpush1.msra.mxu0 0.0
    %588 = vmatprep.subr.mxu0 0.0
    %589 = vmatpush1.msra.mxu0 0.0
    %590 = vmatprep.subr.mxu0 0.0
    %591 = vmatpush1.msra.mxu0 0.0
    %592 = vmatprep.subr.mxu0 0.0
    %593 = vmatpush1.msra.mxu0 0.0
    %594 = vmatprep.subr.mxu0 0.0
    %595 = vmatpush1.msra.mxu0 0.0
    %596 = vmatprep.subr.mxu0 0.0
    %597 = vmatpush1.msra.mxu0 0.0
    %598 = vmatprep.subr.mxu0 0.0
    %599 = vmatpush1.msra.mxu0 0.0
    %600 = vmatprep.mubr.f32.mxu0 0.0
    %601 = vmatmul.mubr.f32.gmra.mrb[0].mxu0 %v534
    %v602 = vpop.f32.mrb[0].mxu0
    %v603 = vadd.f32 0.0, %v602
    %v604 = vpop.f32.mrb[0].mxu0
    %v605 = vadd.f32 0.0, %v604
    %606 = vdwg.mxu0
    %607 = vmatprep.subr.mxu0 0.0
    %608 = vmatpush1.msra.mxu0 %v77
    %609 = vmatprep.subr.mxu0 0.0
    %610 = vmatpush1.msra.mxu0 0.0
    %611 = vmatprep.subr.mxu0 0.0
    %612 = vmatpush1.msra.mxu0 0.0
    %613 = vmatprep.subr.mxu0 0.0
    %614 = vmatpush1.msra.mxu0 0.0
    %615 = vmatprep.subr.mxu0 0.0
    %616 = vmatpush1.msra.mxu0 0.0
    %617 = vmatprep.subr.mxu0 0.0
    %618 = vmatpush1.msra.mxu0 0.0
    %619 = vmatprep.subr.mxu0 0.0
    %620 = vmatpush1.msra.mxu0 0.0
    %621 = vmatprep.subr.mxu0 0.0
    %622 = vmatpush1.msra.mxu0 0.0
    %623 = vmatprep.subr.mxu0 0.0
    %624 = vmatpush1.msra.mxu0 0.0
    %625 = vmatprep.subr.mxu0 0.0
    %626 = vmatpush1.msra.mxu0 0.0
    %627 = vmatprep.subr.mxu0 0.0
    %628 = vmatpush1.msra.mxu0 0.0
    %629 = vmatprep.subr.mxu0 0.0
    %630 = vmatpush1.msra.mxu0 0.0
    %631 = vmatprep.subr.mxu0 0.0
    %632 = vmatpush1.msra.mxu0 0.0
    %633 = vmatprep.subr.mxu0 0.0
    %634 = vmatpush1.msra.mxu0 0.0
    %635 = vmatprep.subr.mxu0 0.0
    %636 = vmatpush1.msra.mxu0 0.0
    %637 = vmatprep.subr.mxu0 0.0
    %638 = vmatpush1.msra.mxu0 0.0
    %639 = vmatprep.subr.mxu0 0.0
    %640 = vmatpush1.msra.mxu0 0.0
    %641 = vmatprep.subr.mxu0 0.0
    %642 = vmatpush1.msra.mxu0 0.0
    %643 = vmatprep.subr.mxu0 0.0
    %644 = vmatpush1.msra.mxu0 0.0
    %645 = vmatprep.subr.mxu0 0.0
    %646 = vmatpush1.msra.mxu0 0.0
    %647 = vmatprep.subr.mxu0 0.0
    %648 = vmatpush1.msra.mxu0 0.0
    %649 = vmatprep.subr.mxu0 0.0
    %650 = vmatpush1.msra.mxu0 0.0
    %651 = vmatprep.subr.mxu0 0.0
    %652 = vmatpush1.msra.mxu0 0.0
    %653 = vmatprep.subr.mxu0 0.0
    %654 = vmatpush1.msra.mxu0 0.0
    %655 = vmatprep.subr.mxu0 0.0
    %656 = vmatpush1.msra.mxu0 0.0
    %657 = vmatprep.subr.mxu0 0.0
    %658 = vmatpush1.msra.mxu0 0.0
    %659 = vmatprep.subr.mxu0 0.0
    %660 = vmatpush1.msra.mxu0 0.0
    %661 = vmatprep.subr.mxu0 0.0
    %662 = vmatpush1.msra.mxu0 0.0
    %663 = vmatprep.subr.mxu0 0.0
    %664 = vmatpush1.msra.mxu0 0.0
    %665 = vmatprep.subr.mxu0 0.0
    %666 = vmatpush1.msra.mxu0 0.0
    %667 = vmatprep.subr.mxu0 0.0
    %668 = vmatpush1.msra.mxu0 0.0
    %669 = vmatprep.subr.mxu0 0.0
    %670 = vmatpush1.msra.mxu0 0.0
    %671 = vmatprep.mubr.f32.mxu0 0.0
    %672 = vmatmul.mubr.f32.gmra.mrb[0].mxu0 %v534
    %v673 = vpop.f32.mrb[0].mxu0
    %v674 = vadd.f32 0.0, %v673
    %v675 = vpop.f32.mrb[0].mxu0
    %676 = vdwg.mxu0
    %677 = vmatprep.subr.mxu0 %v79
    %678 = vmatpush1.msra.mxu0 %v78
    %679 = vmatprep.subr.mxu0 %v82
    %680 = vmatpush1.msra.mxu0 %v81
    %681 = vmatprep.subr.mxu0 %v85
    %682 = vmatpush1.msra.mxu0 %v84
    %683 = vmatprep.subr.mxu0 %v88
    %684 = vmatpush1.msra.mxu0 %v87
    %685 = vmatprep.subr.mxu0 %v91
    %686 = vmatpush1.msra.mxu0 %v90
    %687 = vmatprep.subr.mxu0 %v94
    %688 = vmatpush1.msra.mxu0 %v93
    %689 = vmatprep.subr.mxu0 %v97
    %690 = vmatpush1.msra.mxu0 %v96
    %691 = vmatprep.subr.mxu0 %v100
    %692 = vmatpush1.msra.mxu0 %v99
    %693 = vmatprep.subr.mxu0 %v103
    %694 = vmatpush1.msra.mxu0 %v102
    %695 = vmatprep.subr.mxu0 %v106
    %696 = vmatpush1.msra.mxu0 %v105
    %697 = vmatprep.subr.mxu0 %v109
    %698 = vmatpush1.msra.mxu0 %v108
    %699 = vmatprep.subr.mxu0 %v112
    %700 = vmatpush1.msra.mxu0 %v111
    %701 = vmatprep.subr.mxu0 %v115
    %702 = vmatpush1.msra.mxu0 %v114
    %703 = vmatprep.subr.mxu0 %v118
    %704 = vmatpush1.msra.mxu0 %v117
    %705 = vmatprep.subr.mxu0 %v121
    %706 = vmatpush1.msra.mxu0 %v120
    %707 = vmatprep.subr.mxu0 %v124
    %708 = vmatpush1.msra.mxu0 %v123
    %709 = vmatprep.subr.mxu0 0.0
    %710 = vmatpush1.msra.mxu0 0.0
    %711 = vmatprep.subr.mxu0 0.0
    %712 = vmatpush1.msra.mxu0 0.0
    %713 = vmatprep.subr.mxu0 0.0
    %714 = vmatpush1.msra.mxu0 0.0
    %715 = vmatprep.subr.mxu0 0.0
    %716 = vmatpush1.msra.mxu0 0.0
    %717 = vmatprep.subr.mxu0 0.0
    %718 = vmatpush1.msra.mxu0 0.0
    %719 = vmatprep.subr.mxu0 0.0
    %720 = vmatpush1.msra.mxu0 0.0
    %721 = vmatprep.subr.mxu0 0.0
    %722 = vmatpush1.msra.mxu0 0.0
    %723 = vmatprep.subr.mxu0 0.0
    %724 = vmatpush1.msra.mxu0 0.0
    %725 = vmatprep.subr.mxu0 0.0
    %726 = vmatpush1.msra.mxu0 0.0
    %727 = vmatprep.subr.mxu0 0.0
    %728 = vmatpush1.msra.mxu0 0.0
    %729 = vmatprep.subr.mxu0 0.0
    %730 = vmatpush1.msra.mxu0 0.0
    %731 = vmatprep.subr.mxu0 0.0
    %732 = vmatpush1.msra.mxu0 0.0
    %733 = vmatprep.subr.mxu0 0.0
    %734 = vmatpush1.msra.mxu0 0.0
    %735 = vmatprep.subr.mxu0 0.0
    %736 = vmatpush1.msra.mxu0 0.0
    %737 = vmatprep.subr.mxu0 0.0
    %738 = vmatpush1.msra.mxu0 0.0
    %739 = vmatprep.subr.mxu0 0.0
    %740 = vmatpush1.msra.mxu0 0.0
    %741 = vmatprep.mubr.f32.mxu0 0.0
    %742 = vmatmul.mubr.f32.gmra.mrb[0].mxu0 %v532
    %v743 = vpop.f32.mrb[0].mxu0
    %v744 = vadd.f32 %v131, %v743
    %v745 = vpop.f32.mrb[0].mxu0
    %v746 = vadd.f32 %v135, %v745
    %747 = vdwg.mxu0
    %748 = vmatprep.subr.mxu0 0.0
    %749 = vmatpush1.msra.mxu0 %v80
    %750 = vmatprep.subr.mxu0 0.0
    %751 = vmatpush1.msra.mxu0 %v83
    %752 = vmatprep.subr.mxu0 0.0
    %753 = vmatpush1.msra.mxu0 %v86
    %754 = vmatprep.subr.mxu0 0.0
    %755 = vmatpush1.msra.mxu0 %v89
    %756 = vmatprep.subr.mxu0 0.0
    %757 = vmatpush1.msra.mxu0 %v92
    %758 = vmatprep.subr.mxu0 0.0
    %759 = vmatpush1.msra.mxu0 %v95
    %760 = vmatprep.subr.mxu0 0.0
    %761 = vmatpush1.msra.mxu0 %v98
    %762 = vmatprep.subr.mxu0 0.0
    %763 = vmatpush1.msra.mxu0 %v101
    %764 = vmatprep.subr.mxu0 0.0
    %765 = vmatpush1.msra.mxu0 %v104
    %766 = vmatprep.subr.mxu0 0.0
    %767 = vmatpush1.msra.mxu0 %v107
    %768 = vmatprep.subr.mxu0 0.0
    %769 = vmatpush1.msra.mxu0 %v110
    %770 = vmatprep.subr.mxu0 0.0
    %771 = vmatpush1.msra.mxu0 %v113
    %772 = vmatprep.subr.mxu0 0.0
    %773 = vmatpush1.msra.mxu0 %v116
    %774 = vmatprep.subr.mxu0 0.0
    %775 = vmatpush1.msra.mxu0 %v119
    %776 = vmatprep.subr.mxu0 0.0
    %777 = vmatpush1.msra.mxu0 %v122
    %778 = vmatprep.subr.mxu0 0.0
    %779 = vmatpush1.msra.mxu0 %v125
    %780 = vmatprep.subr.mxu0 0.0
    %781 = vmatpush1.msra.mxu0 0.0
    %782 = vmatprep.subr.mxu0 0.0
    %783 = vmatpush1.msra.mxu0 0.0
    %784 = vmatprep.subr.mxu0 0.0
    %785 = vmatpush1.msra.mxu0 0.0
    %786 = vmatprep.subr.mxu0 0.0
    %787 = vmatpush1.msra.mxu0 0.0
    %788 = vmatprep.subr.mxu0 0.0
    %789 = vmatpush1.msra.mxu0 0.0
    %790 = vmatprep.subr.mxu0 0.0
    %791 = vmatpush1.msra.mxu0 0.0
    %792 = vmatprep.subr.mxu0 0.0
    %793 = vmatpush1.msra.mxu0 0.0
    %794 = vmatprep.subr.mxu0 0.0
    %795 = vmatpush1.msra.mxu0 0.0
    %796 = vmatprep.subr.mxu0 0.0
    %797 = vmatpush1.msra.mxu0 0.0
    %798 = vmatprep.subr.mxu0 0.0
    %799 = vmatpush1.msra.mxu0 0.0
    %800 = vmatprep.subr.mxu0 0.0
    %801 = vmatpush1.msra.mxu0 0.0
    %802 = vmatprep.subr.mxu0 0.0
    %803 = vmatpush1.msra.mxu0 0.0
    %804 = vmatprep.subr.mxu0 0.0
    %805 = vmatpush1.msra.mxu0 0.0
    %806 = vmatprep.subr.mxu0 0.0
    %807 = vmatpush1.msra.mxu0 0.0
    %808 = vmatprep.subr.mxu0 0.0
    %809 = vmatpush1.msra.mxu0 0.0
    %810 = vmatprep.subr.mxu0 0.0
    %811 = vmatpush1.msra.mxu0 0.0
    %812 = vmatprep.mubr.f32.mxu0 0.0
    %813 = vmatmul.mubr.f32.gmra.mrb[0].mxu0 %v532
    %v814 = vpop.f32.mrb[0].mxu0
    %v815 = vadd.f32 %v139, %v814
    %v816 = vpop.f32.mrb[0].mxu0
    %817 = vdwg.mxu0
    %v818 = vadd.f32 %v603, %v744
    %v819 = vadd.f32 %v605, %v746
    %v820 = vxor.u32 %v818, 2147483648
    %v821 = vxor.u32 %v819, 2147483648
    %v822 = vmul.f32 %v820, 1.442695
    %v823 = vpow.pop %v822
    %v824 = vmul.f32 %v821, 1.442695
    %v825 = vpow.pop %v824
    %v826 = vadd.f32 %v823, 1.0
    %v827 = vadd.f32 %v825, 1.0
    %v828 = vrcp.pop %v826
    %v829 = vmul.f32 1.0, %v828
    %v830 = vrcp.pop %v827
    %v831 = vmul.f32 1.0, %v830
    %v832 = vmul.f32 %v829, %v815
    %v833 = vadd.f32 %v674, %v832
    %v834 = vtanh.pop %v833
    %v835 = vsub.f32 1.0, %v831
    %v836 = vmul.f32 %v835, %v834
    %v837 = vmul.f32 %v831, %v532
    %v838 = vadd.f32 %v836, %v837
    %v840 = vsel %vm226, %v220, 0
    %842 = vmatprep.subr.mxu0 %v76
    %843 = vmatpush1.msra.mxu0 %v75
    %844 = vmatprep.subr.mxu0 0.0
    %845 = vmatpush1.msra.mxu0 0.0
    %846 = vmatprep.subr.mxu0 0.0
    %847 = vmatpush1.msra.mxu0 0.0
    %848 = vmatprep.subr.mxu0 0.0
    %849 = vmatpush1.msra.mxu0 0.0
    %850 = vmatprep.subr.mxu0 0.0
    %851 = vmatpush1.msra.mxu0 0.0
    %852 = vmatprep.subr.mxu0 0.0
    %853 = vmatpush1.msra.mxu0 0.0
    %854 = vmatprep.subr.mxu0 0.0
    %855 = vmatpush1.msra.mxu0 0.0
    %856 = vmatprep.subr.mxu0 0.0
    %857 = vmatpush1.msra.mxu0 0.0
    %858 = vmatprep.subr.mxu0 0.0
    %859 = vmatpush1.msra.mxu0 0.0
    %860 = vmatprep.subr.mxu0 0.0
    %861 = vmatpush1.msra.mxu0 0.0
    %862 = vmatprep.subr.mxu0 0.0
    %863 = vmatpush1.msra.mxu0 0.0
    %864 = vmatprep.subr.mxu0 0.0
    %865 = vmatpush1.msra.mxu0 0.0
    %866 = vmatprep.subr.mxu0 0.0
    %867 = vmatpush1.msra.mxu0 0.0
    %868 = vmatprep.subr.mxu0 0.0
    %869 = vmatpush1.msra.mxu0 0.0
    %870 = vmatprep.subr.mxu0 0.0
    %871 = vmatpush1.msra.mxu0 0.0
    %872 = vmatprep.subr.mxu0 0.0
    %873 = vmatpush1.msra.mxu0 0.0
    %874 = vmatprep.subr.mxu0 0.0
    %875 = vmatpush1.msra.mxu0 0.0
    %876 = vmatprep.subr.mxu0 0.0
    %877 = vmatpush1.msra.mxu0 0.0
    %878 = vmatprep.subr.mxu0 0.0
    %879 = vmatpush1.msra.mxu0 0.0
    %880 = vmatprep.subr.mxu0 0.0
    %881 = vmatpush1.msra.mxu0 0.0
    %882 = vmatprep.subr.mxu0 0.0
    %883 = vmatpush1.msra.mxu0 0.0
    %884 = vmatprep.subr.mxu0 0.0
    %885 = vmatpush1.msra.mxu0 0.0
    %886 = vmatprep.subr.mxu0 0.0
    %887 = vmatpush1.msra.mxu0 0.0
    %888 = vmatprep.subr.mxu0 0.0
    %889 = vmatpush1.msra.mxu0 0.0
    %890 = vmatprep.subr.mxu0 0.0
    %891 = vmatpush1.msra.mxu0 0.0
    %892 = vmatprep.subr.mxu0 0.0
    %893 = vmatpush1.msra.mxu0 0.0
    %894 = vmatprep.subr.mxu0 0.0
    %895 = vmatpush1.msra.mxu0 0.0
    %896 = vmatprep.subr.mxu0 0.0
    %897 = vmatpush1.msra.mxu0 0.0
    %898 = vmatprep.subr.mxu0 0.0
    %899 = vmatpush1.msra.mxu0 0.0
    %900 = vmatprep.subr.mxu0 0.0
    %901 = vmatpush1.msra.mxu0 0.0
    %902 = vmatprep.subr.mxu0 0.0
    %903 = vmatpush1.msra.mxu0 0.0
    %904 = vmatprep.subr.mxu0 0.0
    %905 = vmatpush1.msra.mxu0 0.0
    %906 = vmatprep.mubr.f32.mxu0 0.0
    %907 = vmatmul.mubr.f32.gmra.mrb[0].mxu0 %v840
    %v908 = vpop.f32.mrb[0].mxu0
    %v909 = vadd.f32 0.0, %v908
    %v910 = vpop.f32.mrb[0].mxu0
    %v911 = vadd.f32 0.0, %v910
    %912 = vdwg.mxu0
    %913 = vmatprep.subr.mxu0 0.0
    %914 = vmatpush1.msra.mxu0 %v77
    %915 = vmatprep.subr.mxu0 0.0
    %916 = vmatpush1.msra.mxu0 0.0
    %917 = vmatprep.subr.mxu0 0.0
    %918 = vmatpush1.msra.mxu0 0.0
    %919 = vmatprep.subr.mxu0 0.0
    %920 = vmatpush1.msra.mxu0 0.0
    %921 = vmatprep.subr.mxu0 0.0
    %922 = vmatpush1.msra.mxu0 0.0
    %923 = vmatprep.subr.mxu0 0.0
    %924 = vmatpush1.msra.mxu0 0.0
    %925 = vmatprep.subr.mxu0 0.0
    %926 = vmatpush1.msra.mxu0 0.0
    %927 = vmatprep.subr.mxu0 0.0
    %928 = vmatpush1.msra.mxu0 0.0
    %929 = vmatprep.subr.mxu0 0.0
    %930 = vmatpush1.msra.mxu0 0.0
    %931 = vmatprep.subr.mxu0 0.0
    %932 = vmatpush1.msra.mxu0 0.0
    %933 = vmatprep.subr.mxu0 0.0
    %934 = vmatpush1.msra.mxu0 0.0
    %935 = vmatprep.subr.mxu0 0.0
    %936 = vmatpush1.msra.mxu0 0.0
    %937 = vmatprep.subr.mxu0 0.0
    %938 = vmatpush1.msra.mxu0 0.0
    %939 = vmatprep.subr.mxu0 0.0
    %940 = vmatpush1.msra.mxu0 0.0
    %941 = vmatprep.subr.mxu0 0.0
    %942 = vmatpush1.msra.mxu0 0.0
    %943 = vmatprep.subr.mxu0 0.0
    %944 = vmatpush1.msra.mxu0 0.0
    %945 = vmatprep.subr.mxu0 0.0
    %946 = vmatpush1.msra.mxu0 0.0
    %947 = vmatprep.subr.mxu0 0.0
    %948 = vmatpush1.msra.mxu0 0.0
    %949 = vmatprep.subr.mxu0 0.0
    %950 = vmatpush1.msra.mxu0 0.0
    %951 = vmatprep.subr.mxu0 0.0
    %952 = vmatpush1.msra.mxu0 0.0
    %953 = vmatprep.subr.mxu0 0.0
    %954 = vmatpush1.msra.mxu0 0.0
    %955 = vmatprep.subr.mxu0 0.0
    %956 = vmatpush1.msra.mxu0 0.0
    %957 = vmatprep.subr.mxu0 0.0
    %958 = vmatpush1.msra.mxu0 0.0
    %959 = vmatprep.subr.mxu0 0.0
    %960 = vmatpush1.msra.mxu0 0.0
    %961 = vmatprep.subr.mxu0 0.0
    %962 = vmatpush1.msra.mxu0 0.0
    %963 = vmatprep.subr.mxu0 0.0
    %964 = vmatpush1.msra.mxu0 0.0
    %965 = vmatprep.subr.mxu0 0.0
    %966 = vmatpush1.msra.mxu0 0.0
    %967 = vmatprep.subr.mxu0 0.0
    %968 = vmatpush1.msra.mxu0 0.0
    %969 = vmatprep.subr.mxu0 0.0
    %970 = vmatpush1.msra.mxu0 0.0
    %971 = vmatprep.subr.mxu0 0.0
    %972 = vmatpush1.msra.mxu0 0.0
    %973 = vmatprep.subr.mxu0 0.0
    %974 = vmatpush1.msra.mxu0 0.0
    %975 = vmatprep.subr.mxu0 0.0
    %976 = vmatpush1.msra.mxu0 0.0
    %977 = vmatprep.mubr.f32.mxu0 0.0
    %978 = vmatmul.mubr.f32.gmra.mrb[0].mxu0 %v840
    %v979 = vpop.f32.mrb[0].mxu0
    %v980 = vadd.f32 0.0, %v979
    %v981 = vpop.f32.mrb[0].mxu0
    %982 = vdwg.mxu0
    %983 = vmatprep.subr.mxu0 %v79
    %984 = vmatpush1.msra.mxu0 %v78
    %985 = vmatprep.subr.mxu0 %v82
    %986 = vmatpush1.msra.mxu0 %v81
    %987 = vmatprep.subr.mxu0 %v85
    %988 = vmatpush1.msra.mxu0 %v84
    %989 = vmatprep.subr.mxu0 %v88
    %990 = vmatpush1.msra.mxu0 %v87
    %991 = vmatprep.subr.mxu0 %v91
    %992 = vmatpush1.msra.mxu0 %v90
    %993 = vmatprep.subr.mxu0 %v94
    %994 = vmatpush1.msra.mxu0 %v93
    %995 = vmatprep.subr.mxu0 %v97
    %996 = vmatpush1.msra.mxu0 %v96
    %997 = vmatprep.subr.mxu0 %v100
    %998 = vmatpush1.msra.mxu0 %v99
    %999 = vmatprep.subr.mxu0 %v103
    %1000 = vmatpush1.msra.mxu0 %v102
    %1001 = vmatprep.subr.mxu0 %v106
    %1002 = vmatpush1.msra.mxu0 %v105
    %1003 = vmatprep.subr.mxu0 %v109
    %1004 = vmatpush1.msra.mxu0 %v108
    %1005 = vmatprep.subr.mxu0 %v112
    %1006 = vmatpush1.msra.mxu0 %v111
    %1007 = vmatprep.subr.mxu0 %v115
    %1008 = vmatpush1.msra.mxu0 %v114
    %1009 = vmatprep.subr.mxu0 %v118
    %1010 = vmatpush1.msra.mxu0 %v117
    %1011 = vmatprep.subr.mxu0 %v121
    %1012 = vmatpush1.msra.mxu0 %v120
    %1013 = vmatprep.subr.mxu0 %v124
    %1014 = vmatpush1.msra.mxu0 %v123
    %1015 = vmatprep.subr.mxu0 0.0
    %1016 = vmatpush1.msra.mxu0 0.0
    %1017 = vmatprep.subr.mxu0 0.0
    %1018 = vmatpush1.msra.mxu0 0.0
    %1019 = vmatprep.subr.mxu0 0.0
    %1020 = vmatpush1.msra.mxu0 0.0
    %1021 = vmatprep.subr.mxu0 0.0
    %1022 = vmatpush1.msra.mxu0 0.0
    %1023 = vmatprep.subr.mxu0 0.0
    %1024 = vmatpush1.msra.mxu0 0.0
    %1025 = vmatprep.subr.mxu0 0.0
    %1026 = vmatpush1.msra.mxu0 0.0
    %1027 = vmatprep.subr.mxu0 0.0
    %1028 = vmatpush1.msra.mxu0 0.0
    %1029 = vmatprep.subr.mxu0 0.0
    %1030 = vmatpush1.msra.mxu0 0.0
    %1031 = vmatprep.subr.mxu0 0.0
    %1032 = vmatpush1.msra.mxu0 0.0
    %1033 = vmatprep.subr.mxu0 0.0
    %1034 = vmatpush1.msra.mxu0 0.0
    %1035 = vmatprep.subr.mxu0 0.0
    %1036 = vmatpush1.msra.mxu0 0.0
    %1037 = vmatprep.subr.mxu0 0.0
    %1038 = vmatpush1.msra.mxu0 0.0
    %1039 = vmatprep.subr.mxu0 0.0
    %1040 = vmatpush1.msra.mxu0 0.0
    %1041 = vmatprep.subr.mxu0 0.0
    %1042 = vmatpush1.msra.mxu0 0.0
    %1043 = vmatprep.subr.mxu0 0.0
    %1044 = vmatpush1.msra.mxu0 0.0
    %1045 = vmatprep.subr.mxu0 0.0
    %1046 = vmatpush1.msra.mxu0 0.0
    %1047 = vmatprep.mubr.f32.mxu0 0.0
    %1048 = vmatmul.mubr.f32.gmra.mrb[0].mxu0 %v838
    %v1049 = vpop.f32.mrb[0].mxu0
    %v1050 = vadd.f32 %v131, %v1049
    %v1051 = vpop.f32.mrb[0].mxu0
    %v1052 = vadd.f32 %v135, %v1051
    %1053 = vdwg.mxu0
    %1054 = vmatprep.subr.mxu0 0.0
    %1055 = vmatpush1.msra.mxu0 %v80
    %1056 = vmatprep.subr.mxu0 0.0
    %1057 = vmatpush1.msra.mxu0 %v83
    %1058 = vmatprep.subr.mxu0 0.0
    %1059 = vmatpush1.msra.mxu0 %v86
    %1060 = vmatprep.subr.mxu0 0.0
    %1061 = vmatpush1.msra.mxu0 %v89
    %1062 = vmatprep.subr.mxu0 0.0
    %1063 = vmatpush1.msra.mxu0 %v92
    %1064 = vmatprep.subr.mxu0 0.0
    %1065 = vmatpush1.msra.mxu0 %v95
    %1066 = vmatprep.subr.mxu0 0.0
    %1067 = vmatpush1.msra.mxu0 %v98
    %1068 = vmatprep.subr.mxu0 0.0
    %1069 = vmatpush1.msra.mxu0 %v101
    %1070 = vmatprep.subr.mxu0 0.0
    %1071 = vmatpush1.msra.mxu0 %v104
    %1072 = vmatprep.subr.mxu0 0.0
    %1073 = vmatpush1.msra.mxu0 %v107
    %1074 = vmatprep.subr.mxu0 0.0
    %1075 = vmatpush1.msra.mxu0 %v110
    %1076 = vmatprep.subr.mxu0 0.0
    %1077 = vmatpush1.msra.mxu0 %v113
    %1078 = vmatprep.subr.mxu0 0.0
    %1079 = vmatpush1.msra.mxu0 %v116
    %1080 = vmatprep.subr.mxu0 0.0
    %1081 = vmatpush1.msra.mxu0 %v119
    %1082 = vmatprep.subr.mxu0 0.0
    %1083 = vmatpush1.msra.mxu0 %v122
    %1084 = vmatprep.subr.mxu0 0.0
    %1085 = vmatpush1.msra.mxu0 %v125
    %1086 = vmatprep.subr.mxu0 0.0
    %1087 = vmatpush1.msra.mxu0 0.0
    %1088 = vmatprep.subr.mxu0 0.0
    %1089 = vmatpush1.msra.mxu0 0.0
    %1090 = vmatprep.subr.mxu0 0.0
    %1091 = vmatpush1.msra.mxu0 0.0
    %1092 = vmatprep.subr.mxu0 0.0
    %1093 = vmatpush1.msra.mxu0 0.0
    %1094 = vmatprep.subr.mxu0 0.0
    %1095 = vmatpush1.msra.mxu0 0.0
    %1096 = vmatprep.subr.mxu0 0.0
    %1097 = vmatpush1.msra.mxu0 0.0
    %1098 = vmatprep.subr.mxu0 0.0
    %1099 = vmatpush1.msra.mxu0 0.0
    %1100 = vmatprep.subr.mxu0 0.0
    %1101 = vmatpush1.msra.mxu0 0.0
    %1102 = vmatprep.subr.mxu0 0.0
    %1103 = vmatpush1.msra.mxu0 0.0
    %1104 = vmatprep.subr.mxu0 0.0
    %1105 = vmatpush1.msra.mxu0 0.0
    %1106 = vmatprep.subr.mxu0 0.0
    %1107 = vmatpush1.msra.mxu0 0.0
    %1108 = vmatprep.subr.mxu0 0.0
    %1109 = vmatpush1.msra.mxu0 0.0
    %1110 = vmatprep.subr.mxu0 0.0
    %1111 = vmatpush1.msra.mxu0 0.0
    %1112 = vmatprep.subr.mxu0 0.0
    %1113 = vmatpush1.msra.mxu0 0.0
    %1114 = vmatprep.subr.mxu0 0.0
    %1115 = vmatpush1.msra.mxu0 0.0
    %1116 = vmatprep.subr.mxu0 0.0
    %1117 = vmatpush1.msra.mxu0 0.0
    %1118 = vmatprep.mubr.f32.mxu0 0.0
    %1119 = vmatmul.mubr.f32.gmra.mrb[0].mxu0 %v838
    %v1120 = vpop.f32.mrb[0].mxu0
    %v1121 = vadd.f32 %v139, %v1120
    %v1122 = vpop.f32.mrb[0].mxu0
    %1123 = vdwg.mxu0
    %v1124 = vadd.f32 %v909, %v1050
    %v1125 = vadd.f32 %v911, %v1052
    %v1126 = vxor.u32 %v1124, 2147483648
    %v1127 = vxor.u32 %v1125, 2147483648
    %v1128 = vmul.f32 %v1126, 1.442695
    %v1129 = vpow.pop %v1128
    %v1130 = vmul.f32 %v1127, 1.442695
    %v1131 = vpow.pop %v1130
    %v1132 = vadd.f32 %v1129, 1.0
    %v1133 = vadd.f32 %v1131, 1.0
    %v1134 = vrcp.pop %v1132
    %v1135 = vmul.f32 1.0, %v1134
    %v1136 = vrcp.pop %v1133
    %v1137 = vmul.f32 1.0, %v1136
    %v1138 = vmul.f32 %v1135, %v1121
    %v1139 = vadd.f32 %v980, %v1138
    %v1140 = vtanh.pop %v1139
    %v1141 = vsub.f32 1.0, %v1137
    %v1142 = vmul.f32 %v1141, %v1140
    %v1143 = vmul.f32 %v1137, %v838
    %v1144 = vadd.f32 %v1142, %v1143
    %v1146 = vsel %vm226, %v221, 0
    %1148 = vmatprep.subr.mxu0 %v76
    %1149 = vmatpush1.msra.mxu0 %v75
    %1150 = vmatprep.subr.mxu0 0.0
    %1151 = vmatpush1.msra.mxu0 0.0
    %1152 = vmatprep.subr.mxu0 0.0
    %1153 = vmatpush1.msra.mxu0 0.0
    %1154 = vmatprep.subr.mxu0 0.0
    %1155 = vmatpush1.msra.mxu0 0.0
    %1156 = vmatprep.subr.mxu0 0.0
    %1157 = vmatpush1.msra.mxu0 0.0
    %1158 = vmatprep.subr.mxu0 0.0
    %1159 = vmatpush1.msra.mxu0 0.0
    %1160 = vmatprep.subr.mxu0 0.0
    %1161 = vmatpush1.msra.mxu0 0.0
    %1162 = vmatprep.subr.mxu0 0.0
    %1163 = vmatpush1.msra.mxu0 0.0
    %1164 = vmatprep.subr.mxu0 0.0
    %1165 = vmatpush1.msra.mxu0 0.0
    %1166 = vmatprep.subr.mxu0 0.0
    %1167 = vmatpush1.msra.mxu0 0.0
    %1168 = vmatprep.subr.mxu0 0.0
    %1169 = vmatpush1.msra.mxu0 0.0
    %1170 = vmatprep.subr.mxu0 0.0
    %1171 = vmatpush1.msra.mxu0 0.0
    %1172 = vmatprep.subr.mxu0 0.0
    %1173 = vmatpush1.msra.mxu0 0.0
    %1174 = vmatprep.subr.mxu0 0.0
    %1175 = vmatpush1.msra.mxu0 0.0
    %1176 = vmatprep.subr.mxu0 0.0
    %1177 = vmatpush1.msra.mxu0 0.0
    %1178 = vmatprep.subr.mxu0 0.0
    %1179 = vmatpush1.msra.mxu0 0.0
    %1180 = vmatprep.subr.mxu0 0.0
    %1181 = vmatpush1.msra.mxu0 0.0
    %1182 = vmatprep.subr.mxu0 0.0
    %1183 = vmatpush1.msra.mxu0 0.0
    %1184 = vmatprep.subr.mxu0 0.0
    %1185 = vmatpush1.msra.mxu0 0.0
    %1186 = vmatprep.subr.mxu0 0.0
    %1187 = vmatpush1.msra.mxu0 0.0
    %1188 = vmatprep.subr.mxu0 0.0
    %1189 = vmatpush1.msra.mxu0 0.0
    %1190 = vmatprep.subr.mxu0 0.0
    %1191 = vmatpush1.msra.mxu0 0.0
    %1192 = vmatprep.subr.mxu0 0.0
    %1193 = vmatpush1.msra.mxu0 0.0
    %1194 = vmatprep.subr.mxu0 0.0
    %1195 = vmatpush1.msra.mxu0 0.0
    %1196 = vmatprep.subr.mxu0 0.0
    %1197 = vmatpush1.msra.mxu0 0.0
    %1198 = vmatprep.subr.mxu0 0.0
    %1199 = vmatpush1.msra.mxu0 0.0
    %1200 = vmatprep.subr.mxu0 0.0
    %1201 = vmatpush1.msra.mxu0 0.0
    %1202 = vmatprep.subr.mxu0 0.0
    %1203 = vmatpush1.msra.mxu0 0.0
    %1204 = vmatprep.subr.mxu0 0.0
    %1205 = vmatpush1.msra.mxu0 0.0
    %1206 = vmatprep.subr.mxu0 0.0
    %1207 = vmatpush1.msra.mxu0 0.0
    %1208 = vmatprep.subr.mxu0 0.0
    %1209 = vmatpush1.msra.mxu0 0.0
    %1210 = vmatprep.subr.mxu0 0.0
    %1211 = vmatpush1.msra.mxu0 0.0
    %1212 = vmatprep.mubr.f32.mxu0 0.0
    %1213 = vmatmul.mubr.f32.gmra.mrb[0].mxu0 %v1146
    %v1214 = vpop.f32.mrb[0].mxu0
    %v1215 = vadd.f32 0.0, %v1214
    %v1216 = vpop.f32.mrb[0].mxu0
    %v1217 = vadd.f32 0.0, %v1216
    %1218 = vdwg.mxu0
    %1219 = vmatprep.subr.mxu0 0.0
    %1220 = vmatpush1.msra.mxu0 %v77
    %1221 = vmatprep.subr.mxu0 0.0
    %1222 = vmatpush1.msra.mxu0 0.0
    %1223 = vmatprep.subr.mxu0 0.0
    %1224 = vmatpush1.msra.mxu0 0.0
    %1225 = vmatprep.subr.mxu0 0.0
    %1226 = vmatpush1.msra.mxu0 0.0
    %1227 = vmatprep.subr.mxu0 0.0
    %1228 = vmatpush1.msra.mxu0 0.0
    %1229 = vmatprep.subr.mxu0 0.0
    %1230 = vmatpush1.msra.mxu0 0.0
    %1231 = vmatprep.subr.mxu0 0.0
    %1232 = vmatpush1.msra.mxu0 0.0
    %1233 = vmatprep.subr.mxu0 0.0
    %1234 = vmatpush1.msra.mxu0 0.0
    %1235 = vmatprep.subr.mxu0 0.0
    %1236 = vmatpush1.msra.mxu0 0.0
    %1237 = vmatprep.subr.mxu0 0.0
    %1238 = vmatpush1.msra.mxu0 0.0
    %1239 = vmatprep.subr.mxu0 0.0
    %1240 = vmatpush1.msra.mxu0 0.0
    %1241 = vmatprep.subr.mxu0 0.0
    %1242 = vmatpush1.msra.mxu0 0.0
    %1243 = vmatprep.subr.mxu0 0.0
    %1244 = vmatpush1.msra.mxu0 0.0
    %1245 = vmatprep.subr.mxu0 0.0
    %1246 = vmatpush1.msra.mxu0 0.0
    %1247 = vmatprep.subr.mxu0 0.0
    %1248 = vmatpush1.msra.mxu0 0.0
    %1249 = vmatprep.subr.mxu0 0.0
    %1250 = vmatpush1.msra.mxu0 0.0
    %1251 = vmatprep.subr.mxu0 0.0
    %1252 = vmatpush1.msra.mxu0 0.0
    %1253 = vmatprep.subr.mxu0 0.0
    %1254 = vmatpush1.msra.mxu0 0.0
    %1255 = vmatprep.subr.mxu0 0.0
    %1256 = vmatpush1.msra.mxu0 0.0
    %1257 = vmatprep.subr.mxu0 0.0
    %1258 = vmatpush1.msra.mxu0 0.0
    %1259 = vmatprep.subr.mxu0 0.0
    %1260 = vmatpush1.msra.mxu0 0.0
    %1261 = vmatprep.subr.mxu0 0.0
    %1262 = vmatpush1.msra.mxu0 0.0
    %1263 = vmatprep.subr.mxu0 0.0
    %1264 = vmatpush1.msra.mxu0 0.0
    %1265 = vmatprep.subr.mxu0 0.0
    %1266 = vmatpush1.msra.mxu0 0.0
    %1267 = vmatprep.subr.mxu0 0.0
    %1268 = vmatpush1.msra.mxu0 0.0
    %1269 = vmatprep.subr.mxu0 0.0
    %1270 = vmatpush1.msra.mxu0 0.0
    %1271 = vmatprep.subr.mxu0 0.0
    %1272 = vmatpush1.msra.mxu0 0.0
    %1273 = vmatprep.subr.mxu0 0.0
    %1274 = vmatpush1.msra.mxu0 0.0
    %1275 = vmatprep.subr.mxu0 0.0
    %1276 = vmatpush1.msra.mxu0 0.0
    %1277 = vmatprep.subr.mxu0 0.0
    %1278 = vmatpush1.msra.mxu0 0.0
    %1279 = vmatprep.subr.mxu0 0.0
    %1280 = vmatpush1.msra.mxu0 0.0
    %1281 = vmatprep.subr.mxu0 0.0
    %1282 = vmatpush1.msra.mxu0 0.0
    %1283 = vmatprep.mubr.f32.mxu0 0.0
    %1284 = vmatmul.mubr.f32.gmra.mrb[0].mxu0 %v1146
    %v1285 = vpop.f32.mrb[0].mxu0
    %v1286 = vadd.f32 0.0, %v1285
    %v1287 = vpop.f32.mrb[0].mxu0
    %1288 = vdwg.mxu0
    %1289 = vmatprep.subr.mxu0 %v79
    %1290 = vmatpush1.msra.mxu0 %v78
    %1291 = vmatprep.subr.mxu0 %v82
    %1292 = vmatpush1.msra.mxu0 %v81
    %1293 = vmatprep.subr.mxu0 %v85
    %1294 = vmatpush1.msra.mxu0 %v84
    %1295 = vmatprep.subr.mxu0 %v88
    %1296 = vmatpush1.msra.mxu0 %v87
    %1297 = vmatprep.subr.mxu0 %v91
    %1298 = vmatpush1.msra.mxu0 %v90
    %1299 = vmatprep.subr.mxu0 %v94
    %1300 = vmatpush1.msra.mxu0 %v93
    %1301 = vmatprep.subr.mxu0 %v97
    %1302 = vmatpush1.msra.mxu0 %v96
    %1303 = vmatprep.subr.mxu0 %v100
    %1304 = vmatpush1.msra.mxu0 %v99
    %1305 = vmatprep.subr.mxu0 %v103
    %1306 = vmatpush1.msra.mxu0 %v102
    %1307 = vmatprep.subr.mxu0 %v106
    %1308 = vmatpush1.msra.mxu0 %v105
    %1309 = vmatprep.subr.mxu0 %v109
    %1310 = vmatpush1.msra.mxu0 %v108
    %1311 = vmatprep.subr.mxu0 %v112
    %1312 = vmatpush1.msra.mxu0 %v111
    %1313 = vmatprep.subr.mxu0 %v115
    %1314 = vmatpush1.msra.mxu0 %v114
    %1315 = vmatprep.subr.mxu0 %v118
    %1316 = vmatpush1.msra.mxu0 %v117
    %1317 = vmatprep.subr.mxu0 %v121
    %1318 = vmatpush1.msra.mxu0 %v120
    %1319 = vmatprep.subr.mxu0 %v124
    %1320 = vmatpush1.msra.mxu0 %v123
    %1321 = vmatprep.subr.mxu0 0.0
    %1322 = vmatpush1.msra.mxu0 0.0
    %1323 = vmatprep.subr.mxu0 0.0
    %1324 = vmatpush1.msra.mxu0 0.0
    %1325 = vmatprep.subr.mxu0 0.0
    %1326 = vmatpush1.msra.mxu0 0.0
    %1327 = vmatprep.subr.mxu0 0.0
    %1328 = vmatpush1.msra.mxu0 0.0
    %1329 = vmatprep.subr.mxu0 0.0
    %1330 = vmatpush1.msra.mxu0 0.0
    %1331 = vmatprep.subr.mxu0 0.0
    %1332 = vmatpush1.msra.mxu0 0.0
    %1333 = vmatprep.subr.mxu0 0.0
    %1334 = vmatpush1.msra.mxu0 0.0
    %1335 = vmatprep.subr.mxu0 0.0
    %1336 = vmatpush1.msra.mxu0 0.0
    %1337 = vmatprep.subr.mxu0 0.0
    %1338 = vmatpush1.msra.mxu0 0.0
    %1339 = vmatprep.subr.mxu0 0.0
    %1340 = vmatpush1.msra.mxu0 0.0
    %1341 = vmatprep.subr.mxu0 0.0
    %1342 = vmatpush1.msra.mxu0 0.0
    %1343 = vmatprep.subr.mxu0 0.0
    %1344 = vmatpush1.msra.mxu0 0.0
    %1345 = vmatprep.subr.mxu0 0.0
    %1346 = vmatpush1.msra.mxu0 0.0
    %1347 = vmatprep.subr.mxu0 0.0
    %1348 = vmatpush1.msra.mxu0 0.0
    %1349 = vmatprep.subr.mxu0 0.0
    %1350 = vmatpush1.msra.mxu0 0.0
    %1351 = vmatprep.subr.mxu0 0.0
    %1352 = vmatpush1.msra.mxu0 0.0
    %1353 = vmatprep.mubr.f32.mxu0 0.0
    %1354 = vmatmul.mubr.f32.gmra.mrb[0].mxu0 %v1144
    %v1355 = vpop.f32.mrb[0].mxu0
    %v1356 = vadd.f32 %v131, %v1355
    %v1357 = vpop.f32.mrb[0].mxu0
    %v1358 = vadd.f32 %v135, %v1357
    %1359 = vdwg.mxu0
    %1360 = vmatprep.subr.mxu0 0.0
    %1361 = vmatpush1.msra.mxu0 %v80
    %1362 = vmatprep.subr.mxu0 0.0
    %1363 = vmatpush1.msra.mxu0 %v83
    %1364 = vmatprep.subr.mxu0 0.0
    %1365 = vmatpush1.msra.mxu0 %v86
    %1366 = vmatprep.subr.mxu0 0.0
    %1367 = vmatpush1.msra.mxu0 %v89
    %1368 = vmatprep.subr.mxu0 0.0
    %1369 = vmatpush1.msra.mxu0 %v92
    %1370 = vmatprep.subr.mxu0 0.0
    %1371 = vmatpush1.msra.mxu0 %v95
    %1372 = vmatprep.subr.mxu0 0.0
    %1373 = vmatpush1.msra.mxu0 %v98
    %1374 = vmatprep.subr.mxu0 0.0
    %1375 = vmatpush1.msra.mxu0 %v101
    %1376 = vmatprep.subr.mxu0 0.0
    %1377 = vmatpush1.msra.mxu0 %v104
    %1378 = vmatprep.subr.mxu0 0.0
    %1379 = vmatpush1.msra.mxu0 %v107
    %1380 = vmatprep.subr.mxu0 0.0
    %1381 = vmatpush1.msra.mxu0 %v110
    %1382 = vmatprep.subr.mxu0 0.0
    %1383 = vmatpush1.msra.mxu0 %v113
    %1384 = vmatprep.subr.mxu0 0.0
    %1385 = vmatpush1.msra.mxu0 %v116
    %1386 = vmatprep.subr.mxu0 0.0
    %1387 = vmatpush1.msra.mxu0 %v119
    %1388 = vmatprep.subr.mxu0 0.0
    %1389 = vmatpush1.msra.mxu0 %v122
    %1390 = vmatprep.subr.mxu0 0.0
    %1391 = vmatpush1.msra.mxu0 %v125
    %1392 = vmatprep.subr.mxu0 0.0
    %1393 = vmatpush1.msra.mxu0 0.0
    %1394 = vmatprep.subr.mxu0 0.0
    %1395 = vmatpush1.msra.mxu0 0.0
    %1396 = vmatprep.subr.mxu0 0.0
    %1397 = vmatpush1.msra.mxu0 0.0
    %1398 = vmatprep.subr.mxu0 0.0
    %1399 = vmatpush1.msra.mxu0 0.0
    %1400 = vmatprep.subr.mxu0 0.0
    %1401 = vmatpush1.msra.mxu0 0.0
    %1402 = vmatprep.subr.mxu0 0.0
    %1403 = vmatpush1.msra.mxu0 0.0
    %1404 = vmatprep.subr.mxu0 0.0
    %1405 = vmatpush1.msra.mxu0 0.0
    %1406 = vmatprep.subr.mxu0 0.0
    %1407 = vmatpush1.msra.mxu0 0.0
    %1408 = vmatprep.subr.mxu0 0.0
    %1409 = vmatpush1.msra.mxu0 0.0
    %1410 = vmatprep.subr.mxu0 0.0
    %1411 = vmatpush1.msra.mxu0 0.0
    %1412 = vmatprep.subr.mxu0 0.0
    %1413 = vmatpush1.msra.mxu0 0.0
    %1414 = vmatprep.subr.mxu0 0.0
    %1415 = vmatpush1.msra.mxu0 0.0
    %1416 = vmatprep.subr.mxu0 0.0
    %1417 = vmatpush1.msra.mxu0 0.0
    %1418 = vmatprep.subr.mxu0 0.0
    %1419 = vmatpush1.msra.mxu0 0.0
    %1420 = vmatprep.subr.mxu0 0.0
    %1421 = vmatpush1.msra.mxu0 0.0
    %1422 = vmatprep.subr.mxu0 0.0
    %1423 = vmatpush1.msra.mxu0 0.0
    %1424 = vmatprep.mubr.f32.mxu0 0.0
    %1425 = vmatmul.mubr.f32.gmra.mrb[0].mxu0 %v1144
    %v1426 = vpop.f32.mrb[0].mxu0
    %v1427 = vadd.f32 %v139, %v1426
    %v1428 = vpop.f32.mrb[0].mxu0
    %1429 = vdwg.mxu0
    %v1430 = vadd.f32 %v1215, %v1356
    %v1431 = vadd.f32 %v1217, %v1358
    %v1432 = vxor.u32 %v1430, 2147483648
    %v1433 = vxor.u32 %v1431, 2147483648
    %v1434 = vmul.f32 %v1432, 1.442695
    %v1435 = vpow.pop %v1434
    %v1436 = vmul.f32 %v1433, 1.442695
    %v1437 = vpow.pop %v1436
    %v1438 = vadd.f32 %v1435, 1.0
    %v1439 = vadd.f32 %v1437, 1.0
    %v1440 = vrcp.pop %v1438
    %v1441 = vmul.f32 1.0, %v1440
    %v1442 = vrcp.pop %v1439
    %v1443 = vmul.f32 1.0, %v1442
    %v1444 = vmul.f32 %v1441, %v1427
    %v1445 = vadd.f32 %v1286, %v1444
    %v1446 = vtanh.pop %v1445
    %v1447 = vsub.f32 1.0, %v1443
    %v1448 = vmul.f32 %v1447, %v1446
    %v1449 = vmul.f32 %v1443, %v1144
    %v1450 = vadd.f32 %v1448, %v1449
    %v1452 = vsel %vm226, %v222, 0
    %1454 = vmatprep.subr.mxu0 %v76
    %1455 = vmatpush1.msra.mxu0 %v75
    %1456 = vmatprep.subr.mxu0 0.0
    %1457 = vmatpush1.msra.mxu0 0.0
    %1458 = vmatprep.subr.mxu0 0.0
    %1459 = vmatpush1.msra.mxu0 0.0
    %1460 = vmatprep.subr.mxu0 0.0
    %1461 = vmatpush1.msra.mxu0 0.0
    %1462 = vmatprep.subr.mxu0 0.0
    %1463 = vmatpush1.msra.mxu0 0.0
    %1464 = vmatprep.subr.mxu0 0.0
    %1465 = vmatpush1.msra.mxu0 0.0
    %1466 = vmatprep.subr.mxu0 0.0
    %1467 = vmatpush1.msra.mxu0 0.0
    %1468 = vmatprep.subr.mxu0 0.0
    %1469 = vmatpush1.msra.mxu0 0.0
    %1470 = vmatprep.subr.mxu0 0.0
    %1471 = vmatpush1.msra.mxu0 0.0
    %1472 = vmatprep.subr.mxu0 0.0
    %1473 = vmatpush1.msra.mxu0 0.0
    %1474 = vmatprep.subr.mxu0 0.0
    %1475 = vmatpush1.msra.mxu0 0.0
    %1476 = vmatprep.subr.mxu0 0.0
    %1477 = vmatpush1.msra.mxu0 0.0
    %1478 = vmatprep.subr.mxu0 0.0
    %1479 = vmatpush1.msra.mxu0 0.0
    %1480 = vmatprep.subr.mxu0 0.0
    %1481 = vmatpush1.msra.mxu0 0.0
    %1482 = vmatprep.subr.mxu0 0.0
    %1483 = vmatpush1.msra.mxu0 0.0
    %1484 = vmatprep.subr.mxu0 0.0
    %1485 = vmatpush1.msra.mxu0 0.0
    %1486 = vmatprep.subr.mxu0 0.0
    %1487 = vmatpush1.msra.mxu0 0.0
    %1488 = vmatprep.subr.mxu0 0.0
    %1489 = vmatpush1.msra.mxu0 0.0
    %1490 = vmatprep.subr.mxu0 0.0
    %1491 = vmatpush1.msra.mxu0 0.0
    %1492 = vmatprep.subr.mxu0 0.0
    %1493 = vmatpush1.msra.mxu0 0.0
    %1494 = vmatprep.subr.mxu0 0.0
    %1495 = vmatpush1.msra.mxu0 0.0
    %1496 = vmatprep.subr.mxu0 0.0
    %1497 = vmatpush1.msra.mxu0 0.0
    %1498 = vmatprep.subr.mxu0 0.0
    %1499 = vmatpush1.msra.mxu0 0.0
    %1500 = vmatprep.subr.mxu0 0.0
    %1501 = vmatpush1.msra.mxu0 0.0
    %1502 = vmatprep.subr.mxu0 0.0
    %1503 = vmatpush1.msra.mxu0 0.0
    %1504 = vmatprep.subr.mxu0 0.0
    %1505 = vmatpush1.msra.mxu0 0.0
    %1506 = vmatprep.subr.mxu0 0.0
    %1507 = vmatpush1.msra.mxu0 0.0
    %1508 = vmatprep.subr.mxu0 0.0
    %1509 = vmatpush1.msra.mxu0 0.0
    %1510 = vmatprep.subr.mxu0 0.0
    %1511 = vmatpush1.msra.mxu0 0.0
    %1512 = vmatprep.subr.mxu0 0.0
    %1513 = vmatpush1.msra.mxu0 0.0
    %1514 = vmatprep.subr.mxu0 0.0
    %1515 = vmatpush1.msra.mxu0 0.0
    %1516 = vmatprep.subr.mxu0 0.0
    %1517 = vmatpush1.msra.mxu0 0.0
    %1518 = vmatprep.mubr.f32.mxu0 0.0
    %1519 = vmatmul.mubr.f32.gmra.mrb[0].mxu0 %v1452
    %v1520 = vpop.f32.mrb[0].mxu0
    %v1521 = vadd.f32 0.0, %v1520
    %v1522 = vpop.f32.mrb[0].mxu0
    %v1523 = vadd.f32 0.0, %v1522
    %1524 = vdwg.mxu0
    %1525 = vmatprep.subr.mxu0 0.0
    %1526 = vmatpush1.msra.mxu0 %v77
    %1527 = vmatprep.subr.mxu0 0.0
    %1528 = vmatpush1.msra.mxu0 0.0
    %1529 = vmatprep.subr.mxu0 0.0
    %1530 = vmatpush1.msra.mxu0 0.0
    %1531 = vmatprep.subr.mxu0 0.0
    %1532 = vmatpush1.msra.mxu0 0.0
    %1533 = vmatprep.subr.mxu0 0.0
    %1534 = vmatpush1.msra.mxu0 0.0
    %1535 = vmatprep.subr.mxu0 0.0
    %1536 = vmatpush1.msra.mxu0 0.0
    %1537 = vmatprep.subr.mxu0 0.0
    %1538 = vmatpush1.msra.mxu0 0.0
    %1539 = vmatprep.subr.mxu0 0.0
    %1540 = vmatpush1.msra.mxu0 0.0
    %1541 = vmatprep.subr.mxu0 0.0
    %1542 = vmatpush1.msra.mxu0 0.0
    %1543 = vmatprep.subr.mxu0 0.0
    %1544 = vmatpush1.msra.mxu0 0.0
    %1545 = vmatprep.subr.mxu0 0.0
    %1546 = vmatpush1.msra.mxu0 0.0
    %1547 = vmatprep.subr.mxu0 0.0
    %1548 = vmatpush1.msra.mxu0 0.0
    %1549 = vmatprep.subr.mxu0 0.0
    %1550 = vmatpush1.msra.mxu0 0.0
    %1551 = vmatprep.subr.mxu0 0.0
    %1552 = vmatpush1.msra.mxu0 0.0
    %1553 = vmatprep.subr.mxu0 0.0
    %1554 = vmatpush1.msra.mxu0 0.0
    %1555 = vmatprep.subr.mxu0 0.0
    %1556 = vmatpush1.msra.mxu0 0.0
    %1557 = vmatprep.subr.mxu0 0.0
    %1558 = vmatpush1.msra.mxu0 0.0
    %1559 = vmatprep.subr.mxu0 0.0
    %1560 = vmatpush1.msra.mxu0 0.0
    %1561 = vmatprep.subr.mxu0 0.0
    %1562 = vmatpush1.msra.mxu0 0.0
    %1563 = vmatprep.subr.mxu0 0.0
    %1564 = vmatpush1.msra.mxu0 0.0
    %1565 = vmatprep.subr.mxu0 0.0
    %1566 = vmatpush1.msra.mxu0 0.0
    %1567 = vmatprep.subr.mxu0 0.0
    %1568 = vmatpush1.msra.mxu0 0.0
    %1569 = vmatprep.subr.mxu0 0.0
    %1570 = vmatpush1.msra.mxu0 0.0
    %1571 = vmatprep.subr.mxu0 0.0
    %1572 = vmatpush1.msra.mxu0 0.0
    %1573 = vmatprep.subr.mxu0 0.0
    %1574 = vmatpush1.msra.mxu0 0.0
    %1575 = vmatprep.subr.mxu0 0.0
    %1576 = vmatpush1.msra.mxu0 0.0
    %1577 = vmatprep.subr.mxu0 0.0
    %1578 = vmatpush1.msra.mxu0 0.0
    %1579 = vmatprep.subr.mxu0 0.0
    %1580 = vmatpush1.msra.mxu0 0.0
    %1581 = vmatprep.subr.mxu0 0.0
    %1582 = vmatpush1.msra.mxu0 0.0
    %1583 = vmatprep.subr.mxu0 0.0
    %1584 = vmatpush1.msra.mxu0 0.0
    %1585 = vmatprep.subr.mxu0 0.0
    %1586 = vmatpush1.msra.mxu0 0.0
    %1587 = vmatprep.subr.mxu0 0.0
    %1588 = vmatpush1.msra.mxu0 0.0
    %1589 = vmatprep.mubr.f32.mxu0 0.0
    %1590 = vmatmul.mubr.f32.gmra.mrb[0].mxu0 %v1452
    %v1591 = vpop.f32.mrb[0].mxu0
    %v1592 = vadd.f32 0.0, %v1591
    %v1593 = vpop.f32.mrb[0].mxu0
    %1594 = vdwg.mxu0
    %1595 = vmatprep.subr.mxu0 %v79
    %1596 = vmatpush1.msra.mxu0 %v78
    %1597 = vmatprep.subr.mxu0 %v82
    %1598 = vmatpush1.msra.mxu0 %v81
    %1599 = vmatprep.subr.mxu0 %v85
    %1600 = vmatpush1.msra.mxu0 %v84
    %1601 = vmatprep.subr.mxu0 %v88
    %1602 = vmatpush1.msra.mxu0 %v87
    %1603 = vmatprep.subr.mxu0 %v91
    %1604 = vmatpush1.msra.mxu0 %v90
    %1605 = vmatprep.subr.mxu0 %v94
    %1606 = vmatpush1.msra.mxu0 %v93
    %1607 = vmatprep.subr.mxu0 %v97
    %1608 = vmatpush1.msra.mxu0 %v96
    %1609 = vmatprep.subr.mxu0 %v100
    %1610 = vmatpush1.msra.mxu0 %v99
    %1611 = vmatprep.subr.mxu0 %v103
    %1612 = vmatpush1.msra.mxu0 %v102
    %1613 = vmatprep.subr.mxu0 %v106
    %1614 = vmatpush1.msra.mxu0 %v105
    %1615 = vmatprep.subr.mxu0 %v109
    %1616 = vmatpush1.msra.mxu0 %v108
    %1617 = vmatprep.subr.mxu0 %v112
    %1618 = vmatpush1.msra.mxu0 %v111
    %1619 = vmatprep.subr.mxu0 %v115
    %1620 = vmatpush1.msra.mxu0 %v114
    %1621 = vmatprep.subr.mxu0 %v118
    %1622 = vmatpush1.msra.mxu0 %v117
    %1623 = vmatprep.subr.mxu0 %v121
    %1624 = vmatpush1.msra.mxu0 %v120
    %1625 = vmatprep.subr.mxu0 %v124
    %1626 = vmatpush1.msra.mxu0 %v123
    %1627 = vmatprep.subr.mxu0 0.0
    %1628 = vmatpush1.msra.mxu0 0.0
    %1629 = vmatprep.subr.mxu0 0.0
    %1630 = vmatpush1.msra.mxu0 0.0
    %1631 = vmatprep.subr.mxu0 0.0
    %1632 = vmatpush1.msra.mxu0 0.0
    %1633 = vmatprep.subr.mxu0 0.0
    %1634 = vmatpush1.msra.mxu0 0.0
    %1635 = vmatprep.subr.mxu0 0.0
    %1636 = vmatpush1.msra.mxu0 0.0
    %1637 = vmatprep.subr.mxu0 0.0
    %1638 = vmatpush1.msra.mxu0 0.0
    %1639 = vmatprep.subr.mxu0 0.0
    %1640 = vmatpush1.msra.mxu0 0.0
    %1641 = vmatprep.subr.mxu0 0.0
    %1642 = vmatpush1.msra.mxu0 0.0
    %1643 = vmatprep.subr.mxu0 0.0
    %1644 = vmatpush1.msra.mxu0 0.0
    %1645 = vmatprep.subr.mxu0 0.0
    %1646 = vmatpush1.msra.mxu0 0.0
    %1647 = vmatprep.subr.mxu0 0.0
    %1648 = vmatpush1.msra.mxu0 0.0
    %1649 = vmatprep.subr.mxu0 0.0
    %1650 = vmatpush1.msra.mxu0 0.0
    %1651 = vmatprep.subr.mxu0 0.0
    %1652 = vmatpush1.msra.mxu0 0.0
    %1653 = vmatprep.subr.mxu0 0.0
    %1654 = vmatpush1.msra.mxu0 0.0
    %1655 = vmatprep.subr.mxu0 0.0
    %1656 = vmatpush1.msra.mxu0 0.0
    %1657 = vmatprep.subr.mxu0 0.0
    %1658 = vmatpush1.msra.mxu0 0.0
    %1659 = vmatprep.mubr.f32.mxu0 0.0
    %1660 = vmatmul.mubr.f32.gmra.mrb[0].mxu0 %v1450
    %v1661 = vpop.f32.mrb[0].mxu0
    %v1662 = vadd.f32 %v131, %v1661
    %v1663 = vpop.f32.mrb[0].mxu0
    %v1664 = vadd.f32 %v135, %v1663
    %1665 = vdwg.mxu0
    %1666 = vmatprep.subr.mxu0 0.0
    %1667 = vmatpush1.msra.mxu0 %v80
    %1668 = vmatprep.subr.mxu0 0.0
    %1669 = vmatpush1.msra.mxu0 %v83
    %1670 = vmatprep.subr.mxu0 0.0
    %1671 = vmatpush1.msra.mxu0 %v86
    %1672 = vmatprep.subr.mxu0 0.0
    %1673 = vmatpush1.msra.mxu0 %v89
    %1674 = vmatprep.subr.mxu0 0.0
    %1675 = vmatpush1.msra.mxu0 %v92
    %1676 = vmatprep.subr.mxu0 0.0
    %1677 = vmatpush1.msra.mxu0 %v95
    %1678 = vmatprep.subr.mxu0 0.0
    %1679 = vmatpush1.msra.mxu0 %v98
    %1680 = vmatprep.subr.mxu0 0.0
    %1681 = vmatpush1.msra.mxu0 %v101
    %1682 = vmatprep.subr.mxu0 0.0
    %1683 = vmatpush1.msra.mxu0 %v104
    %1684 = vmatprep.subr.mxu0 0.0
    %1685 = vmatpush1.msra.mxu0 %v107
    %1686 = vmatprep.subr.mxu0 0.0
    %1687 = vmatpush1.msra.mxu0 %v110
    %1688 = vmatprep.subr.mxu0 0.0
    %1689 = vmatpush1.msra.mxu0 %v113
    %1690 = vmatprep.subr.mxu0 0.0
    %1691 = vmatpush1.msra.mxu0 %v116
    %1692 = vmatprep.subr.mxu0 0.0
    %1693 = vmatpush1.msra.mxu0 %v119
    %1694 = vmatprep.subr.mxu0 0.0
    %1695 = vmatpush1.msra.mxu0 %v122
    %1696 = vmatprep.subr.mxu0 0.0
    %1697 = vmatpush1.msra.mxu0 %v125
    %1698 = vmatprep.subr.mxu0 0.0
    %1699 = vmatpush1.msra.mxu0 0.0
    %1700 = vmatprep.subr.mxu0 0.0
    %1701 = vmatpush1.msra.mxu0 0.0
    %1702 = vmatprep.subr.mxu0 0.0
    %1703 = vmatpush1.msra.mxu0 0.0
    %1704 = vmatprep.subr.mxu0 0.0
    %1705 = vmatpush1.msra.mxu0 0.0
    %1706 = vmatprep.subr.mxu0 0.0
    %1707 = vmatpush1.msra.mxu0 0.0
    %1708 = vmatprep.subr.mxu0 0.0
    %1709 = vmatpush1.msra.mxu0 0.0
    %1710 = vmatprep.subr.mxu0 0.0
    %1711 = vmatpush1.msra.mxu0 0.0
    %1712 = vmatprep.subr.mxu0 0.0
    %1713 = vmatpush1.msra.mxu0 0.0
    %1714 = vmatprep.subr.mxu0 0.0
    %1715 = vmatpush1.msra.mxu0 0.0
    %1716 = vmatprep.subr.mxu0 0.0
    %1717 = vmatpush1.msra.mxu0 0.0
    %1718 = vmatprep.subr.mxu0 0.0
    %1719 = vmatpush1.msra.mxu0 0.0
    %1720 = vmatprep.subr.mxu0 0.0
    %1721 = vmatpush1.msra.mxu0 0.0
    %1722 = vmatprep.subr.mxu0 0.0
    %1723 = vmatpush1.msra.mxu0 0.0
    %1724 = vmatprep.subr.mxu0 0.0
    %1725 = vmatpush1.msra.mxu0 0.0
    %1726 = vmatprep.subr.mxu0 0.0
    %1727 = vmatpush1.msra.mxu0 0.0
    %1728 = vmatprep.subr.mxu0 0.0
    %1729 = vmatpush1.msra.mxu0 0.0
    %1730 = vmatprep.mubr.f32.mxu0 0.0
    %1731 = vmatmul.mubr.f32.gmra.mrb[0].mxu0 %v1450
    %v1732 = vpop.f32.mrb[0].mxu0
    %v1733 = vadd.f32 %v139, %v1732
    %v1734 = vpop.f32.mrb[0].mxu0
    %1735 = vdwg.mxu0
    %v1736 = vadd.f32 %v1521, %v1662
    %v1737 = vadd.f32 %v1523, %v1664
    %v1738 = vxor.u32 %v1736, 2147483648
    %v1739 = vxor.u32 %v1737, 2147483648
    %v1740 = vmul.f32 %v1738, 1.442695
    %v1741 = vpow.pop %v1740
    %v1742 = vmul.f32 %v1739, 1.442695
    %v1743 = vpow.pop %v1742
    %v1744 = vadd.f32 %v1741, 1.0
    %v1745 = vadd.f32 %v1743, 1.0
    %v1746 = vrcp.pop %v1744
    %v1747 = vmul.f32 1.0, %v1746
    %v1748 = vrcp.pop %v1745
    %v1749 = vmul.f32 1.0, %v1748
    %v1750 = vmul.f32 %v1747, %v1733
    %v1751 = vadd.f32 %v1592, %v1750
    %v1752 = vtanh.pop %v1751
    %v1753 = vsub.f32 1.0, %v1749
    %v1754 = vmul.f32 %v1753, %v1752
    %v1755 = vmul.f32 %v1749, %v1450
    %v1756 = vadd.f32 %v1754, %v1755
    %v1758 = vsel %vm226, %v223, 0
    %1760 = vmatprep.subr.mxu0 %v76
    %1761 = vmatpush1.msra.mxu0 %v75
    %1762 = vmatprep.subr.mxu0 0.0
    %1763 = vmatpush1.msra.mxu0 0.0
    %1764 = vmatprep.subr.mxu0 0.0
    %1765 = vmatpush1.msra.mxu0 0.0
    %1766 = vmatprep.subr.mxu0 0.0
    %1767 = vmatpush1.msra.mxu0 0.0
    %1768 = vmatprep.subr.mxu0 0.0
    %1769 = vmatpush1.msra.mxu0 0.0
    %1770 = vmatprep.subr.mxu0 0.0
    %1771 = vmatpush1.msra.mxu0 0.0
    %1772 = vmatprep.subr.mxu0 0.0
    %1773 = vmatpush1.msra.mxu0 0.0
    %1774 = vmatprep.subr.mxu0 0.0
    %1775 = vmatpush1.msra.mxu0 0.0
    %1776 = vmatprep.subr.mxu0 0.0
    %1777 = vmatpush1.msra.mxu0 0.0
    %1778 = vmatprep.subr.mxu0 0.0
    %1779 = vmatpush1.msra.mxu0 0.0
    %1780 = vmatprep.subr.mxu0 0.0
    %1781 = vmatpush1.msra.mxu0 0.0
    %1782 = vmatprep.subr.mxu0 0.0
    %1783 = vmatpush1.msra.mxu0 0.0
    %1784 = vmatprep.subr.mxu0 0.0
    %1785 = vmatpush1.msra.mxu0 0.0
    %1786 = vmatprep.subr.mxu0 0.0
    %1787 = vmatpush1.msra.mxu0 0.0
    %1788 = vmatprep.subr.mxu0 0.0
    %1789 = vmatpush1.msra.mxu0 0.0
    %1790 = vmatprep.subr.mxu0 0.0
    %1791 = vmatpush1.msra.mxu0 0.0
    %1792 = vmatprep.subr.mxu0 0.0
    %1793 = vmatpush1.msra.mxu0 0.0
    %1794 = vmatprep.subr.mxu0 0.0
    %1795 = vmatpush1.msra.mxu0 0.0
    %1796 = vmatprep.subr.mxu0 0.0
    %1797 = vmatpush1.msra.mxu0 0.0
    %1798 = vmatprep.subr.mxu0 0.0
    %1799 = vmatpush1.msra.mxu0 0.0
    %1800 = vmatprep.subr.mxu0 0.0
    %1801 = vmatpush1.msra.mxu0 0.0
    %1802 = vmatprep.subr.mxu0 0.0
    %1803 = vmatpush1.msra.mxu0 0.0
    %1804 = vmatprep.subr.mxu0 0.0
    %1805 = vmatpush1.msra.mxu0 0.0
    %1806 = vmatprep.subr.mxu0 0.0
    %1807 = vmatpush1.msra.mxu0 0.0
    %1808 = vmatprep.subr.mxu0 0.0
    %1809 = vmatpush1.msra.mxu0 0.0
    %1810 = vmatprep.subr.mxu0 0.0
    %1811 = vmatpush1.msra.mxu0 0.0
    %1812 = vmatprep.subr.mxu0 0.0
    %1813 = vmatpush1.msra.mxu0 0.0
    %1814 = vmatprep.subr.mxu0 0.0
    %1815 = vmatpush1.msra.mxu0 0.0
    %1816 = vmatprep.subr.mxu0 0.0
    %1817 = vmatpush1.msra.mxu0 0.0
    %1818 = vmatprep.subr.mxu0 0.0
    %1819 = vmatpush1.msra.mxu0 0.0
    %1820 = vmatprep.subr.mxu0 0.0
    %1821 = vmatpush1.msra.mxu0 0.0
    %1822 = vmatprep.subr.mxu0 0.0
    %1823 = vmatpush1.msra.mxu0 0.0
    %1824 = vmatprep.mubr.f32.mxu0 0.0
    %1825 = vmatmul.mubr.f32.gmra.mrb[0].mxu0 %v1758
    %v1826 = vpop.f32.mrb[0].mxu0
    %v1827 = vadd.f32 0.0, %v1826
    %v1828 = vpop.f32.mrb[0].mxu0
    %v1829 = vadd.f32 0.0, %v1828
    %1830 = vdwg.mxu0
    %1831 = vmatprep.subr.mxu0 0.0
    %1832 = vmatpush1.msra.mxu0 %v77
    %1833 = vmatprep.subr.mxu0 0.0
    %1834 = vmatpush1.msra.mxu0 0.0
    %1835 = vmatprep.subr.mxu0 0.0
    %1836 = vmatpush1.msra.mxu0 0.0
    %1837 = vmatprep.subr.mxu0 0.0
    %1838 = vmatpush1.msra.mxu0 0.0
    %1839 = vmatprep.subr.mxu0 0.0
    %1840 = vmatpush1.msra.mxu0 0.0
    %1841 = vmatprep.subr.mxu0 0.0
    %1842 = vmatpush1.msra.mxu0 0.0
    %1843 = vmatprep.subr.mxu0 0.0
    %1844 = vmatpush1.msra.mxu0 0.0
    %1845 = vmatprep.subr.mxu0 0.0
    %1846 = vmatpush1.msra.mxu0 0.0
    %1847 = vmatprep.subr.mxu0 0.0
    %1848 = vmatpush1.msra.mxu0 0.0
    %1849 = vmatprep.subr.mxu0 0.0
    %1850 = vmatpush1.msra.mxu0 0.0
    %1851 = vmatprep.subr.mxu0 0.0
    %1852 = vmatpush1.msra.mxu0 0.0
    %1853 = vmatprep.subr.mxu0 0.0
    %1854 = vmatpush1.msra.mxu0 0.0
    %1855 = vmatprep.subr.mxu0 0.0
    %1856 = vmatpush1.msra.mxu0 0.0
    %1857 = vmatprep.subr.mxu0 0.0
    %1858 = vmatpush1.msra.mxu0 0.0
    %1859 = vmatprep.subr.mxu0 0.0
    %1860 = vmatpush1.msra.mxu0 0.0
    %1861 = vmatprep.subr.mxu0 0.0
    %1862 = vmatpush1.msra.mxu0 0.0
    %1863 = vmatprep.subr.mxu0 0.0
    %1864 = vmatpush1.msra.mxu0 0.0
    %1865 = vmatprep.subr.mxu0 0.0
    %1866 = vmatpush1.msra.mxu0 0.0
    %1867 = vmatprep.subr.mxu0 0.0
    %1868 = vmatpush1.msra.mxu0 0.0
    %1869 = vmatprep.subr.mxu0 0.0
    %1870 = vmatpush1.msra.mxu0 0.0
    %1871 = vmatprep.subr.mxu0 0.0
    %1872 = vmatpush1.msra.mxu0 0.0
    %1873 = vmatprep.subr.mxu0 0.0
    %1874 = vmatpush1.msra.mxu0 0.0
    %1875 = vmatprep.subr.mxu0 0.0
    %1876 = vmatpush1.msra.mxu0 0.0
    %1877 = vmatprep.subr.mxu0 0.0
    %1878 = vmatpush1.msra.mxu0 0.0
    %1879 = vmatprep.subr.mxu0 0.0
    %1880 = vmatpush1.msra.mxu0 0.0
    %1881 = vmatprep.subr.mxu0 0.0
    %1882 = vmatpush1.msra.mxu0 0.0
    %1883 = vmatprep.subr.mxu0 0.0
    %1884 = vmatpush1.msra.mxu0 0.0
    %1885 = vmatprep.subr.mxu0 0.0
    %1886 = vmatpush1.msra.mxu0 0.0
    %1887 = vmatprep.subr.mxu0 0.0
    %1888 = vmatpush1.msra.mxu0 0.0
    %1889 = vmatprep.subr.mxu0 0.0
    %1890 = vmatpush1.msra.mxu0 0.0
    %1891 = vmatprep.subr.mxu0 0.0
    %1892 = vmatpush1.msra.mxu0 0.0
    %1893 = vmatprep.subr.mxu0 0.0
    %1894 = vmatpush1.msra.mxu0 0.0
    %1895 = vmatprep.mubr.f32.mxu0 0.0
    %1896 = vmatmul.mubr.f32.gmra.mrb[0].mxu0 %v1758
    %v1897 = vpop.f32.mrb[0].mxu0
    %v1898 = vadd.f32 0.0, %v1897
    %v1899 = vpop.f32.mrb[0].mxu0
    %1900 = vdwg.mxu0
    %1901 = vmatprep.subr.mxu0 %v79
    %1902 = vmatpush1.msra.mxu0 %v78
    %1903 = vmatprep.subr.mxu0 %v82
    %1904 = vmatpush1.msra.mxu0 %v81
    %1905 = vmatprep.subr.mxu0 %v85
    %1906 = vmatpush1.msra.mxu0 %v84
    %1907 = vmatprep.subr.mxu0 %v88
    %1908 = vmatpush1.msra.mxu0 %v87
    %1909 = vmatprep.subr.mxu0 %v91
    %1910 = vmatpush1.msra.mxu0 %v90
    %1911 = vmatprep.subr.mxu0 %v94
    %1912 = vmatpush1.msra.mxu0 %v93
    %1913 = vmatprep.subr.mxu0 %v97
    %1914 = vmatpush1.msra.mxu0 %v96
    %1915 = vmatprep.subr.mxu0 %v100
    %1916 = vmatpush1.msra.mxu0 %v99
    %1917 = vmatprep.subr.mxu0 %v103
    %1918 = vmatpush1.msra.mxu0 %v102
    %1919 = vmatprep.subr.mxu0 %v106
    %1920 = vmatpush1.msra.mxu0 %v105
    %1921 = vmatprep.subr.mxu0 %v109
    %1922 = vmatpush1.msra.mxu0 %v108
    %1923 = vmatprep.subr.mxu0 %v112
    %1924 = vmatpush1.msra.mxu0 %v111
    %1925 = vmatprep.subr.mxu0 %v115
    %1926 = vmatpush1.msra.mxu0 %v114
    %1927 = vmatprep.subr.mxu0 %v118
    %1928 = vmatpush1.msra.mxu0 %v117
    %1929 = vmatprep.subr.mxu0 %v121
    %1930 = vmatpush1.msra.mxu0 %v120
    %1931 = vmatprep.subr.mxu0 %v124
    %1932 = vmatpush1.msra.mxu0 %v123
    %1933 = vmatprep.subr.mxu0 0.0
    %1934 = vmatpush1.msra.mxu0 0.0
    %1935 = vmatprep.subr.mxu0 0.0
    %1936 = vmatpush1.msra.mxu0 0.0
    %1937 = vmatprep.subr.mxu0 0.0
    %1938 = vmatpush1.msra.mxu0 0.0
    %1939 = vmatprep.subr.mxu0 0.0
    %1940 = vmatpush1.msra.mxu0 0.0
    %1941 = vmatprep.subr.mxu0 0.0
    %1942 = vmatpush1.msra.mxu0 0.0
    %1943 = vmatprep.subr.mxu0 0.0
    %1944 = vmatpush1.msra.mxu0 0.0
    %1945 = vmatprep.subr.mxu0 0.0
    %1946 = vmatpush1.msra.mxu0 0.0
    %1947 = vmatprep.subr.mxu0 0.0
    %1948 = vmatpush1.msra.mxu0 0.0
    %1949 = vmatprep.subr.mxu0 0.0
    %1950 = vmatpush1.msra.mxu0 0.0
    %1951 = vmatprep.subr.mxu0 0.0
    %1952 = vmatpush1.msra.mxu0 0.0
    %1953 = vmatprep.subr.mxu0 0.0
    %1954 = vmatpush1.msra.mxu0 0.0
    %1955 = vmatprep.subr.mxu0 0.0
    %1956 = vmatpush1.msra.mxu0 0.0
    %1957 = vmatprep.subr.mxu0 0.0
    %1958 = vmatpush1.msra.mxu0 0.0
    %1959 = vmatprep.subr.mxu0 0.0
    %1960 = vmatpush1.msra.mxu0 0.0
    %1961 = vmatprep.subr.mxu0 0.0
    %1962 = vmatpush1.msra.mxu0 0.0
    %1963 = vmatprep.subr.mxu0 0.0
    %1964 = vmatpush1.msra.mxu0 0.0
    %1965 = vmatprep.mubr.f32.mxu0 0.0
    %1966 = vmatmul.mubr.f32.gmra.mrb[0].mxu0 %v1756
    %v1967 = vpop.f32.mrb[0].mxu0
    %v1968 = vadd.f32 %v131, %v1967
    %v1969 = vpop.f32.mrb[0].mxu0
    %v1970 = vadd.f32 %v135, %v1969
    %1971 = vdwg.mxu0
    %1972 = vmatprep.subr.mxu0 0.0
    %1973 = vmatpush1.msra.mxu0 %v80
    %1974 = vmatprep.subr.mxu0 0.0
    %1975 = vmatpush1.msra.mxu0 %v83
    %1976 = vmatprep.subr.mxu0 0.0
    %1977 = vmatpush1.msra.mxu0 %v86
    %1978 = vmatprep.subr.mxu0 0.0
    %1979 = vmatpush1.msra.mxu0 %v89
    %1980 = vmatprep.subr.mxu0 0.0
    %1981 = vmatpush1.msra.mxu0 %v92
    %1982 = vmatprep.subr.mxu0 0.0
    %1983 = vmatpush1.msra.mxu0 %v95
    %1984 = vmatprep.subr.mxu0 0.0
    %1985 = vmatpush1.msra.mxu0 %v98
    %1986 = vmatprep.subr.mxu0 0.0
    %1987 = vmatpush1.msra.mxu0 %v101
    %1988 = vmatprep.subr.mxu0 0.0
    %1989 = vmatpush1.msra.mxu0 %v104
    %1990 = vmatprep.subr.mxu0 0.0
    %1991 = vmatpush1.msra.mxu0 %v107
    %1992 = vmatprep.subr.mxu0 0.0
    %1993 = vmatpush1.msra.mxu0 %v110
    %1994 = vmatprep.subr.mxu0 0.0
    %1995 = vmatpush1.msra.mxu0 %v113
    %1996 = vmatprep.subr.mxu0 0.0
    %1997 = vmatpush1.msra.mxu0 %v116
    %1998 = vmatprep.subr.mxu0 0.0
    %1999 = vmatpush1.msra.mxu0 %v119
    %2000 = vmatprep.subr.mxu0 0.0
    %2001 = vmatpush1.msra.mxu0 %v122
    %2002 = vmatprep.subr.mxu0 0.0
    %2003 = vmatpush1.msra.mxu0 %v125
    %2004 = vmatprep.subr.mxu0 0.0
    %2005 = vmatpush1.msra.mxu0 0.0
    %2006 = vmatprep.subr.mxu0 0.0
    %2007 = vmatpush1.msra.mxu0 0.0
    %2008 = vmatprep.subr.mxu0 0.0
    %2009 = vmatpush1.msra.mxu0 0.0
    %2010 = vmatprep.subr.mxu0 0.0
    %2011 = vmatpush1.msra.mxu0 0.0
    %2012 = vmatprep.subr.mxu0 0.0
    %2013 = vmatpush1.msra.mxu0 0.0
    %2014 = vmatprep.subr.mxu0 0.0
    %2015 = vmatpush1.msra.mxu0 0.0
    %2016 = vmatprep.subr.mxu0 0.0
    %2017 = vmatpush1.msra.mxu0 0.0
    %2018 = vmatprep.subr.mxu0 0.0
    %2019 = vmatpush1.msra.mxu0 0.0
    %2020 = vmatprep.subr.mxu0 0.0
    %2021 = vmatpush1.msra.mxu0 0.0
    %2022 = vmatprep.subr.mxu0 0.0
    %2023 = vmatpush1.msra.mxu0 0.0
    %2024 = vmatprep.subr.mxu0 0.0
    %2025 = vmatpush1.msra.mxu0 0.0
    %2026 = vmatprep.subr.mxu0 0.0
    %2027 = vmatpush1.msra.mxu0 0.0
    %2028 = vmatprep.subr.mxu0 0.0
    %2029 = vmatpush1.msra.mxu0 0.0
    %2030 = vmatprep.subr.mxu0 0.0
    %2031 = vmatpush1.msra.mxu0 0.0
    %2032 = vmatprep.subr.mxu0 0.0
    %2033 = vmatpush1.msra.mxu0 0.0
    %2034 = vmatprep.subr.mxu0 0.0
    %2035 = vmatpush1.msra.mxu0 0.0
    %2036 = vmatprep.mubr.f32.mxu0 0.0
    %2037 = vmatmul.mubr.f32.gmra.mrb[0].mxu0 %v1756
    %v2038 = vpop.f32.mrb[0].mxu0
    %v2039 = vadd.f32 %v139, %v2038
    %v2040 = vpop.f32.mrb[0].mxu0
    %2041 = vdwg.mxu0
    %v2042 = vadd.f32 %v1827, %v1968
    %v2043 = vadd.f32 %v1829, %v1970
    %v2044 = vxor.u32 %v2042, 2147483648
    %v2045 = vxor.u32 %v2043, 2147483648
    %v2046 = vmul.f32 %v2044, 1.442695
    %v2047 = vpow.pop %v2046
    %v2048 = vmul.f32 %v2045, 1.442695
    %v2049 = vpow.pop %v2048
    %v2050 = vadd.f32 %v2047, 1.0
    %v2051 = vadd.f32 %v2049, 1.0
    %v2052 = vrcp.pop %v2050
    %v2053 = vmul.f32 1.0, %v2052
    %v2054 = vrcp.pop %v2051
    %v2055 = vmul.f32 1.0, %v2054
    %v2056 = vmul.f32 %v2053, %v2039
    %v2057 = vadd.f32 %v1898, %v2056
    %v2058 = vtanh.pop %v2057
    %v2059 = vsub.f32 1.0, %v2055
    %v2060 = vmul.f32 %v2059, %v2058
    %v2061 = vmul.f32 %v2055, %v1756
    %v2062 = vadd.f32 %v2060, %v2061
    %v2064 = vsel %vm226, %v224, 0
    %2066 = vmatprep.subr.mxu0 %v76
    %2067 = vmatpush1.msra.mxu0 %v75
    %2068 = vmatprep.subr.mxu0 0.0
    %2069 = vmatpush1.msra.mxu0 0.0
    %2070 = vmatprep.subr.mxu0 0.0
    %2071 = vmatpush1.msra.mxu0 0.0
    %2072 = vmatprep.subr.mxu0 0.0
    %2073 = vmatpush1.msra.mxu0 0.0
    %2074 = vmatprep.subr.mxu0 0.0
    %2075 = vmatpush1.msra.mxu0 0.0
    %2076 = vmatprep.subr.mxu0 0.0
    %2077 = vmatpush1.msra.mxu0 0.0
    %2078 = vmatprep.subr.mxu0 0.0
    %2079 = vmatpush1.msra.mxu0 0.0
    %2080 = vmatprep.subr.mxu0 0.0
    %2081 = vmatpush1.msra.mxu0 0.0
    %2082 = vmatprep.subr.mxu0 0.0
    %2083 = vmatpush1.msra.mxu0 0.0
    %2084 = vmatprep.subr.mxu0 0.0
    %2085 = vmatpush1.msra.mxu0 0.0
    %2086 = vmatprep.subr.mxu0 0.0
    %2087 = vmatpush1.msra.mxu0 0.0
    %2088 = vmatprep.subr.mxu0 0.0
    %2089 = vmatpush1.msra.mxu0 0.0
    %2090 = vmatprep.subr.mxu0 0.0
    %2091 = vmatpush1.msra.mxu0 0.0
    %2092 = vmatprep.subr.mxu0 0.0
    %2093 = vmatpush1.msra.mxu0 0.0
    %2094 = vmatprep.subr.mxu0 0.0
    %2095 = vmatpush1.msra.mxu0 0.0
    %2096 = vmatprep.subr.mxu0 0.0
    %2097 = vmatpush1.msra.mxu0 0.0
    %2098 = vmatprep.subr.mxu0 0.0
    %2099 = vmatpush1.msra.mxu0 0.0
    %2100 = vmatprep.subr.mxu0 0.0
    %2101 = vmatpush1.msra.mxu0 0.0
    %2102 = vmatprep.subr.mxu0 0.0
    %2103 = vmatpush1.msra.mxu0 0.0
    %2104 = vmatprep.subr.mxu0 0.0
    %2105 = vmatpush1.msra.mxu0 0.0
    %2106 = vmatprep.subr.mxu0 0.0
    %2107 = vmatpush1.msra.mxu0 0.0
    %2108 = vmatprep.subr.mxu0 0.0
    %2109 = vmatpush1.msra.mxu0 0.0
    %2110 = vmatprep.subr.mxu0 0.0
    %2111 = vmatpush1.msra.mxu0 0.0
    %2112 = vmatprep.subr.mxu0 0.0
    %2113 = vmatpush1.msra.mxu0 0.0
    %2114 = vmatprep.subr.mxu0 0.0
    %2115 = vmatpush1.msra.mxu0 0.0
    %2116 = vmatprep.subr.mxu0 0.0
    %2117 = vmatpush1.msra.mxu0 0.0
    %2118 = vmatprep.subr.mxu0 0.0
    %2119 = vmatpush1.msra.mxu0 0.0
    %2120 = vmatprep.subr.mxu0 0.0
    %2121 = vmatpush1.msra.mxu0 0.0
    %2122 = vmatprep.subr.mxu0 0.0
    %2123 = vmatpush1.msra.mxu0 0.0
    %2124 = vmatprep.subr.mxu0 0.0
    %2125 = vmatpush1.msra.mxu0 0.0
    %2126 = vmatprep.subr.mxu0 0.0
    %2127 = vmatpush1.msra.mxu0 0.0
    %2128 = vmatprep.subr.mxu0 0.0
    %2129 = vmatpush1.msra.mxu0 0.0
    %2130 = vmatprep.mubr.f32.mxu0 0.0
    %2131 = vmatmul.mubr.f32.gmra.mrb[0].mxu0 %v2064
    %v2132 = vpop.f32.mrb[0].mxu0
    %v2133 = vadd.f32 0.0, %v2132
    %v2134 = vpop.f32.mrb[0].mxu0
    %v2135 = vadd.f32 0.0, %v2134
    %2136 = vdwg.mxu0
    %2137 = vmatprep.subr.mxu0 0.0
    %2138 = vmatpush1.msra.mxu0 %v77
    %2139 = vmatprep.subr.mxu0 0.0
    %2140 = vmatpush1.msra.mxu0 0.0
    %2141 = vmatprep.subr.mxu0 0.0
    %2142 = vmatpush1.msra.mxu0 0.0
    %2143 = vmatprep.subr.mxu0 0.0
    %2144 = vmatpush1.msra.mxu0 0.0
    %2145 = vmatprep.subr.mxu0 0.0
    %2146 = vmatpush1.msra.mxu0 0.0
    %2147 = vmatprep.subr.mxu0 0.0
    %2148 = vmatpush1.msra.mxu0 0.0
    %2149 = vmatprep.subr.mxu0 0.0
    %2150 = vmatpush1.msra.mxu0 0.0
    %2151 = vmatprep.subr.mxu0 0.0
    %2152 = vmatpush1.msra.mxu0 0.0
    %2153 = vmatprep.subr.mxu0 0.0
    %2154 = vmatpush1.msra.mxu0 0.0
    %2155 = vmatprep.subr.mxu0 0.0
    %2156 = vmatpush1.msra.mxu0 0.0
    %2157 = vmatprep.subr.mxu0 0.0
    %2158 = vmatpush1.msra.mxu0 0.0
    %2159 = vmatprep.subr.mxu0 0.0
    %2160 = vmatpush1.msra.mxu0 0.0
    %2161 = vmatprep.subr.mxu0 0.0
    %2162 = vmatpush1.msra.mxu0 0.0
    %2163 = vmatprep.subr.mxu0 0.0
    %2164 = vmatpush1.msra.mxu0 0.0
    %2165 = vmatprep.subr.mxu0 0.0
    %2166 = vmatpush1.msra.mxu0 0.0
    %2167 = vmatprep.subr.mxu0 0.0
    %2168 = vmatpush1.msra.mxu0 0.0
    %2169 = vmatprep.subr.mxu0 0.0
    %2170 = vmatpush1.msra.mxu0 0.0
    %2171 = vmatprep.subr.mxu0 0.0
    %2172 = vmatpush1.msra.mxu0 0.0
    %2173 = vmatprep.subr.mxu0 0.0
    %2174 = vmatpush1.msra.mxu0 0.0
    %2175 = vmatprep.subr.mxu0 0.0
    %2176 = vmatpush1.msra.mxu0 0.0
    %2177 = vmatprep.subr.mxu0 0.0
    %2178 = vmatpush1.msra.mxu0 0.0
    %2179 = vmatprep.subr.mxu0 0.0
    %2180 = vmatpush1.msra.mxu0 0.0
    %2181 = vmatprep.subr.mxu0 0.0
    %2182 = vmatpush1.msra.mxu0 0.0
    %2183 = vmatprep.subr.mxu0 0.0
    %2184 = vmatpush1.msra.mxu0 0.0
    %2185 = vmatprep.subr.mxu0 0.0
    %2186 = vmatpush1.msra.mxu0 0.0
    %2187 = vmatprep.subr.mxu0 0.0
    %2188 = vmatpush1.msra.mxu0 0.0
    %2189 = vmatprep.subr.mxu0 0.0
    %2190 = vmatpush1.msra.mxu0 0.0
    %2191 = vmatprep.subr.mxu0 0.0
    %2192 = vmatpush1.msra.mxu0 0.0
    %2193 = vmatprep.subr.mxu0 0.0
    %2194 = vmatpush1.msra.mxu0 0.0
    %2195 = vmatprep.subr.mxu0 0.0
    %2196 = vmatpush1.msra.mxu0 0.0
    %2197 = vmatprep.subr.mxu0 0.0
    %2198 = vmatpush1.msra.mxu0 0.0
    %2199 = vmatprep.subr.mxu0 0.0
    %2200 = vmatpush1.msra.mxu0 0.0
    %2201 = vmatprep.mubr.f32.mxu0 0.0
    %2202 = vmatmul.mubr.f32.gmra.mrb[0].mxu0 %v2064
    %v2203 = vpop.f32.mrb[0].mxu0
    %v2204 = vadd.f32 0.0, %v2203
    %v2205 = vpop.f32.mrb[0].mxu0
    %2206 = vdwg.mxu0
    %2207 = vmatprep.subr.mxu0 %v79
    %2208 = vmatpush1.msra.mxu0 %v78
    %2209 = vmatprep.subr.mxu0 %v82
    %2210 = vmatpush1.msra.mxu0 %v81
    %2211 = vmatprep.subr.mxu0 %v85
    %2212 = vmatpush1.msra.mxu0 %v84
    %2213 = vmatprep.subr.mxu0 %v88
    %2214 = vmatpush1.msra.mxu0 %v87
    %2215 = vmatprep.subr.mxu0 %v91
    %2216 = vmatpush1.msra.mxu0 %v90
    %2217 = vmatprep.subr.mxu0 %v94
    %2218 = vmatpush1.msra.mxu0 %v93
    %2219 = vmatprep.subr.mxu0 %v97
    %2220 = vmatpush1.msra.mxu0 %v96
    %2221 = vmatprep.subr.mxu0 %v100
    %2222 = vmatpush1.msra.mxu0 %v99
    %2223 = vmatprep.subr.mxu0 %v103
    %2224 = vmatpush1.msra.mxu0 %v102
    %2225 = vmatprep.subr.mxu0 %v106
    %2226 = vmatpush1.msra.mxu0 %v105
    %2227 = vmatprep.subr.mxu0 %v109
    %2228 = vmatpush1.msra.mxu0 %v108
    %2229 = vmatprep.subr.mxu0 %v112
    %2230 = vmatpush1.msra.mxu0 %v111
    %2231 = vmatprep.subr.mxu0 %v115
    %2232 = vmatpush1.msra.mxu0 %v114
    %2233 = vmatprep.subr.mxu0 %v118
    %2234 = vmatpush1.msra.mxu0 %v117
    %2235 = vmatprep.subr.mxu0 %v121
    %2236 = vmatpush1.msra.mxu0 %v120
    %2237 = vmatprep.subr.mxu0 %v124
    %2238 = vmatpush1.msra.mxu0 %v123
    %2239 = vmatprep.subr.mxu0 0.0
    %2240 = vmatpush1.msra.mxu0 0.0
    %2241 = vmatprep.subr.mxu0 0.0
    %2242 = vmatpush1.msra.mxu0 0.0
    %2243 = vmatprep.subr.mxu0 0.0
    %2244 = vmatpush1.msra.mxu0 0.0
    %2245 = vmatprep.subr.mxu0 0.0
    %2246 = vmatpush1.msra.mxu0 0.0
    %2247 = vmatprep.subr.mxu0 0.0
    %2248 = vmatpush1.msra.mxu0 0.0
    %2249 = vmatprep.subr.mxu0 0.0
    %2250 = vmatpush1.msra.mxu0 0.0
    %2251 = vmatprep.subr.mxu0 0.0
    %2252 = vmatpush1.msra.mxu0 0.0
    %2253 = vmatprep.subr.mxu0 0.0
    %2254 = vmatpush1.msra.mxu0 0.0
    %2255 = vmatprep.subr.mxu0 0.0
    %2256 = vmatpush1.msra.mxu0 0.0
    %2257 = vmatprep.subr.mxu0 0.0
    %2258 = vmatpush1.msra.mxu0 0.0
    %2259 = vmatprep.subr.mxu0 0.0
    %2260 = vmatpush1.msra.mxu0 0.0
    %2261 = vmatprep.subr.mxu0 0.0
    %2262 = vmatpush1.msra.mxu0 0.0
    %2263 = vmatprep.subr.mxu0 0.0
    %2264 = vmatpush1.msra.mxu0 0.0
    %2265 = vmatprep.subr.mxu0 0.0
    %2266 = vmatpush1.msra.mxu0 0.0
    %2267 = vmatprep.subr.mxu0 0.0
    %2268 = vmatpush1.msra.mxu0 0.0
    %2269 = vmatprep.subr.mxu0 0.0
    %2270 = vmatpush1.msra.mxu0 0.0
    %2271 = vmatprep.mubr.f32.mxu0 0.0
    %2272 = vmatmul.mubr.f32.gmra.mrb[0].mxu0 %v2062
    %v2273 = vpop.f32.mrb[0].mxu0
    %v2274 = vadd.f32 %v131, %v2273
    %v2275 = vpop.f32.mrb[0].mxu0
    %v2276 = vadd.f32 %v135, %v2275
    %2277 = vdwg.mxu0
    %2278 = vmatprep.subr.mxu0 0.0
    %2279 = vmatpush1.msra.mxu0 %v80
    %2280 = vmatprep.subr.mxu0 0.0
    %2281 = vmatpush1.msra.mxu0 %v83
    %2282 = vmatprep.subr.mxu0 0.0
    %2283 = vmatpush1.msra.mxu0 %v86
    %2284 = vmatprep.subr.mxu0 0.0
    %2285 = vmatpush1.msra.mxu0 %v89
    %2286 = vmatprep.subr.mxu0 0.0
    %2287 = vmatpush1.msra.mxu0 %v92
    %2288 = vmatprep.subr.mxu0 0.0
    %2289 = vmatpush1.msra.mxu0 %v95
    %2290 = vmatprep.subr.mxu0 0.0
    %2291 = vmatpush1.msra.mxu0 %v98
    %2292 = vmatprep.subr.mxu0 0.0
    %2293 = vmatpush1.msra.mxu0 %v101
    %2294 = vmatprep.subr.mxu0 0.0
    %2295 = vmatpush1.msra.mxu0 %v104
    %2296 = vmatprep.subr.mxu0 0.0
    %2297 = vmatpush1.msra.mxu0 %v107
    %2298 = vmatprep.subr.mxu0 0.0
    %2299 = vmatpush1.msra.mxu0 %v110
    %2300 = vmatprep.subr.mxu0 0.0
    %2301 = vmatpush1.msra.mxu0 %v113
    %2302 = vmatprep.subr.mxu0 0.0
    %2303 = vmatpush1.msra.mxu0 %v116
    %2304 = vmatprep.subr.mxu0 0.0
    %2305 = vmatpush1.msra.mxu0 %v119
    %2306 = vmatprep.subr.mxu0 0.0
    %2307 = vmatpush1.msra.mxu0 %v122
    %2308 = vmatprep.subr.mxu0 0.0
    %2309 = vmatpush1.msra.mxu0 %v125
    %2310 = vmatprep.subr.mxu0 0.0
    %2311 = vmatpush1.msra.mxu0 0.0
    %2312 = vmatprep.subr.mxu0 0.0
    %2313 = vmatpush1.msra.mxu0 0.0
    %2314 = vmatprep.subr.mxu0 0.0
    %2315 = vmatpush1.msra.mxu0 0.0
    %2316 = vmatprep.subr.mxu0 0.0
    %2317 = vmatpush1.msra.mxu0 0.0
    %2318 = vmatprep.subr.mxu0 0.0
    %2319 = vmatpush1.msra.mxu0 0.0
    %2320 = vmatprep.subr.mxu0 0.0
    %2321 = vmatpush1.msra.mxu0 0.0
    %2322 = vmatprep.subr.mxu0 0.0
    %2323 = vmatpush1.msra.mxu0 0.0
    %2324 = vmatprep.subr.mxu0 0.0
    %2325 = vmatpush1.msra.mxu0 0.0
    %2326 = vmatprep.subr.mxu0 0.0
    %2327 = vmatpush1.msra.mxu0 0.0
    %2328 = vmatprep.subr.mxu0 0.0
    %2329 = vmatpush1.msra.mxu0 0.0
    %2330 = vmatprep.subr.mxu0 0.0
    %2331 = vmatpush1.msra.mxu0 0.0
    %2332 = vmatprep.subr.mxu0 0.0
    %2333 = vmatpush1.msra.mxu0 0.0
    %2334 = vmatprep.subr.mxu0 0.0
    %2335 = vmatpush1.msra.mxu0 0.0
    %2336 = vmatprep.subr.mxu0 0.0
    %2337 = vmatpush1.msra.mxu0 0.0
    %2338 = vmatprep.subr.mxu0 0.0
    %2339 = vmatpush1.msra.mxu0 0.0
    %2340 = vmatprep.subr.mxu0 0.0
    %2341 = vmatpush1.msra.mxu0 0.0
    %2342 = vmatprep.mubr.f32.mxu0 0.0
    %2343 = vmatmul.mubr.f32.gmra.mrb[0].mxu0 %v2062
    %v2344 = vpop.f32.mrb[0].mxu0
    %v2345 = vadd.f32 %v139, %v2344
    %v2346 = vpop.f32.mrb[0].mxu0
    %2347 = vdwg.mxu0
    %v2348 = vadd.f32 %v2133, %v2274
    %v2349 = vadd.f32 %v2135, %v2276
    %v2350 = vxor.u32 %v2348, 2147483648
    %v2351 = vxor.u32 %v2349, 2147483648
    %v2352 = vmul.f32 %v2350, 1.442695
    %v2353 = vpow.pop %v2352
    %v2354 = vmul.f32 %v2351, 1.442695
    %v2355 = vpow.pop %v2354
    %v2356 = vadd.f32 %v2353, 1.0
    %v2357 = vadd.f32 %v2355, 1.0
    %v2358 = vrcp.pop %v2356
    %v2359 = vmul.f32 1.0, %v2358
    %v2360 = vrcp.pop %v2357
    %v2361 = vmul.f32 1.0, %v2360
    %v2362 = vmul.f32 %v2359, %v2345
    %v2363 = vadd.f32 %v2204, %v2362
    %v2364 = vtanh.pop %v2363
    %v2365 = vsub.f32 1.0, %v2361
    %v2366 = vmul.f32 %v2365, %v2364
    %v2367 = vmul.f32 %v2361, %v2062
    %v2368 = vadd.f32 %v2366, %v2367
    %v2370 = vsel %vm226, %v225, 0
    %2372 = vmatprep.subr.mxu0 %v76
    %2373 = vmatpush1.msra.mxu0 %v75
    %2374 = vmatprep.subr.mxu0 0.0
    %2375 = vmatpush1.msra.mxu0 0.0
    %2376 = vmatprep.subr.mxu0 0.0
    %2377 = vmatpush1.msra.mxu0 0.0
    %2378 = vmatprep.subr.mxu0 0.0
    %2379 = vmatpush1.msra.mxu0 0.0
    %2380 = vmatprep.subr.mxu0 0.0
    %2381 = vmatpush1.msra.mxu0 0.0
    %2382 = vmatprep.subr.mxu0 0.0
    %2383 = vmatpush1.msra.mxu0 0.0
    %2384 = vmatprep.subr.mxu0 0.0
    %2385 = vmatpush1.msra.mxu0 0.0
    %2386 = vmatprep.subr.mxu0 0.0
    %2387 = vmatpush1.msra.mxu0 0.0
    %2388 = vmatprep.subr.mxu0 0.0
    %2389 = vmatpush1.msra.mxu0 0.0
    %2390 = vmatprep.subr.mxu0 0.0
    %2391 = vmatpush1.msra.mxu0 0.0
    %2392 = vmatprep.subr.mxu0 0.0
    %2393 = vmatpush1.msra.mxu0 0.0
    %2394 = vmatprep.subr.mxu0 0.0
    %2395 = vmatpush1.msra.mxu0 0.0
    %2396 = vmatprep.subr.mxu0 0.0
    %2397 = vmatpush1.msra.mxu0 0.0
    %2398 = vmatprep.subr.mxu0 0.0
    %2399 = vmatpush1.msra.mxu0 0.0
    %2400 = vmatprep.subr.mxu0 0.0
    %2401 = vmatpush1.msra.mxu0 0.0
    %2402 = vmatprep.subr.mxu0 0.0
    %2403 = vmatpush1.msra.mxu0 0.0
    %2404 = vmatprep.subr.mxu0 0.0
    %2405 = vmatpush1.msra.mxu0 0.0
    %2406 = vmatprep.subr.mxu0 0.0
    %2407 = vmatpush1.msra.mxu0 0.0
    %2408 = vmatprep.subr.mxu0 0.0
    %2409 = vmatpush1.msra.mxu0 0.0
    %2410 = vmatprep.subr.mxu0 0.0
    %2411 = vmatpush1.msra.mxu0 0.0
    %2412 = vmatprep.subr.mxu0 0.0
    %2413 = vmatpush1.msra.mxu0 0.0
    %2414 = vmatprep.subr.mxu0 0.0
    %2415 = vmatpush1.msra.mxu0 0.0
    %2416 = vmatprep.subr.mxu0 0.0
    %2417 = vmatpush1.msra.mxu0 0.0
    %2418 = vmatprep.subr.mxu0 0.0
    %2419 = vmatpush1.msra.mxu0 0.0
    %2420 = vmatprep.subr.mxu0 0.0
    %2421 = vmatpush1.msra.mxu0 0.0
    %2422 = vmatprep.subr.mxu0 0.0
    %2423 = vmatpush1.msra.mxu0 0.0
    %2424 = vmatprep.subr.mxu0 0.0
    %2425 = vmatpush1.msra.mxu0 0.0
    %2426 = vmatprep.subr.mxu0 0.0
    %2427 = vmatpush1.msra.mxu0 0.0
    %2428 = vmatprep.subr.mxu0 0.0
    %2429 = vmatpush1.msra.mxu0 0.0
    %2430 = vmatprep.subr.mxu0 0.0
    %2431 = vmatpush1.msra.mxu0 0.0
    %2432 = vmatprep.subr.mxu0 0.0
    %2433 = vmatpush1.msra.mxu0 0.0
    %2434 = vmatprep.subr.mxu0 0.0
    %2435 = vmatpush1.msra.mxu0 0.0
    %2436 = vmatprep.mubr.f32.mxu0 0.0
    %2437 = vmatmul.mubr.f32.gmra.mrb[0].mxu0 %v2370
    %v2438 = vpop.f32.mrb[0].mxu0
    %v2439 = vadd.f32 0.0, %v2438
    %v2440 = vpop.f32.mrb[0].mxu0
    %v2441 = vadd.f32 0.0, %v2440
    %2442 = vdwg.mxu0
    %2443 = vmatprep.subr.mxu0 0.0
    %2444 = vmatpush1.msra.mxu0 %v77
    %2445 = vmatprep.subr.mxu0 0.0
    %2446 = vmatpush1.msra.mxu0 0.0
    %2447 = vmatprep.subr.mxu0 0.0
    %2448 = vmatpush1.msra.mxu0 0.0
    %2449 = vmatprep.subr.mxu0 0.0
    %2450 = vmatpush1.msra.mxu0 0.0
    %2451 = vmatprep.subr.mxu0 0.0
    %2452 = vmatpush1.msra.mxu0 0.0
    %2453 = vmatprep.subr.mxu0 0.0
    %2454 = vmatpush1.msra.mxu0 0.0
    %2455 = vmatprep.subr.mxu0 0.0
    %2456 = vmatpush1.msra.mxu0 0.0
    %2457 = vmatprep.subr.mxu0 0.0
    %2458 = vmatpush1.msra.mxu0 0.0
    %2459 = vmatprep.subr.mxu0 0.0
    %2460 = vmatpush1.msra.mxu0 0.0
    %2461 = vmatprep.subr.mxu0 0.0
    %2462 = vmatpush1.msra.mxu0 0.0
    %2463 = vmatprep.subr.mxu0 0.0
    %2464 = vmatpush1.msra.mxu0 0.0
    %2465 = vmatprep.subr.mxu0 0.0
    %2466 = vmatpush1.msra.mxu0 0.0
    %2467 = vmatprep.subr.mxu0 0.0
    %2468 = vmatpush1.msra.mxu0 0.0
    %2469 = vmatprep.subr.mxu0 0.0
    %2470 = vmatpush1.msra.mxu0 0.0
    %2471 = vmatprep.subr.mxu0 0.0
    %2472 = vmatpush1.msra.mxu0 0.0
    %2473 = vmatprep.subr.mxu0 0.0
    %2474 = vmatpush1.msra.mxu0 0.0
    %2475 = vmatprep.subr.mxu0 0.0
    %2476 = vmatpush1.msra.mxu0 0.0
    %2477 = vmatprep.subr.mxu0 0.0
    %2478 = vmatpush1.msra.mxu0 0.0
    %2479 = vmatprep.subr.mxu0 0.0
    %2480 = vmatpush1.msra.mxu0 0.0
    %2481 = vmatprep.subr.mxu0 0.0
    %2482 = vmatpush1.msra.mxu0 0.0
    %2483 = vmatprep.subr.mxu0 0.0
    %2484 = vmatpush1.msra.mxu0 0.0
    %2485 = vmatprep.subr.mxu0 0.0
    %2486 = vmatpush1.msra.mxu0 0.0
    %2487 = vmatprep.subr.mxu0 0.0
    %2488 = vmatpush1.msra.mxu0 0.0
    %2489 = vmatprep.subr.mxu0 0.0
    %2490 = vmatpush1.msra.mxu0 0.0
    %2491 = vmatprep.subr.mxu0 0.0
    %2492 = vmatpush1.msra.mxu0 0.0
    %2493 = vmatprep.subr.mxu0 0.0
    %2494 = vmatpush1.msra.mxu0 0.0
    %2495 = vmatprep.subr.mxu0 0.0
    %2496 = vmatpush1.msra.mxu0 0.0
    %2497 = vmatprep.subr.mxu0 0.0
    %2498 = vmatpush1.msra.mxu0 0.0
    %2499 = vmatprep.subr.mxu0 0.0
    %2500 = vmatpush1.msra.mxu0 0.0
    %2501 = vmatprep.subr.mxu0 0.0
    %2502 = vmatpush1.msra.mxu0 0.0
    %2503 = vmatprep.subr.mxu0 0.0
    %2504 = vmatpush1.msra.mxu0 0.0
    %2505 = vmatprep.subr.mxu0 0.0
    %2506 = vmatpush1.msra.mxu0 0.0
    %2507 = vmatprep.mubr.f32.mxu0 0.0
    %2508 = vmatmul.mubr.f32.gmra.mrb[0].mxu0 %v2370
    %v2509 = vpop.f32.mrb[0].mxu0
    %v2510 = vadd.f32 0.0, %v2509
    %v2511 = vpop.f32.mrb[0].mxu0
    %2512 = vdwg.mxu0
    %2513 = vmatprep.subr.mxu0 %v79
    %2514 = vmatpush1.msra.mxu0 %v78
    %2515 = vmatprep.subr.mxu0 %v82
    %2516 = vmatpush1.msra.mxu0 %v81
    %2517 = vmatprep.subr.mxu0 %v85
    %2518 = vmatpush1.msra.mxu0 %v84
    %2519 = vmatprep.subr.mxu0 %v88
    %2520 = vmatpush1.msra.mxu0 %v87
    %2521 = vmatprep.subr.mxu0 %v91
    %2522 = vmatpush1.msra.mxu0 %v90
    %2523 = vmatprep.subr.mxu0 %v94
    %2524 = vmatpush1.msra.mxu0 %v93
    %2525 = vmatprep.subr.mxu0 %v97
    %2526 = vmatpush1.msra.mxu0 %v96
    %2527 = vmatprep.subr.mxu0 %v100
    %2528 = vmatpush1.msra.mxu0 %v99
    %2529 = vmatprep.subr.mxu0 %v103
    %2530 = vmatpush1.msra.mxu0 %v102
    %2531 = vmatprep.subr.mxu0 %v106
    %2532 = vmatpush1.msra.mxu0 %v105
    %2533 = vmatprep.subr.mxu0 %v109
    %2534 = vmatpush1.msra.mxu0 %v108
    %2535 = vmatprep.subr.mxu0 %v112
    %2536 = vmatpush1.msra.mxu0 %v111
    %2537 = vmatprep.subr.mxu0 %v115
    %2538 = vmatpush1.msra.mxu0 %v114
    %2539 = vmatprep.subr.mxu0 %v118
    %2540 = vmatpush1.msra.mxu0 %v117
    %2541 = vmatprep.subr.mxu0 %v121
    %2542 = vmatpush1.msra.mxu0 %v120
    %2543 = vmatprep.subr.mxu0 %v124
    %2544 = vmatpush1.msra.mxu0 %v123
    %2545 = vmatprep.subr.mxu0 0.0
    %2546 = vmatpush1.msra.mxu0 0.0
    %2547 = vmatprep.subr.mxu0 0.0
    %2548 = vmatpush1.msra.mxu0 0.0
    %2549 = vmatprep.subr.mxu0 0.0
    %2550 = vmatpush1.msra.mxu0 0.0
    %2551 = vmatprep.subr.mxu0 0.0
    %2552 = vmatpush1.msra.mxu0 0.0
    %2553 = vmatprep.subr.mxu0 0.0
    %2554 = vmatpush1.msra.mxu0 0.0
    %2555 = vmatprep.subr.mxu0 0.0
    %2556 = vmatpush1.msra.mxu0 0.0
    %2557 = vmatprep.subr.mxu0 0.0
    %2558 = vmatpush1.msra.mxu0 0.0
    %2559 = vmatprep.subr.mxu0 0.0
    %2560 = vmatpush1.msra.mxu0 0.0
    %2561 = vmatprep.subr.mxu0 0.0
    %2562 = vmatpush1.msra.mxu0 0.0
    %2563 = vmatprep.subr.mxu0 0.0
    %2564 = vmatpush1.msra.mxu0 0.0
    %2565 = vmatprep.subr.mxu0 0.0
    %2566 = vmatpush1.msra.mxu0 0.0
    %2567 = vmatprep.subr.mxu0 0.0
    %2568 = vmatpush1.msra.mxu0 0.0
    %2569 = vmatprep.subr.mxu0 0.0
    %2570 = vmatpush1.msra.mxu0 0.0
    %2571 = vmatprep.subr.mxu0 0.0
    %2572 = vmatpush1.msra.mxu0 0.0
    %2573 = vmatprep.subr.mxu0 0.0
    %2574 = vmatpush1.msra.mxu0 0.0
    %2575 = vmatprep.subr.mxu0 0.0
    %2576 = vmatpush1.msra.mxu0 0.0
    %2577 = vmatprep.mubr.f32.mxu0 0.0
    %2578 = vmatmul.mubr.f32.gmra.mrb[0].mxu0 %v2368
    %v2579 = vpop.f32.mrb[0].mxu0
    %v2580 = vadd.f32 %v131, %v2579
    %v2581 = vpop.f32.mrb[0].mxu0
    %v2582 = vadd.f32 %v135, %v2581
    %2583 = vdwg.mxu0
    %2584 = vmatprep.subr.mxu0 0.0
    %2585 = vmatpush1.msra.mxu0 %v80
    %2586 = vmatprep.subr.mxu0 0.0
    %2587 = vmatpush1.msra.mxu0 %v83
    %2588 = vmatprep.subr.mxu0 0.0
    %2589 = vmatpush1.msra.mxu0 %v86
    %2590 = vmatprep.subr.mxu0 0.0
    %2591 = vmatpush1.msra.mxu0 %v89
    %2592 = vmatprep.subr.mxu0 0.0
    %2593 = vmatpush1.msra.mxu0 %v92
    %2594 = vmatprep.subr.mxu0 0.0
    %2595 = vmatpush1.msra.mxu0 %v95
    %2596 = vmatprep.subr.mxu0 0.0
    %2597 = vmatpush1.msra.mxu0 %v98
    %2598 = vmatprep.subr.mxu0 0.0
    %2599 = vmatpush1.msra.mxu0 %v101
    %2600 = vmatprep.subr.mxu0 0.0
    %2601 = vmatpush1.msra.mxu0 %v104
    %2602 = vmatprep.subr.mxu0 0.0
    %2603 = vmatpush1.msra.mxu0 %v107
    %2604 = vmatprep.subr.mxu0 0.0
    %2605 = vmatpush1.msra.mxu0 %v110
    %2606 = vmatprep.subr.mxu0 0.0
    %2607 = vmatpush1.msra.mxu0 %v113
    %2608 = vmatprep.subr.mxu0 0.0
    %2609 = vmatpush1.msra.mxu0 %v116
    %2610 = vmatprep.subr.mxu0 0.0
    %2611 = vmatpush1.msra.mxu0 %v119
    %2612 = vmatprep.subr.mxu0 0.0
    %2613 = vmatpush1.msra.mxu0 %v122
    %2614 = vmatprep.subr.mxu0 0.0
    %2615 = vmatpush1.msra.mxu0 %v125
    %2616 = vmatprep.subr.mxu0 0.0
    %2617 = vmatpush1.msra.mxu0 0.0
    %2618 = vmatprep.subr.mxu0 0.0
    %2619 = vmatpush1.msra.mxu0 0.0
    %2620 = vmatprep.subr.mxu0 0.0
    %2621 = vmatpush1.msra.mxu0 0.0
    %2622 = vmatprep.subr.mxu0 0.0
    %2623 = vmatpush1.msra.mxu0 0.0
    %2624 = vmatprep.subr.mxu0 0.0
    %2625 = vmatpush1.msra.mxu0 0.0
    %2626 = vmatprep.subr.mxu0 0.0
    %2627 = vmatpush1.msra.mxu0 0.0
    %2628 = vmatprep.subr.mxu0 0.0
    %2629 = vmatpush1.msra.mxu0 0.0
    %2630 = vmatprep.subr.mxu0 0.0
    %2631 = vmatpush1.msra.mxu0 0.0
    %2632 = vmatprep.subr.mxu0 0.0
    %2633 = vmatpush1.msra.mxu0 0.0
    %2634 = vmatprep.subr.mxu0 0.0
    %2635 = vmatpush1.msra.mxu0 0.0
    %2636 = vmatprep.subr.mxu0 0.0
    %2637 = vmatpush1.msra.mxu0 0.0
    %2638 = vmatprep.subr.mxu0 0.0
    %2639 = vmatpush1.msra.mxu0 0.0
    %2640 = vmatprep.subr.mxu0 0.0
    %2641 = vmatpush1.msra.mxu0 0.0
    %2642 = vmatprep.subr.mxu0 0.0
    %2643 = vmatpush1.msra.mxu0 0.0
    %2644 = vmatprep.subr.mxu0 0.0
    %2645 = vmatpush1.msra.mxu0 0.0
    %2646 = vmatprep.subr.mxu0 0.0
    %2647 = vmatpush1.msra.mxu0 0.0
    %2648 = vmatprep.mubr.f32.mxu0 0.0
    %2649 = vmatmul.mubr.f32.gmra.mrb[0].mxu0 %v2368
    %v2650 = vpop.f32.mrb[0].mxu0
    %v2651 = vadd.f32 %v139, %v2650
    %v2652 = vpop.f32.mrb[0].mxu0
    %2653 = vdwg.mxu0
    %v2654 = vadd.f32 %v2439, %v2580
    %v2655 = vadd.f32 %v2441, %v2582
    %v2656 = vxor.u32 %v2654, 2147483648
    %v2657 = vxor.u32 %v2655, 2147483648
    %v2658 = vmul.f32 %v2656, 1.442695
    %v2659 = vpow.pop %v2658
    %v2660 = vmul.f32 %v2657, 1.442695
    %v2661 = vpow.pop %v2660
    %v2662 = vadd.f32 %v2659, 1.0
    %v2663 = vadd.f32 %v2661, 1.0
    %v2664 = vrcp.pop %v2662
    %v2665 = vmul.f32 1.0, %v2664
    %v2666 = vrcp.pop %v2663
    %v2667 = vmul.f32 1.0, %v2666
    %v2668 = vmul.f32 %v2665, %v2651
    %v2669 = vadd.f32 %v2510, %v2668
    %v2670 = vtanh.pop %v2669
    %v2671 = vsub.f32 1.0, %v2667
    %v2672 = vmul.f32 %v2671, %v2670
    %v2673 = vmul.f32 %v2667, %v2368
    %v2674 = vadd.f32 %v2672, %v2673
    %v2675 = vld [vmem:[#allocation8] sm:$0xff]
    %v2676 = vld [vmem:[#allocation8 + $0x8] sm:$0xff]
    %v2677 = vld [vmem:[#allocation8 + $0x10] sm:$0xff]
    %v2678 = vld [vmem:[#allocation8 + $0x18] sm:$0xff]
    %v2679 = vld [vmem:[#allocation8 + $0x20] sm:$0xff]
    %v2680 = vld [vmem:[#allocation8 + $0x28] sm:$0xff]
    %v2681 = vld [vmem:[#allocation8 + $0x30] sm:$0xff]
    %v2682 = vld [vmem:[#allocation8 + $0x38] sm:$0xff]
    %v2683 = vld [vmem:[#allocation8 + $0x40] sm:$0xff]
    %v2684 = vld [vmem:[#allocation8 + $0x48] sm:$0xff]
    %v2685 = vld [vmem:[#allocation8 + $0x50] sm:$0xff]
    %v2686 = vld [vmem:[#allocation8 + $0x58] sm:$0xff]
    %v2687 = vld [vmem:[#allocation8 + $0x60] sm:$0xff]
    %v2688 = vld [vmem:[#allocation8 + $0x68] sm:$0xff]
    %v2689 = vld [vmem:[#allocation8 + $0x70] sm:$0xff]
    %v2690 = vld [vmem:[#allocation8 + $0x78] sm:$0xff]
    %v2691 = vld [vmem:[%s5] sm:$0x1]
    %v2693 = vlaneseq
    %v2694 = vshrl.u32 %v2693, 7
    %v2695 = vsub.s32 0, %v2694
    %v2696 = vrot.slane %v2691, %v2695
    %2698 = vmatprep.subr.mxu0 0.0
    %2699 = vmatpush1.msra.mxu0 %v2675
    %2700 = vmatprep.subr.mxu0 0.0
    %2701 = vmatpush1.msra.mxu0 %v2676
    %2702 = vmatprep.subr.mxu0 0.0
    %2703 = vmatpush1.msra.mxu0 %v2677
    %2704 = vmatprep.subr.mxu0 0.0
    %2705 = vmatpush1.msra.mxu0 %v2678
    %2706 = vmatprep.subr.mxu0 0.0
    %2707 = vmatpush1.msra.mxu0 %v2679
    %2708 = vmatprep.subr.mxu0 0.0
    %2709 = vmatpush1.msra.mxu0 %v2680
    %2710 = vmatprep.subr.mxu0 0.0
    %2711 = vmatpush1.msra.mxu0 %v2681
    %2712 = vmatprep.subr.mxu0 0.0
    %2713 = vmatpush1.msra.mxu0 %v2682
    %2714 = vmatprep.subr.mxu0 0.0
    %2715 = vmatpush1.msra.mxu0 %v2683
    %2716 = vmatprep.subr.mxu0 0.0
    %2717 = vmatpush1.msra.mxu0 %v2684
    %2718 = vmatprep.subr.mxu0 0.0
    %2719 = vmatpush1.msra.mxu0 %v2685
    %2720 = vmatprep.subr.mxu0 0.0
    %2721 = vmatpush1.msra.mxu0 %v2686
    %2722 = vmatprep.subr.mxu0 0.0
    %2723 = vmatpush1.msra.mxu0 %v2687
    %2724 = vmatprep.subr.mxu0 0.0
    %2725 = vmatpush1.msra.mxu0 %v2688
    %2726 = vmatprep.subr.mxu0 0.0
    %2727 = vmatpush1.msra.mxu0 %v2689
    %2728 = vmatprep.subr.mxu0 0.0
    %2729 = vmatpush1.msra.mxu0 %v2690
    %2730 = vmatprep.subr.mxu0 0.0
    %2731 = vmatpush1.msra.mxu0 0.0
    %2732 = vmatprep.subr.mxu0 0.0
    %2733 = vmatpush1.msra.mxu0 0.0
    %2734 = vmatprep.subr.mxu0 0.0
    %2735 = vmatpush1.msra.mxu0 0.0
    %2736 = vmatprep.subr.mxu0 0.0
    %2737 = vmatpush1.msra.mxu0 0.0
    %2738 = vmatprep.subr.mxu0 0.0
    %2739 = vmatpush1.msra.mxu0 0.0
    %2740 = vmatprep.subr.mxu0 0.0
    %2741 = vmatpush1.msra.mxu0 0.0
    %2742 = vmatprep.subr.mxu0 0.0
    %2743 = vmatpush1.msra.mxu0 0.0
    %2744 = vmatprep.subr.mxu0 0.0
    %2745 = vmatpush1.msra.mxu0 0.0
    %2746 = vmatprep.subr.mxu0 0.0
    %2747 = vmatpush1.msra.mxu0 0.0
    %2748 = vmatprep.subr.mxu0 0.0
    %2749 = vmatpush1.msra.mxu0 0.0
    %2750 = vmatprep.subr.mxu0 0.0
    %2751 = vmatpush1.msra.mxu0 0.0
    %2752 = vmatprep.subr.mxu0 0.0
    %2753 = vmatpush1.msra.mxu0 0.0
    %2754 = vmatprep.subr.mxu0 0.0
    %2755 = vmatpush1.msra.mxu0 0.0
    %2756 = vmatprep.subr.mxu0 0.0
    %2757 = vmatpush1.msra.mxu0 0.0
    %2758 = vmatprep.subr.mxu0 0.0
    %2759 = vmatpush1.msra.mxu0 0.0
    %2760 = vmatprep.subr.mxu0 0.0
    %2761 = vmatpush1.msra.mxu0 0.0
    %2762 = vmatprep.mubr.f32.mxu0 0.0
    %2763 = vmatmul.mubr.f32.gmra.mrb[0].mxu0 %v2674
    %v2764 = vpop.f32.mrb[0].mxu0
    %v2765 = vadd.f32 %v2696, %v2764
    %v2766 = vpop.f32.mrb[0].mxu0
    %2767 = vdwg.mxu0
    %2768 = vst [vmem:[#allocation10] sm:$0xff] %v2765
    // Predicated region
    $region42: #{tpu_custom_call.1} parent=1 // pred_check
      _
    $region43: #{tpu_custom_call.1} parent=1 // pred_check_branch
      %2770 = sbr.rel (0) target = $region45
    $region44: #{tpu_custom_call.1} parent=1 // pred_region
      %s2772 = ssub.s32 128, 128
      %2773 = vsyncadd [#allocation4], %s2772
      %s2775 = sshll.u32 [#allocation10], 4
      %s2776 = int_to_ptr.vmem [resolvable:$true] %s2775
      %2778 = dma.vmem_to_hbm [thread:$0]  %s2776, 128, %s6, [#allocation4]
    $region45: #{tpu_custom_call.1} parent=1 // pred_fallthru
      _
    // Predicated region
    $region46: #{tpu_custom_call.1} parent=1 // pred_check
      _
    $region47: #{tpu_custom_call.1} parent=1 // pred_check_branch
      %2780 = sbr.rel (0) target = $region49
    $region48: #{tpu_custom_call.1} parent=1 // pred_region
      %2781 = dma.done [#allocation4], 128
    $region49: #{tpu_custom_call.1} parent=1 // pred_fallthru
      _
    %2782 = vsyncpa [#allocation3], 1
    %2783 = vsyncpa [#allocation6], 1
    %2784 = vsyncpa [#allocation9], 1
    %2785 = vsyncpa [#allocation4], 1

</llo_original>
